<compile_context>
chip_gen: v5e
topology: v5e:2x2
jax: 0.10.0
libtpu: 0.0.40
codegen_flags: <defaults>
</compile_context>

<pallas_src>
import functools
import math

import jax
import jax.numpy as jnp
from jax.experimental import pallas as pl
from jax.experimental.pallas import tpu as pltpu

F32 = jnp.float32
BF16 = jnp.bfloat16

CFG = dict(
    vocab_size=128,
    hidden=64,
    num_heads=4,
    head_dim=16,
    intermediate=256,
    num_layers=2,
    max_pos=32,
    pad_idx=1,
    type_vocab=1,
)

# dot_general dimension numbers for head-batched matmuls
_BMM = (((2,), (1,)), ((0,), (0,)))      # [h,m,k] x [h,k,n] -> [h,m,n]
_BMM_TB = (((2,), (2,)), ((0,), (0,)))   # [h,m,k] x [h,n,k] -> [h,m,n]  (B^T)


def _gelu(x):
    # TODO(synk): HF XLM-Roberta uses erf-based GELU; tanh approximation used
    # because erf has no guaranteed Mosaic lowering (numerics are close).
    c = math.sqrt(2.0 / math.pi)
    return 0.5 * x * (1.0 + jnp.tanh(c * (x + 0.044715 * x * x * x)))


def _ln(x, g, b, eps):
    mu = jnp.mean(x, axis=-1, keepdims=True)
    var = jnp.mean((x - mu) * (x - mu), axis=-1, keepdims=True)
    return (x - mu) * jax.lax.rsqrt(var + eps) * g + b


# ----------------------------------------------------------------------------
# Single fused forward kernel (one grid step == one sequence of S tokens)
# ----------------------------------------------------------------------------

def _fused_forward_kernel(
        emb_ref,                                  # [S, H] f32 (tok+pos+type)
        emb_g_ref, emb_b_ref,                     # [1, H]
        wq_ref, wk_ref, wv_ref,                   # [L, nH, H, dh] bf16
        bq_ref, bk_ref, bv_ref,                   # [L, nH, 1, dh] f32
        wo_ref, bo_ref,                           # [L, nH, dh, H] bf16 / [L,1,H]
        ln1_g_ref, ln1_b_ref,                     # [L, 1, H]
        wi_ref, bi_ref,                           # [L, H, I] bf16 / [L, 1, I]
        wf_ref, bf_ref,                           # [L, I, H] bf16 / [L, 1, H]
        ln2_g_ref, ln2_b_ref,                     # [L, 1, H]
        hw_ref, hb_ref, hg_ref, hbeta_ref,        # lm_head dense + LN
        embT_ref, db_ref,                         # [H, V] bf16 / [1, V]
        logits_ref, reps_ref,                     # outputs [S, V] / [S, H]
        *, num_layers, num_heads, eps):
    S, H = emb_ref.shape

    # --- embedding LayerNorm ---
    h = _ln(emb_ref[...].astype(F32), emb_g_ref[...].astype(F32),
            emb_b_ref[...].astype(F32), eps)

    # --- encoder layers (no attention mask: matches roberta(x) w/o mask) ---
    for l in range(num_layers):                     # static unroll (L=2)
        h_bf = h.astype(BF16)
        hb3 = jnp.broadcast_to(h_bf[None, :, :], (num_heads, S, H))

        # head-batched Q/K/V projections (softmax scale folded into wq/bq)
        q = jax.lax.dot_general(hb3, wq_ref[l], _BMM,
                                preferred_element_type=F32) + bq_ref[l]
        k = jax.lax.dot_general(hb3, wk_ref[l], _BMM,
                                preferred_element_type=F32) + bk_ref[l]
        v = jax.lax.dot_general(hb3, wv_ref[l], _BMM,
                                preferred_element_type=F32) + bv_ref[l]

        # scores with K-transpose folded into the contraction: [nH, S, S]
        s = jax.lax.dot_general(q.astype(BF16), k.astype(BF16), _BMM_TB,
                                preferred_element_type=F32)
        m = jnp.max(s, axis=-1, keepdims=True)
        p = jnp.exp(s - m)
        p = p / jnp.sum(p, axis=-1, keepdims=True)   # exact division (fidelity)

        ctx = jax.lax.dot_general(p.astype(BF16), v.astype(BF16), _BMM,
                                  preferred_element_type=F32)   # [nH, S, dh]
        proj = jax.lax.dot_general(ctx.astype(BF16), wo_ref[l], _BMM,
                                   preferred_element_type=F32)  # [nH, S, H]
        attn = jnp.sum(proj, axis=0) + bo_ref[l]                # [S, H]
        h = _ln(attn + h, ln1_g_ref[l], ln1_b_ref[l], eps)

        # --- FFN: dense+GELU -> dense -> +residual -> LayerNorm ---
        ff = jnp.dot(h.astype(BF16), wi_ref[l],
                     preferred_element_type=F32) + bi_ref[l]
        ff = _gelu(ff)
        ff2 = jnp.dot(ff.astype(BF16), wf_ref[l],
                      preferred_element_type=F32) + bf_ref[l]
        h = _ln(ff2 + h, ln2_g_ref[l], ln2_b_ref[l], eps)

    reps_ref[...] = h.astype(reps_ref.dtype)

    # --- lm_head: dense+GELU -> LayerNorm -> decoder (tied emb^T) + bias ---
    z = jnp.dot(h.astype(BF16), hw_ref[...],
                preferred_element_type=F32) + hb_ref[...]
    z = _gelu(z)
    z = _ln(z, hg_ref[...], hbeta_ref[...], eps)
    logits = jnp.dot(z.astype(BF16), embT_ref[...],
                     preferred_element_type=F32) + db_ref[...]
    logits_ref[...] = logits.astype(logits_ref.dtype)


# ----------------------------------------------------------------------------
# Parameters (synthetic, deterministic, kernel-ready layout)
# ----------------------------------------------------------------------------

def init_params(key, cfg):
    std = 0.02
    H, I, V = cfg["hidden"], cfg["intermediate"], cfg["vocab_size"]
    nH, dh, L = cfg["num_heads"], cfg["head_dim"], cfg["num_layers"]
    scale = 1.0 / math.sqrt(dh)
    ks = iter(jax.random.split(key, 64))

    def nrm(shape):
        return std * jax.random.normal(next(ks), shape, dtype=F32)

    def per_head_cols(w):      # [H, H] -> [nH, H, dh]  (split output columns)
        return jnp.transpose(w.reshape(H, nH, dh), (1, 0, 2))

    word_emb = nrm((V, H))
    p = {
        "word_emb": word_emb.astype(BF16),                    # gather table
        "emb_T": jnp.transpose(word_emb).astype(BF16),        # [H, V] decoder
        "pos_emb": nrm((cfg["max_pos"], H)),
        "type_emb": nrm((cfg["type_vocab"], H)),
        "emb_ln_g": jnp.ones((1, H), F32),
        "emb_ln_b": jnp.zeros((1, H), F32),
        "head_w": nrm((H, H)).astype(BF16),
        "head_b": jnp.zeros((1, H), F32),
        "head_ln_g": jnp.ones((1, H), F32),
        "head_ln_b": jnp.zeros((1, H), F32),
        "decoder_b": jnp.zeros((1, V), F32),
    }

    wq, wk, wv = [], [], []
    wo, wi, wf = [], [], []
    for _ in range(L):
        wq.append((per_head_cols(nrm((H, H))) * scale).astype(BF16))  # scale folded
        wk.append(per_head_cols(nrm((H, H))).astype(BF16))
        wv.append(per_head_cols(nrm((H, H))).astype(BF16))
        wo.append(nrm((H, H)).reshape(nH, dh, H).astype(BF16))        # rows split
        wi.append(nrm((H, I)).astype(BF16))
        wf.append(nrm((I, H)).astype(BF16))

    p.update({
        "wq": jnp.stack(wq), "wk": jnp.stack(wk), "wv": jnp.stack(wv),
        "bq": jnp.zeros((L, nH, 1, dh), F32),
        "bk": jnp.zeros((L, nH, 1, dh), F32),
        "bv": jnp.zeros((L, nH, 1, dh), F32),
        "wo": jnp.stack(wo), "bo": jnp.zeros((L, 1, H), F32),
        "ln1_g": jnp.ones((L, 1, H), F32), "ln1_b": jnp.zeros((L, 1, H), F32),
        "wi": jnp.stack(wi), "bi": jnp.zeros((L, 1, I), F32),
        "wf": jnp.stack(wf), "bf": jnp.zeros((L, 1, H), F32),
        "ln2_g": jnp.ones((L, 1, H), F32), "ln2_b": jnp.zeros((L, 1, H), F32),
    })
    return p


# ----------------------------------------------------------------------------
# Model forward: embeddings (XLA gathers) -> single fused Pallas kernel
# ----------------------------------------------------------------------------

def model_forward(params, x, cfg=CFG):
    """x: [B, S] int32 token ids -> (logits [B,S,V], pooled [B,H])."""
    B, S = x.shape
    H, V, nH = cfg["hidden"], cfg["vocab_size"], cfg["num_heads"]
    pad_idx = cfg["pad_idx"]
    M = B * S

    # --- embeddings (gathers + pad-aware position ids are XLA glue) ---
    tok = jnp.take(params["word_emb"], x, axis=0).astype(F32)         # [B, S, H]
    mask = (x != pad_idx).astype(jnp.int32)
    pos_ids = jnp.cumsum(mask, axis=1) * mask + pad_idx               # HF-style
    pos = jnp.take(params["pos_emb"], pos_ids, axis=0)                # [B, S, H]
    typ = params["type_emb"][0][None, None, :]                        # [1, 1, H]
    emb = (tok + pos + typ).reshape(M, H)                             # [M, H] f32

    ins = [
        emb,
        params["emb_ln_g"], params["emb_ln_b"],
        params["wq"], params["wk"], params["wv"],
        params["bq"], params["bk"], params["bv"],
        params["wo"], params["bo"], params["ln1_g"], params["ln1_b"],
        params["wi"], params["bi"], params["wf"], params["bf"],
        params["ln2_g"], params["ln2_b"],
        params["head_w"], params["head_b"],
        params["head_ln_g"], params["head_ln_b"],
        params["emb_T"], params["decoder_b"],
    ]

    def full_block(a):          # whole array resident in VMEM every grid step
        return pl.BlockSpec(a.shape, lambda b, _nd=a.ndim: (0,) * _nd)

    in_specs = ([pl.BlockSpec((S, H), lambda b: (b, 0))]
                + [full_block(a) for a in ins[1:]])

    kernel = functools.partial(_fused_forward_kernel,
                               num_layers=cfg["num_layers"],
                               num_heads=nH, eps=1e-5)

    logits, reps = pl.pallas_call(
        kernel,
        grid=(B,),                                # sequence-parallel rows
        in_specs=in_specs,
        out_specs=(pl.BlockSpec((S, V), lambda b: (b, 0)),   # lane-dense (V=128)
                   pl.BlockSpec((S, H), lambda b: (b, 0))),
        out_shape=(jax.ShapeDtypeStruct((M, V), F32),
                   jax.ShapeDtypeStruct((M, H), F32)),
        compiler_params=pltpu.CompilerParams(
            dimension_semantics=("parallel",)),   # 2 TCs on v7x; no-op on v5e/v6e
    )(*ins)
    # TODO(synk): at real XLM-R sizes (H>=768, V~250k) the full-block weights and
    # [*, V] logits block must become a 2-D (M-tile, V-tile) grid to fit VMEM.

    logits = logits.reshape(B, S, V)
    pooled = jnp.mean(reps.reshape(B, S, H), axis=1)   # representations.mean(1)
    return logits, pooled


# ----------------------------------------------------------------------------

if __name__ == "__main__":
    key = jax.random.PRNGKey(0)
    pkey, xkey = jax.random.split(key)

    params = init_params(pkey, CFG)

    B, S = 2, 8
    x = jax.random.randint(xkey, (B, S), minval=4, maxval=CFG["vocab_size"],
                           dtype=jnp.int32)

    logits, pooled = jax.jit(model_forward)(params, x)
    jax.block_until_ready((logits, pooled))

    assert logits.shape == (B, S, CFG["vocab_size"]), logits.shape
    assert pooled.shape == (B, CFG["hidden"]), pooled.shape
    assert jnp.isfinite(logits).all() and jnp.isfinite(pooled).all()

    print("KERNEL_OK")
</pallas_src>

<mosaic_0001>
module attributes {stable_mosaic.version = 11 : i64} {
  func.func @_fused_forward_kernel(%arg0: i32, %arg1: memref<8x64xf32, #tpu.memory_space<vmem>>, %arg2: memref<1x64xf32, #tpu.memory_space<vmem>>, %arg3: memref<1x64xf32, #tpu.memory_space<vmem>>, %arg4: memref<2x4x64x16xbf16, #tpu.memory_space<vmem>>, %arg5: memref<2x4x64x16xbf16, #tpu.memory_space<vmem>>, %arg6: memref<2x4x64x16xbf16, #tpu.memory_space<vmem>>, %arg7: memref<2x4x1x16xf32, #tpu.memory_space<vmem>>, %arg8: memref<2x4x1x16xf32, #tpu.memory_space<vmem>>, %arg9: memref<2x4x1x16xf32, #tpu.memory_space<vmem>>, %arg10: memref<2x4x16x64xbf16, #tpu.memory_space<vmem>>, %arg11: memref<2x1x64xf32, #tpu.memory_space<vmem>>, %arg12: memref<2x1x64xf32, #tpu.memory_space<vmem>>, %arg13: memref<2x1x64xf32, #tpu.memory_space<vmem>>, %arg14: memref<2x64x256xbf16, #tpu.memory_space<vmem>>, %arg15: memref<2x1x256xf32, #tpu.memory_space<vmem>>, %arg16: memref<2x256x64xbf16, #tpu.memory_space<vmem>>, %arg17: memref<2x1x64xf32, #tpu.memory_space<vmem>>, %arg18: memref<2x1x64xf32, #tpu.memory_space<vmem>>, %arg19: memref<2x1x64xf32, #tpu.memory_space<vmem>>, %arg20: memref<64x64xbf16, #tpu.memory_space<vmem>>, %arg21: memref<1x64xf32, #tpu.memory_space<vmem>>, %arg22: memref<1x64xf32, #tpu.memory_space<vmem>>, %arg23: memref<1x64xf32, #tpu.memory_space<vmem>>, %arg24: memref<64x128xbf16, #tpu.memory_space<vmem>>, %arg25: memref<1x128xf32, #tpu.memory_space<vmem>>, %arg26: memref<8x128xf32, #tpu.memory_space<vmem>>, %arg27: memref<8x64xf32, #tpu.memory_space<vmem>>) attributes {dimension_semantics = [#tpu.dimension_semantics<parallel>], iteration_bounds = array<i64: 2>, scalar_prefetch = 0 : i64, scratch_operands = 0 : i64, tpu.core_type = #tpu.core_type<tc>, window_params = [{transform_indices = @transform_0, window_bounds = array<i64: 8, 64>}, {pipeline_mode = #tpu.pipeline_mode<synchronous>, transform_indices = @transform_1, window_bounds = array<i64: 1, 64>}, {pipeline_mode = #tpu.pipeline_mode<synchronous>, transform_indices = @transform_2, window_bounds = array<i64: 1, 64>}, {pipeline_mode = #tpu.pipeline_mode<synchronous>, transform_indices = @transform_3, window_bounds = array<i64: 2, 4, 64, 16>}, {pipeline_mode = #tpu.pipeline_mode<synchronous>, transform_indices = @transform_4, window_bounds = array<i64: 2, 4, 64, 16>}, {pipeline_mode = #tpu.pipeline_mode<synchronous>, transform_indices = @transform_5, window_bounds = array<i64: 2, 4, 64, 16>}, {pipeline_mode = #tpu.pipeline_mode<synchronous>, transform_indices = @transform_6, window_bounds = array<i64: 2, 4, 1, 16>}, {pipeline_mode = #tpu.pipeline_mode<synchronous>, transform_indices = @transform_7, window_bounds = array<i64: 2, 4, 1, 16>}, {pipeline_mode = #tpu.pipeline_mode<synchronous>, transform_indices = @transform_8, window_bounds = array<i64: 2, 4, 1, 16>}, {pipeline_mode = #tpu.pipeline_mode<synchronous>, transform_indices = @transform_9, window_bounds = array<i64: 2, 4, 16, 64>}, {pipeline_mode = #tpu.pipeline_mode<synchronous>, transform_indices = @transform_10, window_bounds = array<i64: 2, 1, 64>}, {pipeline_mode = #tpu.pipeline_mode<synchronous>, transform_indices = @transform_11, window_bounds = array<i64: 2, 1, 64>}, {pipeline_mode = #tpu.pipeline_mode<synchronous>, transform_indices = @transform_12, window_bounds = array<i64: 2, 1, 64>}, {pipeline_mode = #tpu.pipeline_mode<synchronous>, transform_indices = @transform_13, window_bounds = array<i64: 2, 64, 256>}, {pipeline_mode = #tpu.pipeline_mode<synchronous>, transform_indices = @transform_14, window_bounds = array<i64: 2, 1, 256>}, {pipeline_mode = #tpu.pipeline_mode<synchronous>, transform_indices = @transform_15, window_bounds = array<i64: 2, 256, 64>}, {pipeline_mode = #tpu.pipeline_mode<synchronous>, transform_indices = @transform_16, window_bounds = array<i64: 2, 1, 64>}, {pipeline_mode = #tpu.pipeline_mode<synchronous>, transform_indices = @transform_17, window_bounds = array<i64: 2, 1, 64>}, {pipeline_mode = #tpu.pipeline_mode<synchronous>, transform_indices = @transform_18, window_bounds = array<i64: 2, 1, 64>}, {pipeline_mode = #tpu.pipeline_mode<synchronous>, transform_indices = @transform_19, window_bounds = array<i64: 64, 64>}, {pipeline_mode = #tpu.pipeline_mode<synchronous>, transform_indices = @transform_20, window_bounds = array<i64: 1, 64>}, {pipeline_mode = #tpu.pipeline_mode<synchronous>, transform_indices = @transform_21, window_bounds = array<i64: 1, 64>}, {pipeline_mode = #tpu.pipeline_mode<synchronous>, transform_indices = @transform_22, window_bounds = array<i64: 1, 64>}, {pipeline_mode = #tpu.pipeline_mode<synchronous>, transform_indices = @transform_23, window_bounds = array<i64: 64, 128>}, {pipeline_mode = #tpu.pipeline_mode<synchronous>, transform_indices = @transform_24, window_bounds = array<i64: 1, 128>}, {transform_indices = @transform_25, window_bounds = array<i64: 8, 128>}, {transform_indices = @transform_26, window_bounds = array<i64: 8, 64>}]} {
    %c0 = arith.constant 0 : index
    %c0_0 = arith.constant 0 : index
    %0 = vector.load %arg1[%c0, %c0_0] : memref<8x64xf32, #tpu.memory_space<vmem>>, vector<8x64xf32>
    %c0_1 = arith.constant 0 : index
    %c0_2 = arith.constant 0 : index
    %1 = vector.load %arg2[%c0_1, %c0_2] : memref<1x64xf32, #tpu.memory_space<vmem>>, vector<1x64xf32>
    %c0_3 = arith.constant 0 : index
    %c0_4 = arith.constant 0 : index
    %2 = vector.load %arg3[%c0_3, %c0_4] : memref<1x64xf32, #tpu.memory_space<vmem>>, vector<1x64xf32>
    %cst = arith.constant dense<0.000000e+00> : vector<8xf32>
    %3 = vector.multi_reduction <add>, %0, %cst [1] : vector<8x64xf32> to vector<8xf32>
    %4 = vector.shape_cast %3 : vector<8xf32> to vector<8x1xf32>
    %cst_5 = arith.constant 6.400000e+01 : f32
    %5 = vector.broadcast %cst_5 : f32 to vector<8x1xf32>
    %6 = arith.divf %4, %5 : vector<8x1xf32>
    %7 = vector.broadcast %6 : vector<8x1xf32> to vector<8x64xf32>
    %8 = arith.subf %0, %7 : vector<8x64xf32>
    %9 = vector.broadcast %6 : vector<8x1xf32> to vector<8x64xf32>
    %10 = arith.subf %0, %9 : vector<8x64xf32>
    %11 = arith.mulf %8, %10 : vector<8x64xf32>
    %cst_6 = arith.constant dense<0.000000e+00> : vector<8xf32>
    %12 = vector.multi_reduction <add>, %11, %cst_6 [1] : vector<8x64xf32> to vector<8xf32>
    %13 = vector.shape_cast %12 : vector<8xf32> to vector<8x1xf32>
    %cst_7 = arith.constant 6.400000e+01 : f32
    %14 = vector.broadcast %cst_7 : f32 to vector<8x1xf32>
    %15 = arith.divf %13, %14 : vector<8x1xf32>
    %16 = vector.broadcast %6 : vector<8x1xf32> to vector<8x64xf32>
    %17 = arith.subf %0, %16 : vector<8x64xf32>
    %cst_8 = arith.constant 9.99999974E-6 : f32
    %18 = vector.broadcast %cst_8 : f32 to vector<8x1xf32>
    %19 = arith.addf %15, %18 : vector<8x1xf32>
    %20 = math.rsqrt %19 : vector<8x1xf32>
    %21 = vector.broadcast %20 : vector<8x1xf32> to vector<8x64xf32>
    %22 = arith.mulf %17, %21 : vector<8x64xf32>
    %23 = vector.broadcast %1 : vector<1x64xf32> to vector<8x64xf32>
    %24 = arith.mulf %22, %23 : vector<8x64xf32>
    %25 = vector.broadcast %2 : vector<1x64xf32> to vector<8x64xf32>
    %26 = arith.addf %24, %25 : vector<8x64xf32>
    %27 = arith.truncf %26 : vector<8x64xf32> to vector<8x64xbf16>
    %28 = vector.shape_cast %27 : vector<8x64xbf16> to vector<1x8x64xbf16>
    %29 = vector.shape_cast %28 : vector<1x8x64xbf16> to vector<1x8x64xbf16>
    %30 = vector.broadcast %29 : vector<1x8x64xbf16> to vector<4x8x64xbf16>
    %c0_9 = arith.constant 0 : index
    %c0_10 = arith.constant 0 : index
    %c0_11 = arith.constant 0 : index
    %c0_12 = arith.constant 0 : index
    %31 = vector.load %arg4[%c0_9, %c0_10, %c0_11, %c0_12] : memref<2x4x64x16xbf16, #tpu.memory_space<vmem>>, vector<1x4x64x16xbf16>
    %32 = vector.shape_cast %31 : vector<1x4x64x16xbf16> to vector<4x64x16xbf16>
    %cst_13 = arith.constant dense<0.000000e+00> : vector<4x8x16xf32>
    %33 = tpu.matmul %30, %32, %cst_13 {dimension_numbers = #tpu.dot_dimension_numbers<[2], [1], [1], [2], [0, 0, 0, 1, 1, 2], [0], [0]>} : vector<4x8x64xbf16>, vector<4x64x16xbf16>, vector<4x8x16xf32> -> vector<4x8x16xf32>
    %c0_14 = arith.constant 0 : index
    %c0_15 = arith.constant 0 : index
    %c0_16 = arith.constant 0 : index
    %c0_17 = arith.constant 0 : index
    %34 = vector.load %arg7[%c0_14, %c0_15, %c0_16, %c0_17] : memref<2x4x1x16xf32, #tpu.memory_space<vmem>>, vector<1x4x1x16xf32>
    %35 = vector.shape_cast %34 : vector<1x4x1x16xf32> to vector<4x1x16xf32>
    %36 = vector.broadcast %35 : vector<4x1x16xf32> to vector<4x8x16xf32>
    %37 = arith.addf %33, %36 : vector<4x8x16xf32>
    %c0_18 = arith.constant 0 : index
    %c0_19 = arith.constant 0 : index
    %c0_20 = arith.constant 0 : index
    %c0_21 = arith.constant 0 : index
    %38 = vector.load %arg5[%c0_18, %c0_19, %c0_20, %c0_21] : memref<2x4x64x16xbf16, #tpu.memory_space<vmem>>, vector<1x4x64x16xbf16>
    %39 = vector.shape_cast %38 : vector<1x4x64x16xbf16> to vector<4x64x16xbf16>
    %cst_22 = arith.constant dense<0.000000e+00> : vector<4x8x16xf32>
    %40 = tpu.matmul %30, %39, %cst_22 {dimension_numbers = #tpu.dot_dimension_numbers<[2], [1], [1], [2], [0, 0, 0, 1, 1, 2], [0], [0]>} : vector<4x8x64xbf16>, vector<4x64x16xbf16>, vector<4x8x16xf32> -> vector<4x8x16xf32>
    %c0_23 = arith.constant 0 : index
    %c0_24 = arith.constant 0 : index
    %c0_25 = arith.constant 0 : index
    %c0_26 = arith.constant 0 : index
    %41 = vector.load %arg8[%c0_23, %c0_24, %c0_25, %c0_26] : memref<2x4x1x16xf32, #tpu.memory_space<vmem>>, vector<1x4x1x16xf32>
    %42 = vector.shape_cast %41 : vector<1x4x1x16xf32> to vector<4x1x16xf32>
    %43 = vector.broadcast %42 : vector<4x1x16xf32> to vector<4x8x16xf32>
    %44 = arith.addf %40, %43 : vector<4x8x16xf32>
    %c0_27 = arith.constant 0 : index
    %c0_28 = arith.constant 0 : index
    %c0_29 = arith.constant 0 : index
    %c0_30 = arith.constant 0 : index
    %45 = vector.load %arg6[%c0_27, %c0_28, %c0_29, %c0_30] : memref<2x4x64x16xbf16, #tpu.memory_space<vmem>>, vector<1x4x64x16xbf16>
    %46 = vector.shape_cast %45 : vector<1x4x64x16xbf16> to vector<4x64x16xbf16>
    %cst_31 = arith.constant dense<0.000000e+00> : vector<4x8x16xf32>
    %47 = tpu.matmul %30, %46, %cst_31 {dimension_numbers = #tpu.dot_dimension_numbers<[2], [1], [1], [2], [0, 0, 0, 1, 1, 2], [0], [0]>} : vector<4x8x64xbf16>, vector<4x64x16xbf16>, vector<4x8x16xf32> -> vector<4x8x16xf32>
    %c0_32 = arith.constant 0 : index
    %c0_33 = arith.constant 0 : index
    %c0_34 = arith.constant 0 : index
    %c0_35 = arith.constant 0 : index
    %48 = vector.load %arg9[%c0_32, %c0_33, %c0_34, %c0_35] : memref<2x4x1x16xf32, #tpu.memory_space<vmem>>, vector<1x4x1x16xf32>
    %49 = vector.shape_cast %48 : vector<1x4x1x16xf32> to vector<4x1x16xf32>
    %50 = vector.broadcast %49 : vector<4x1x16xf32> to vector<4x8x16xf32>
    %51 = arith.addf %47, %50 : vector<4x8x16xf32>
    %52 = arith.truncf %37 : vector<4x8x16xf32> to vector<4x8x16xbf16>
    %53 = arith.truncf %44 : vector<4x8x16xf32> to vector<4x8x16xbf16>
    %cst_36 = arith.constant dense<0.000000e+00> : vector<4x8x8xf32>
    %54 = tpu.matmul %52, %53, %cst_36 {dimension_numbers = #tpu.dot_dimension_numbers<[2], [2], [1], [1], [0, 0, 0, 1, 1, 1], [0], [0]>} : vector<4x8x16xbf16>, vector<4x8x16xbf16>, vector<4x8x8xf32> -> vector<4x8x8xf32>
    %cst_37 = arith.constant dense<0xFF800000> : vector<4x8xf32>
    %55 = vector.multi_reduction <maximumf>, %54, %cst_37 [2] : vector<4x8x8xf32> to vector<4x8xf32>
    %56 = vector.shape_cast %55 : vector<4x8xf32> to vector<4x8x1xf32>
    %57 = vector.broadcast %56 : vector<4x8x1xf32> to vector<4x8x8xf32>
    %58 = arith.subf %54, %57 : vector<4x8x8xf32>
    %59 = math.exp %58 : vector<4x8x8xf32>
    %cst_38 = arith.constant dense<0.000000e+00> : vector<4x8xf32>
    %60 = vector.multi_reduction <add>, %59, %cst_38 [2] : vector<4x8x8xf32> to vector<4x8xf32>
    %61 = vector.shape_cast %60 : vector<4x8xf32> to vector<4x8x1xf32>
    %62 = vector.broadcast %61 : vector<4x8x1xf32> to vector<4x8x8xf32>
    %63 = arith.divf %59, %62 : vector<4x8x8xf32>
    %64 = arith.truncf %63 : vector<4x8x8xf32> to vector<4x8x8xbf16>
    %65 = arith.truncf %51 : vector<4x8x16xf32> to vector<4x8x16xbf16>
    %cst_39 = arith.constant dense<0.000000e+00> : vector<4x8x16xf32>
    %66 = tpu.matmul %64, %65, %cst_39 {dimension_numbers = #tpu.dot_dimension_numbers<[2], [1], [1], [2], [0, 0, 0, 1, 1, 2], [0], [0]>} : vector<4x8x8xbf16>, vector<4x8x16xbf16>, vector<4x8x16xf32> -> vector<4x8x16xf32>
    %67 = arith.truncf %66 : vector<4x8x16xf32> to vector<4x8x16xbf16>
    %c0_40 = arith.constant 0 : index
    %c0_41 = arith.constant 0 : index
    %c0_42 = arith.constant 0 : index
    %c0_43 = arith.constant 0 : index
    %68 = vector.load %arg10[%c0_40, %c0_41, %c0_42, %c0_43] : memref<2x4x16x64xbf16, #tpu.memory_space<vmem>>, vector<1x4x16x64xbf16>
    %69 = vector.shape_cast %68 : vector<1x4x16x64xbf16> to vector<4x16x64xbf16>
    %cst_44 = arith.constant dense<0.000000e+00> : vector<4x8x64xf32>
    %70 = tpu.matmul %67, %69, %cst_44 {dimension_numbers = #tpu.dot_dimension_numbers<[2], [1], [1], [2], [0, 0, 0, 1, 1, 2], [0], [0]>} : vector<4x8x16xbf16>, vector<4x16x64xbf16>, vector<4x8x64xf32> -> vector<4x8x64xf32>
    %cst_45 = arith.constant dense<0.000000e+00> : vector<8x64xf32>
    %71 = vector.multi_reduction <add>, %70, %cst_45 [0] : vector<4x8x64xf32> to vector<8x64xf32>
    %c0_46 = arith.constant 0 : index
    %c0_47 = arith.constant 0 : index
    %c0_48 = arith.constant 0 : index
    %72 = vector.load %arg11[%c0_46, %c0_47, %c0_48] : memref<2x1x64xf32, #tpu.memory_space<vmem>>, vector<1x1x64xf32>
    %73 = vector.shape_cast %72 : vector<1x1x64xf32> to vector<1x64xf32>
    %74 = vector.broadcast %73 : vector<1x64xf32> to vector<8x64xf32>
    %75 = arith.addf %71, %74 : vector<8x64xf32>
    %76 = arith.addf %75, %26 : vector<8x64xf32>
    %c0_49 = arith.constant 0 : index
    %c0_50 = arith.constant 0 : index
    %c0_51 = arith.constant 0 : index
    %77 = vector.load %arg12[%c0_49, %c0_50, %c0_51] : memref<2x1x64xf32, #tpu.memory_space<vmem>>, vector<1x1x64xf32>
    %78 = vector.shape_cast %77 : vector<1x1x64xf32> to vector<1x64xf32>
    %c0_52 = arith.constant 0 : index
    %c0_53 = arith.constant 0 : index
    %c0_54 = arith.constant 0 : index
    %79 = vector.load %arg13[%c0_52, %c0_53, %c0_54] : memref<2x1x64xf32, #tpu.memory_space<vmem>>, vector<1x1x64xf32>
    %80 = vector.shape_cast %79 : vector<1x1x64xf32> to vector<1x64xf32>
    %cst_55 = arith.constant dense<0.000000e+00> : vector<8xf32>
    %81 = vector.multi_reduction <add>, %76, %cst_55 [1] : vector<8x64xf32> to vector<8xf32>
    %82 = vector.shape_cast %81 : vector<8xf32> to vector<8x1xf32>
    %cst_56 = arith.constant 6.400000e+01 : f32
    %83 = vector.broadcast %cst_56 : f32 to vector<8x1xf32>
    %84 = arith.divf %82, %83 : vector<8x1xf32>
    %85 = vector.broadcast %84 : vector<8x1xf32> to vector<8x64xf32>
    %86 = arith.subf %76, %85 : vector<8x64xf32>
    %87 = vector.broadcast %84 : vector<8x1xf32> to vector<8x64xf32>
    %88 = arith.subf %76, %87 : vector<8x64xf32>
    %89 = arith.mulf %86, %88 : vector<8x64xf32>
    %cst_57 = arith.constant dense<0.000000e+00> : vector<8xf32>
    %90 = vector.multi_reduction <add>, %89, %cst_57 [1] : vector<8x64xf32> to vector<8xf32>
    %91 = vector.shape_cast %90 : vector<8xf32> to vector<8x1xf32>
    %cst_58 = arith.constant 6.400000e+01 : f32
    %92 = vector.broadcast %cst_58 : f32 to vector<8x1xf32>
    %93 = arith.divf %91, %92 : vector<8x1xf32>
    %94 = vector.broadcast %84 : vector<8x1xf32> to vector<8x64xf32>
    %95 = arith.subf %76, %94 : vector<8x64xf32>
    %cst_59 = arith.constant 9.99999974E-6 : f32
    %96 = vector.broadcast %cst_59 : f32 to vector<8x1xf32>
    %97 = arith.addf %93, %96 : vector<8x1xf32>
    %98 = math.rsqrt %97 : vector<8x1xf32>
    %99 = vector.broadcast %98 : vector<8x1xf32> to vector<8x64xf32>
    %100 = arith.mulf %95, %99 : vector<8x64xf32>
    %101 = vector.broadcast %78 : vector<1x64xf32> to vector<8x64xf32>
    %102 = arith.mulf %100, %101 : vector<8x64xf32>
    %103 = vector.broadcast %80 : vector<1x64xf32> to vector<8x64xf32>
    %104 = arith.addf %102, %103 : vector<8x64xf32>
    %105 = arith.truncf %104 : vector<8x64xf32> to vector<8x64xbf16>
    %c0_60 = arith.constant 0 : index
    %c0_61 = arith.constant 0 : index
    %c0_62 = arith.constant 0 : index
    %106 = vector.load %arg14[%c0_60, %c0_61, %c0_62] : memref<2x64x256xbf16, #tpu.memory_space<vmem>>, vector<1x64x256xbf16>
    %107 = vector.shape_cast %106 : vector<1x64x256xbf16> to vector<64x256xbf16>
    %cst_63 = arith.constant dense<0.000000e+00> : vector<8x256xf32>
    %108 = tpu.matmul %105, %107, %cst_63 {dimension_numbers = #tpu.dot_dimension_numbers<[1], [0], [0], [1], [0, 0, 1, 1], [], []>} : vector<8x64xbf16>, vector<64x256xbf16>, vector<8x256xf32> -> vector<8x256xf32>
    %c0_64 = arith.constant 0 : index
    %c0_65 = arith.constant 0 : index
    %c0_66 = arith.constant 0 : index
    %109 = vector.load %arg15[%c0_64, %c0_65, %c0_66] : memref<2x1x256xf32, #tpu.memory_space<vmem>>, vector<1x1x256xf32>
    %110 = vector.shape_cast %109 : vector<1x1x256xf32> to vector<1x256xf32>
    %111 = vector.broadcast %110 : vector<1x256xf32> to vector<8x256xf32>
    %112 = arith.addf %108, %111 : vector<8x256xf32>
    %cst_67 = arith.constant 5.000000e-01 : f32
    %113 = vector.broadcast %cst_67 : f32 to vector<8x256xf32>
    %114 = arith.mulf %113, %112 : vector<8x256xf32>
    %cst_68 = arith.constant 4.471500e-02 : f32
    %115 = vector.broadcast %cst_68 : f32 to vector<8x256xf32>
    %116 = arith.mulf %115, %112 : vector<8x256xf32>
    %117 = arith.mulf %116, %112 : vector<8x256xf32>
    %118 = arith.mulf %117, %112 : vector<8x256xf32>
    %119 = arith.addf %112, %118 : vector<8x256xf32>
    %cst_69 = arith.constant 0.797884583 : f32
    %120 = vector.broadcast %cst_69 : f32 to vector<8x256xf32>
    %121 = arith.mulf %120, %119 : vector<8x256xf32>
    %122 = math.tanh %121 : vector<8x256xf32>
    %cst_70 = arith.constant 1.000000e+00 : f32
    %123 = vector.broadcast %cst_70 : f32 to vector<8x256xf32>
    %124 = arith.addf %123, %122 : vector<8x256xf32>
    %125 = arith.mulf %114, %124 : vector<8x256xf32>
    %126 = arith.truncf %125 : vector<8x256xf32> to vector<8x256xbf16>
    %c0_71 = arith.constant 0 : index
    %c0_72 = arith.constant 0 : index
    %c0_73 = arith.constant 0 : index
    %127 = vector.load %arg16[%c0_71, %c0_72, %c0_73] : memref<2x256x64xbf16, #tpu.memory_space<vmem>>, vector<1x256x64xbf16>
    %128 = vector.shape_cast %127 : vector<1x256x64xbf16> to vector<256x64xbf16>
    %cst_74 = arith.constant dense<0.000000e+00> : vector<8x64xf32>
    %129 = tpu.matmul %126, %128, %cst_74 {dimension_numbers = #tpu.dot_dimension_numbers<[1], [0], [0], [1], [0, 0, 1, 1], [], []>} : vector<8x256xbf16>, vector<256x64xbf16>, vector<8x64xf32> -> vector<8x64xf32>
    %c0_75 = arith.constant 0 : index
    %c0_76 = arith.constant 0 : index
    %c0_77 = arith.constant 0 : index
    %130 = vector.load %arg17[%c0_75, %c0_76, %c0_77] : memref<2x1x64xf32, #tpu.memory_space<vmem>>, vector<1x1x64xf32>
    %131 = vector.shape_cast %130 : vector<1x1x64xf32> to vector<1x64xf32>
    %132 = vector.broadcast %131 : vector<1x64xf32> to vector<8x64xf32>
    %133 = arith.addf %129, %132 : vector<8x64xf32>
    %134 = arith.addf %133, %104 : vector<8x64xf32>
    %c0_78 = arith.constant 0 : index
    %c0_79 = arith.constant 0 : index
    %c0_80 = arith.constant 0 : index
    %135 = vector.load %arg18[%c0_78, %c0_79, %c0_80] : memref<2x1x64xf32, #tpu.memory_space<vmem>>, vector<1x1x64xf32>
    %136 = vector.shape_cast %135 : vector<1x1x64xf32> to vector<1x64xf32>
    %c0_81 = arith.constant 0 : index
    %c0_82 = arith.constant 0 : index
    %c0_83 = arith.constant 0 : index
    %137 = vector.load %arg19[%c0_81, %c0_82, %c0_83] : memref<2x1x64xf32, #tpu.memory_space<vmem>>, vector<1x1x64xf32>
    %138 = vector.shape_cast %137 : vector<1x1x64xf32> to vector<1x64xf32>
    %cst_84 = arith.constant dense<0.000000e+00> : vector<8xf32>
    %139 = vector.multi_reduction <add>, %134, %cst_84 [1] : vector<8x64xf32> to vector<8xf32>
    %140 = vector.shape_cast %139 : vector<8xf32> to vector<8x1xf32>
    %cst_85 = arith.constant 6.400000e+01 : f32
    %141 = vector.broadcast %cst_85 : f32 to vector<8x1xf32>
    %142 = arith.divf %140, %141 : vector<8x1xf32>
    %143 = vector.broadcast %142 : vector<8x1xf32> to vector<8x64xf32>
    %144 = arith.subf %134, %143 : vector<8x64xf32>
    %145 = vector.broadcast %142 : vector<8x1xf32> to vector<8x64xf32>
    %146 = arith.subf %134, %145 : vector<8x64xf32>
    %147 = arith.mulf %144, %146 : vector<8x64xf32>
    %cst_86 = arith.constant dense<0.000000e+00> : vector<8xf32>
    %148 = vector.multi_reduction <add>, %147, %cst_86 [1] : vector<8x64xf32> to vector<8xf32>
    %149 = vector.shape_cast %148 : vector<8xf32> to vector<8x1xf32>
    %cst_87 = arith.constant 6.400000e+01 : f32
    %150 = vector.broadcast %cst_87 : f32 to vector<8x1xf32>
    %151 = arith.divf %149, %150 : vector<8x1xf32>
    %152 = vector.broadcast %142 : vector<8x1xf32> to vector<8x64xf32>
    %153 = arith.subf %134, %152 : vector<8x64xf32>
    %cst_88 = arith.constant 9.99999974E-6 : f32
    %154 = vector.broadcast %cst_88 : f32 to vector<8x1xf32>
    %155 = arith.addf %151, %154 : vector<8x1xf32>
    %156 = math.rsqrt %155 : vector<8x1xf32>
    %157 = vector.broadcast %156 : vector<8x1xf32> to vector<8x64xf32>
    %158 = arith.mulf %153, %157 : vector<8x64xf32>
    %159 = vector.broadcast %136 : vector<1x64xf32> to vector<8x64xf32>
    %160 = arith.mulf %158, %159 : vector<8x64xf32>
    %161 = vector.broadcast %138 : vector<1x64xf32> to vector<8x64xf32>
    %162 = arith.addf %160, %161 : vector<8x64xf32>
    %163 = arith.truncf %162 : vector<8x64xf32> to vector<8x64xbf16>
    %164 = vector.shape_cast %163 : vector<8x64xbf16> to vector<1x8x64xbf16>
    %165 = vector.shape_cast %164 : vector<1x8x64xbf16> to vector<1x8x64xbf16>
    %166 = vector.broadcast %165 : vector<1x8x64xbf16> to vector<4x8x64xbf16>
    %c1 = arith.constant 1 : index
    %c0_89 = arith.constant 0 : index
    %c0_90 = arith.constant 0 : index
    %c0_91 = arith.constant 0 : index
    %167 = vector.load %arg4[%c1, %c0_89, %c0_90, %c0_91] : memref<2x4x64x16xbf16, #tpu.memory_space<vmem>>, vector<1x4x64x16xbf16>
    %168 = vector.shape_cast %167 : vector<1x4x64x16xbf16> to vector<4x64x16xbf16>
    %cst_92 = arith.constant dense<0.000000e+00> : vector<4x8x16xf32>
    %169 = tpu.matmul %166, %168, %cst_92 {dimension_numbers = #tpu.dot_dimension_numbers<[2], [1], [1], [2], [0, 0, 0, 1, 1, 2], [0], [0]>} : vector<4x8x64xbf16>, vector<4x64x16xbf16>, vector<4x8x16xf32> -> vector<4x8x16xf32>
    %c1_93 = arith.constant 1 : index
    %c0_94 = arith.constant 0 : index
    %c0_95 = arith.constant 0 : index
    %c0_96 = arith.constant 0 : index
    %170 = vector.load %arg7[%c1_93, %c0_94, %c0_95, %c0_96] : memref<2x4x1x16xf32, #tpu.memory_space<vmem>>, vector<1x4x1x16xf32>
    %171 = vector.shape_cast %170 : vector<1x4x1x16xf32> to vector<4x1x16xf32>
    %172 = vector.broadcast %171 : vector<4x1x16xf32> to vector<4x8x16xf32>
    %173 = arith.addf %169, %172 : vector<4x8x16xf32>
    %c1_97 = arith.constant 1 : index
    %c0_98 = arith.constant 0 : index
    %c0_99 = arith.constant 0 : index
    %c0_100 = arith.constant 0 : index
    %174 = vector.load %arg5[%c1_97, %c0_98, %c0_99, %c0_100] : memref<2x4x64x16xbf16, #tpu.memory_space<vmem>>, vector<1x4x64x16xbf16>
    %175 = vector.shape_cast %174 : vector<1x4x64x16xbf16> to vector<4x64x16xbf16>
    %cst_101 = arith.constant dense<0.000000e+00> : vector<4x8x16xf32>
    %176 = tpu.matmul %166, %175, %cst_101 {dimension_numbers = #tpu.dot_dimension_numbers<[2], [1], [1], [2], [0, 0, 0, 1, 1, 2], [0], [0]>} : vector<4x8x64xbf16>, vector<4x64x16xbf16>, vector<4x8x16xf32> -> vector<4x8x16xf32>
    %c1_102 = arith.constant 1 : index
    %c0_103 = arith.constant 0 : index
    %c0_104 = arith.constant 0 : index
    %c0_105 = arith.constant 0 : index
    %177 = vector.load %arg8[%c1_102, %c0_103, %c0_104, %c0_105] : memref<2x4x1x16xf32, #tpu.memory_space<vmem>>, vector<1x4x1x16xf32>
    %178 = vector.shape_cast %177 : vector<1x4x1x16xf32> to vector<4x1x16xf32>
    %179 = vector.broadcast %178 : vector<4x1x16xf32> to vector<4x8x16xf32>
    %180 = arith.addf %176, %179 : vector<4x8x16xf32>
    %c1_106 = arith.constant 1 : index
    %c0_107 = arith.constant 0 : index
    %c0_108 = arith.constant 0 : index
    %c0_109 = arith.constant 0 : index
    %181 = vector.load %arg6[%c1_106, %c0_107, %c0_108, %c0_109] : memref<2x4x64x16xbf16, #tpu.memory_space<vmem>>, vector<1x4x64x16xbf16>
    %182 = vector.shape_cast %181 : vector<1x4x64x16xbf16> to vector<4x64x16xbf16>
    %cst_110 = arith.constant dense<0.000000e+00> : vector<4x8x16xf32>
    %183 = tpu.matmul %166, %182, %cst_110 {dimension_numbers = #tpu.dot_dimension_numbers<[2], [1], [1], [2], [0, 0, 0, 1, 1, 2], [0], [0]>} : vector<4x8x64xbf16>, vector<4x64x16xbf16>, vector<4x8x16xf32> -> vector<4x8x16xf32>
    %c1_111 = arith.constant 1 : index
    %c0_112 = arith.constant 0 : index
    %c0_113 = arith.constant 0 : index
    %c0_114 = arith.constant 0 : index
    %184 = vector.load %arg9[%c1_111, %c0_112, %c0_113, %c0_114] : memref<2x4x1x16xf32, #tpu.memory_space<vmem>>, vector<1x4x1x16xf32>
    %185 = vector.shape_cast %184 : vector<1x4x1x16xf32> to vector<4x1x16xf32>
    %186 = vector.broadcast %185 : vector<4x1x16xf32> to vector<4x8x16xf32>
    %187 = arith.addf %183, %186 : vector<4x8x16xf32>
    %188 = arith.truncf %173 : vector<4x8x16xf32> to vector<4x8x16xbf16>
    %189 = arith.truncf %180 : vector<4x8x16xf32> to vector<4x8x16xbf16>
    %cst_115 = arith.constant dense<0.000000e+00> : vector<4x8x8xf32>
    %190 = tpu.matmul %188, %189, %cst_115 {dimension_numbers = #tpu.dot_dimension_numbers<[2], [2], [1], [1], [0, 0, 0, 1, 1, 1], [0], [0]>} : vector<4x8x16xbf16>, vector<4x8x16xbf16>, vector<4x8x8xf32> -> vector<4x8x8xf32>
    %cst_116 = arith.constant dense<0xFF800000> : vector<4x8xf32>
    %191 = vector.multi_reduction <maximumf>, %190, %cst_116 [2] : vector<4x8x8xf32> to vector<4x8xf32>
    %192 = vector.shape_cast %191 : vector<4x8xf32> to vector<4x8x1xf32>
    %193 = vector.broadcast %192 : vector<4x8x1xf32> to vector<4x8x8xf32>
    %194 = arith.subf %190, %193 : vector<4x8x8xf32>
    %195 = math.exp %194 : vector<4x8x8xf32>
    %cst_117 = arith.constant dense<0.000000e+00> : vector<4x8xf32>
    %196 = vector.multi_reduction <add>, %195, %cst_117 [2] : vector<4x8x8xf32> to vector<4x8xf32>
    %197 = vector.shape_cast %196 : vector<4x8xf32> to vector<4x8x1xf32>
    %198 = vector.broadcast %197 : vector<4x8x1xf32> to vector<4x8x8xf32>
    %199 = arith.divf %195, %198 : vector<4x8x8xf32>
    %200 = arith.truncf %199 : vector<4x8x8xf32> to vector<4x8x8xbf16>
    %201 = arith.truncf %187 : vector<4x8x16xf32> to vector<4x8x16xbf16>
    %cst_118 = arith.constant dense<0.000000e+00> : vector<4x8x16xf32>
    %202 = tpu.matmul %200, %201, %cst_118 {dimension_numbers = #tpu.dot_dimension_numbers<[2], [1], [1], [2], [0, 0, 0, 1, 1, 2], [0], [0]>} : vector<4x8x8xbf16>, vector<4x8x16xbf16>, vector<4x8x16xf32> -> vector<4x8x16xf32>
    %203 = arith.truncf %202 : vector<4x8x16xf32> to vector<4x8x16xbf16>
    %c1_119 = arith.constant 1 : index
    %c0_120 = arith.constant 0 : index
    %c0_121 = arith.constant 0 : index
    %c0_122 = arith.constant 0 : index
    %204 = vector.load %arg10[%c1_119, %c0_120, %c0_121, %c0_122] : memref<2x4x16x64xbf16, #tpu.memory_space<vmem>>, vector<1x4x16x64xbf16>
    %205 = vector.shape_cast %204 : vector<1x4x16x64xbf16> to vector<4x16x64xbf16>
    %cst_123 = arith.constant dense<0.000000e+00> : vector<4x8x64xf32>
    %206 = tpu.matmul %203, %205, %cst_123 {dimension_numbers = #tpu.dot_dimension_numbers<[2], [1], [1], [2], [0, 0, 0, 1, 1, 2], [0], [0]>} : vector<4x8x16xbf16>, vector<4x16x64xbf16>, vector<4x8x64xf32> -> vector<4x8x64xf32>
    %cst_124 = arith.constant dense<0.000000e+00> : vector<8x64xf32>
    %207 = vector.multi_reduction <add>, %206, %cst_124 [0] : vector<4x8x64xf32> to vector<8x64xf32>
    %c1_125 = arith.constant 1 : index
    %c0_126 = arith.constant 0 : index
    %c0_127 = arith.constant 0 : index
    %208 = vector.load %arg11[%c1_125, %c0_126, %c0_127] : memref<2x1x64xf32, #tpu.memory_space<vmem>>, vector<1x1x64xf32>
    %209 = vector.shape_cast %208 : vector<1x1x64xf32> to vector<1x64xf32>
    %210 = vector.broadcast %209 : vector<1x64xf32> to vector<8x64xf32>
    %211 = arith.addf %207, %210 : vector<8x64xf32>
    %212 = arith.addf %211, %162 : vector<8x64xf32>
    %c1_128 = arith.constant 1 : index
    %c0_129 = arith.constant 0 : index
    %c0_130 = arith.constant 0 : index
    %213 = vector.load %arg12[%c1_128, %c0_129, %c0_130] : memref<2x1x64xf32, #tpu.memory_space<vmem>>, vector<1x1x64xf32>
    %214 = vector.shape_cast %213 : vector<1x1x64xf32> to vector<1x64xf32>
    %c1_131 = arith.constant 1 : index
    %c0_132 = arith.constant 0 : index
    %c0_133 = arith.constant 0 : index
    %215 = vector.load %arg13[%c1_131, %c0_132, %c0_133] : memref<2x1x64xf32, #tpu.memory_space<vmem>>, vector<1x1x64xf32>
    %216 = vector.shape_cast %215 : vector<1x1x64xf32> to vector<1x64xf32>
    %cst_134 = arith.constant dense<0.000000e+00> : vector<8xf32>
    %217 = vector.multi_reduction <add>, %212, %cst_134 [1] : vector<8x64xf32> to vector<8xf32>
    %218 = vector.shape_cast %217 : vector<8xf32> to vector<8x1xf32>
    %cst_135 = arith.constant 6.400000e+01 : f32
    %219 = vector.broadcast %cst_135 : f32 to vector<8x1xf32>
    %220 = arith.divf %218, %219 : vector<8x1xf32>
    %221 = vector.broadcast %220 : vector<8x1xf32> to vector<8x64xf32>
    %222 = arith.subf %212, %221 : vector<8x64xf32>
    %223 = vector.broadcast %220 : vector<8x1xf32> to vector<8x64xf32>
    %224 = arith.subf %212, %223 : vector<8x64xf32>
    %225 = arith.mulf %222, %224 : vector<8x64xf32>
    %cst_136 = arith.constant dense<0.000000e+00> : vector<8xf32>
    %226 = vector.multi_reduction <add>, %225, %cst_136 [1] : vector<8x64xf32> to vector<8xf32>
    %227 = vector.shape_cast %226 : vector<8xf32> to vector<8x1xf32>
    %cst_137 = arith.constant 6.400000e+01 : f32
    %228 = vector.broadcast %cst_137 : f32 to vector<8x1xf32>
    %229 = arith.divf %227, %228 : vector<8x1xf32>
    %230 = vector.broadcast %220 : vector<8x1xf32> to vector<8x64xf32>
    %231 = arith.subf %212, %230 : vector<8x64xf32>
    %cst_138 = arith.constant 9.99999974E-6 : f32
    %232 = vector.broadcast %cst_138 : f32 to vector<8x1xf32>
    %233 = arith.addf %229, %232 : vector<8x1xf32>
    %234 = math.rsqrt %233 : vector<8x1xf32>
    %235 = vector.broadcast %234 : vector<8x1xf32> to vector<8x64xf32>
    %236 = arith.mulf %231, %235 : vector<8x64xf32>
    %237 = vector.broadcast %214 : vector<1x64xf32> to vector<8x64xf32>
    %238 = arith.mulf %236, %237 : vector<8x64xf32>
    %239 = vector.broadcast %216 : vector<1x64xf32> to vector<8x64xf32>
    %240 = arith.addf %238, %239 : vector<8x64xf32>
    %241 = arith.truncf %240 : vector<8x64xf32> to vector<8x64xbf16>
    %c1_139 = arith.constant 1 : index
    %c0_140 = arith.constant 0 : index
    %c0_141 = arith.constant 0 : index
    %242 = vector.load %arg14[%c1_139, %c0_140, %c0_141] : memref<2x64x256xbf16, #tpu.memory_space<vmem>>, vector<1x64x256xbf16>
    %243 = vector.shape_cast %242 : vector<1x64x256xbf16> to vector<64x256xbf16>
    %cst_142 = arith.constant dense<0.000000e+00> : vector<8x256xf32>
    %244 = tpu.matmul %241, %243, %cst_142 {dimension_numbers = #tpu.dot_dimension_numbers<[1], [0], [0], [1], [0, 0, 1, 1], [], []>} : vector<8x64xbf16>, vector<64x256xbf16>, vector<8x256xf32> -> vector<8x256xf32>
    %c1_143 = arith.constant 1 : index
    %c0_144 = arith.constant 0 : index
    %c0_145 = arith.constant 0 : index
    %245 = vector.load %arg15[%c1_143, %c0_144, %c0_145] : memref<2x1x256xf32, #tpu.memory_space<vmem>>, vector<1x1x256xf32>
    %246 = vector.shape_cast %245 : vector<1x1x256xf32> to vector<1x256xf32>
    %247 = vector.broadcast %246 : vector<1x256xf32> to vector<8x256xf32>
    %248 = arith.addf %244, %247 : vector<8x256xf32>
    %cst_146 = arith.constant 5.000000e-01 : f32
    %249 = vector.broadcast %cst_146 : f32 to vector<8x256xf32>
    %250 = arith.mulf %249, %248 : vector<8x256xf32>
    %cst_147 = arith.constant 4.471500e-02 : f32
    %251 = vector.broadcast %cst_147 : f32 to vector<8x256xf32>
    %252 = arith.mulf %251, %248 : vector<8x256xf32>
    %253 = arith.mulf %252, %248 : vector<8x256xf32>
    %254 = arith.mulf %253, %248 : vector<8x256xf32>
    %255 = arith.addf %248, %254 : vector<8x256xf32>
    %cst_148 = arith.constant 0.797884583 : f32
    %256 = vector.broadcast %cst_148 : f32 to vector<8x256xf32>
    %257 = arith.mulf %256, %255 : vector<8x256xf32>
    %258 = math.tanh %257 : vector<8x256xf32>
    %cst_149 = arith.constant 1.000000e+00 : f32
    %259 = vector.broadcast %cst_149 : f32 to vector<8x256xf32>
    %260 = arith.addf %259, %258 : vector<8x256xf32>
    %261 = arith.mulf %250, %260 : vector<8x256xf32>
    %262 = arith.truncf %261 : vector<8x256xf32> to vector<8x256xbf16>
    %c1_150 = arith.constant 1 : index
    %c0_151 = arith.constant 0 : index
    %c0_152 = arith.constant 0 : index
    %263 = vector.load %arg16[%c1_150, %c0_151, %c0_152] : memref<2x256x64xbf16, #tpu.memory_space<vmem>>, vector<1x256x64xbf16>
    %264 = vector.shape_cast %263 : vector<1x256x64xbf16> to vector<256x64xbf16>
    %cst_153 = arith.constant dense<0.000000e+00> : vector<8x64xf32>
    %265 = tpu.matmul %262, %264, %cst_153 {dimension_numbers = #tpu.dot_dimension_numbers<[1], [0], [0], [1], [0, 0, 1, 1], [], []>} : vector<8x256xbf16>, vector<256x64xbf16>, vector<8x64xf32> -> vector<8x64xf32>
    %c1_154 = arith.constant 1 : index
    %c0_155 = arith.constant 0 : index
    %c0_156 = arith.constant 0 : index
    %266 = vector.load %arg17[%c1_154, %c0_155, %c0_156] : memref<2x1x64xf32, #tpu.memory_space<vmem>>, vector<1x1x64xf32>
    %267 = vector.shape_cast %266 : vector<1x1x64xf32> to vector<1x64xf32>
    %268 = vector.broadcast %267 : vector<1x64xf32> to vector<8x64xf32>
    %269 = arith.addf %265, %268 : vector<8x64xf32>
    %270 = arith.addf %269, %240 : vector<8x64xf32>
    %c1_157 = arith.constant 1 : index
    %c0_158 = arith.constant 0 : index
    %c0_159 = arith.constant 0 : index
    %271 = vector.load %arg18[%c1_157, %c0_158, %c0_159] : memref<2x1x64xf32, #tpu.memory_space<vmem>>, vector<1x1x64xf32>
    %272 = vector.shape_cast %271 : vector<1x1x64xf32> to vector<1x64xf32>
    %c1_160 = arith.constant 1 : index
    %c0_161 = arith.constant 0 : index
    %c0_162 = arith.constant 0 : index
    %273 = vector.load %arg19[%c1_160, %c0_161, %c0_162] : memref<2x1x64xf32, #tpu.memory_space<vmem>>, vector<1x1x64xf32>
    %274 = vector.shape_cast %273 : vector<1x1x64xf32> to vector<1x64xf32>
    %cst_163 = arith.constant dense<0.000000e+00> : vector<8xf32>
    %275 = vector.multi_reduction <add>, %270, %cst_163 [1] : vector<8x64xf32> to vector<8xf32>
    %276 = vector.shape_cast %275 : vector<8xf32> to vector<8x1xf32>
    %cst_164 = arith.constant 6.400000e+01 : f32
    %277 = vector.broadcast %cst_164 : f32 to vector<8x1xf32>
    %278 = arith.divf %276, %277 : vector<8x1xf32>
    %279 = vector.broadcast %278 : vector<8x1xf32> to vector<8x64xf32>
    %280 = arith.subf %270, %279 : vector<8x64xf32>
    %281 = vector.broadcast %278 : vector<8x1xf32> to vector<8x64xf32>
    %282 = arith.subf %270, %281 : vector<8x64xf32>
    %283 = arith.mulf %280, %282 : vector<8x64xf32>
    %cst_165 = arith.constant dense<0.000000e+00> : vector<8xf32>
    %284 = vector.multi_reduction <add>, %283, %cst_165 [1] : vector<8x64xf32> to vector<8xf32>
    %285 = vector.shape_cast %284 : vector<8xf32> to vector<8x1xf32>
    %cst_166 = arith.constant 6.400000e+01 : f32
    %286 = vector.broadcast %cst_166 : f32 to vector<8x1xf32>
    %287 = arith.divf %285, %286 : vector<8x1xf32>
    %288 = vector.broadcast %278 : vector<8x1xf32> to vector<8x64xf32>
    %289 = arith.subf %270, %288 : vector<8x64xf32>
    %cst_167 = arith.constant 9.99999974E-6 : f32
    %290 = vector.broadcast %cst_167 : f32 to vector<8x1xf32>
    %291 = arith.addf %287, %290 : vector<8x1xf32>
    %292 = math.rsqrt %291 : vector<8x1xf32>
    %293 = vector.broadcast %292 : vector<8x1xf32> to vector<8x64xf32>
    %294 = arith.mulf %289, %293 : vector<8x64xf32>
    %295 = vector.broadcast %272 : vector<1x64xf32> to vector<8x64xf32>
    %296 = arith.mulf %294, %295 : vector<8x64xf32>
    %297 = vector.broadcast %274 : vector<1x64xf32> to vector<8x64xf32>
    %298 = arith.addf %296, %297 : vector<8x64xf32>
    %c0_168 = arith.constant 0 : index
    %c0_169 = arith.constant 0 : index
    %299 = vector.load %arg27[%c0_168, %c0_169] : memref<8x64xf32, #tpu.memory_space<vmem>>, vector<8x64xf32>
    tpu.vector_store %arg27[%c0_168, %c0_169], %298 {strides = array<i32>} : memref<8x64xf32, #tpu.memory_space<vmem>>, vector<8x64xf32>,
    %300 = arith.truncf %298 : vector<8x64xf32> to vector<8x64xbf16>
    %c0_170 = arith.constant 0 : index
    %c0_171 = arith.constant 0 : index
    %301 = vector.load %arg20[%c0_170, %c0_171] : memref<64x64xbf16, #tpu.memory_space<vmem>>, vector<64x64xbf16>
    %cst_172 = arith.constant dense<0.000000e+00> : vector<8x64xf32>
    %302 = tpu.matmul %300, %301, %cst_172 {dimension_numbers = #tpu.dot_dimension_numbers<[1], [0], [0], [1], [0, 0, 1, 1], [], []>} : vector<8x64xbf16>, vector<64x64xbf16>, vector<8x64xf32> -> vector<8x64xf32>
    %c0_173 = arith.constant 0 : index
    %c0_174 = arith.constant 0 : index
    %303 = vector.load %arg21[%c0_173, %c0_174] : memref<1x64xf32, #tpu.memory_space<vmem>>, vector<1x64xf32>
    %304 = vector.broadcast %303 : vector<1x64xf32> to vector<8x64xf32>
    %305 = arith.addf %302, %304 : vector<8x64xf32>
    %cst_175 = arith.constant 5.000000e-01 : f32
    %306 = vector.broadcast %cst_175 : f32 to vector<8x64xf32>
    %307 = arith.mulf %306, %305 : vector<8x64xf32>
    %cst_176 = arith.constant 4.471500e-02 : f32
    %308 = vector.broadcast %cst_176 : f32 to vector<8x64xf32>
    %309 = arith.mulf %308, %305 : vector<8x64xf32>
    %310 = arith.mulf %309, %305 : vector<8x64xf32>
    %311 = arith.mulf %310, %305 : vector<8x64xf32>
    %312 = arith.addf %305, %311 : vector<8x64xf32>
    %cst_177 = arith.constant 0.797884583 : f32
    %313 = vector.broadcast %cst_177 : f32 to vector<8x64xf32>
    %314 = arith.mulf %313, %312 : vector<8x64xf32>
    %315 = math.tanh %314 : vector<8x64xf32>
    %cst_178 = arith.constant 1.000000e+00 : f32
    %316 = vector.broadcast %cst_178 : f32 to vector<8x64xf32>
    %317 = arith.addf %316, %315 : vector<8x64xf32>
    %318 = arith.mulf %307, %317 : vector<8x64xf32>
    %c0_179 = arith.constant 0 : index
    %c0_180 = arith.constant 0 : index
    %319 = vector.load %arg22[%c0_179, %c0_180] : memref<1x64xf32, #tpu.memory_space<vmem>>, vector<1x64xf32>
    %c0_181 = arith.constant 0 : index
    %c0_182 = arith.constant 0 : index
    %320 = vector.load %arg23[%c0_181, %c0_182] : memref<1x64xf32, #tpu.memory_space<vmem>>, vector<1x64xf32>
    %cst_183 = arith.constant dense<0.000000e+00> : vector<8xf32>
    %321 = vector.multi_reduction <add>, %318, %cst_183 [1] : vector<8x64xf32> to vector<8xf32>
    %322 = vector.shape_cast %321 : vector<8xf32> to vector<8x1xf32>
    %cst_184 = arith.constant 6.400000e+01 : f32
    %323 = vector.broadcast %cst_184 : f32 to vector<8x1xf32>
    %324 = arith.divf %322, %323 : vector<8x1xf32>
    %325 = vector.broadcast %324 : vector<8x1xf32> to vector<8x64xf32>
    %326 = arith.subf %318, %325 : vector<8x64xf32>
    %327 = vector.broadcast %324 : vector<8x1xf32> to vector<8x64xf32>
    %328 = arith.subf %318, %327 : vector<8x64xf32>
    %329 = arith.mulf %326, %328 : vector<8x64xf32>
    %cst_185 = arith.constant dense<0.000000e+00> : vector<8xf32>
    %330 = vector.multi_reduction <add>, %329, %cst_185 [1] : vector<8x64xf32> to vector<8xf32>
    %331 = vector.shape_cast %330 : vector<8xf32> to vector<8x1xf32>
    %cst_186 = arith.constant 6.400000e+01 : f32
    %332 = vector.broadcast %cst_186 : f32 to vector<8x1xf32>
    %333 = arith.divf %331, %332 : vector<8x1xf32>
    %334 = vector.broadcast %324 : vector<8x1xf32> to vector<8x64xf32>
    %335 = arith.subf %318, %334 : vector<8x64xf32>
    %cst_187 = arith.constant 9.99999974E-6 : f32
    %336 = vector.broadcast %cst_187 : f32 to vector<8x1xf32>
    %337 = arith.addf %333, %336 : vector<8x1xf32>
    %338 = math.rsqrt %337 : vector<8x1xf32>
    %339 = vector.broadcast %338 : vector<8x1xf32> to vector<8x64xf32>
    %340 = arith.mulf %335, %339 : vector<8x64xf32>
    %341 = vector.broadcast %319 : vector<1x64xf32> to vector<8x64xf32>
    %342 = arith.mulf %340, %341 : vector<8x64xf32>
    %343 = vector.broadcast %320 : vector<1x64xf32> to vector<8x64xf32>
    %344 = arith.addf %342, %343 : vector<8x64xf32>
    %345 = arith.truncf %344 : vector<8x64xf32> to vector<8x64xbf16>
    %c0_188 = arith.constant 0 : index
    %c0_189 = arith.constant 0 : index
    %346 = vector.load %arg24[%c0_188, %c0_189] : memref<64x128xbf16, #tpu.memory_space<vmem>>, vector<64x128xbf16>
    %cst_190 = arith.constant dense<0.000000e+00> : vector<8x128xf32>
    %347 = tpu.matmul %345, %346, %cst_190 {dimension_numbers = #tpu.dot_dimension_numbers<[1], [0], [0], [1], [0, 0, 1, 1], [], []>} : vector<8x64xbf16>, vector<64x128xbf16>, vector<8x128xf32> -> vector<8x128xf32>
    %c0_191 = arith.constant 0 : index
    %c0_192 = arith.constant 0 : index
    %348 = vector.load %arg25[%c0_191, %c0_192] : memref<1x128xf32, #tpu.memory_space<vmem>>, vector<1x128xf32>
    %349 = vector.broadcast %348 : vector<1x128xf32> to vector<8x128xf32>
    %350 = arith.addf %347, %349 : vector<8x128xf32>
    %c0_193 = arith.constant 0 : index
    %c0_194 = arith.constant 0 : index
    %351 = vector.load %arg26[%c0_193, %c0_194] : memref<8x128xf32, #tpu.memory_space<vmem>>, vector<8x128xf32>
    tpu.vector_store %arg26[%c0_193, %c0_194], %350 {strides = array<i32>} : memref<8x128xf32, #tpu.memory_space<vmem>>, vector<8x128xf32>,
    return
  }
  func.func @transform_0(%arg0: i32) -> (i32, i32) {
    %c0_i32 = arith.constant 0 : i32
    %c0_i32_0 = arith.constant 0 : i32
    return %arg0, %c0_i32 : i32, i32
  }
  func.func @transform_1(%arg0: i32) -> (i32, i32) {
    %c0_i32 = arith.constant 0 : i32
    %c0_i32_0 = arith.constant 0 : i32
    %c0_i32_1 = arith.constant 0 : i32
    return %c0_i32, %c0_i32_0 : i32, i32
  }
  func.func @transform_2(%arg0: i32) -> (i32, i32) {
    %c0_i32 = arith.constant 0 : i32
    %c0_i32_0 = arith.constant 0 : i32
    %c0_i32_1 = arith.constant 0 : i32
    return %c0_i32, %c0_i32_0 : i32, i32
  }
  func.func @transform_3(%arg0: i32) -> (i32, i32, i32, i32) {
    %c0_i32 = arith.constant 0 : i32
    %c0_i32_0 = arith.constant 0 : i32
    %c0_i32_1 = arith.constant 0 : i32
    %c0_i32_2 = arith.constant 0 : i32
    %c0_i32_3 = arith.constant 0 : i32
    return %c0_i32, %c0_i32_0, %c0_i32_1, %c0_i32_2 : i32, i32, i32, i32
  }
  func.func @transform_4(%arg0: i32) -> (i32, i32, i32, i32) {
    %c0_i32 = arith.constant 0 : i32
    %c0_i32_0 = arith.constant 0 : i32
    %c0_i32_1 = arith.constant 0 : i32
    %c0_i32_2 = arith.constant 0 : i32
    %c0_i32_3 = arith.constant 0 : i32
    return %c0_i32, %c0_i32_0, %c0_i32_1, %c0_i32_2 : i32, i32, i32, i32
  }
  func.func @transform_5(%arg0: i32) -> (i32, i32, i32, i32) {
    %c0_i32 = arith.constant 0 : i32
    %c0_i32_0 = arith.constant 0 : i32
    %c0_i32_1 = arith.constant 0 : i32
    %c0_i32_2 = arith.constant 0 : i32
    %c0_i32_3 = arith.constant 0 : i32
    return %c0_i32, %c0_i32_0, %c0_i32_1, %c0_i32_2 : i32, i32, i32, i32
  }
  func.func @transform_6(%arg0: i32) -> (i32, i32, i32, i32) {
    %c0_i32 = arith.constant 0 : i32
    %c0_i32_0 = arith.constant 0 : i32
    %c0_i32_1 = arith.constant 0 : i32
    %c0_i32_2 = arith.constant 0 : i32
    %c0_i32_3 = arith.constant 0 : i32
    return %c0_i32, %c0_i32_0, %c0_i32_1, %c0_i32_2 : i32, i32, i32, i32
  }
  func.func @transform_7(%arg0: i32) -> (i32, i32, i32, i32) {
    %c0_i32 = arith.constant 0 : i32
    %c0_i32_0 = arith.constant 0 : i32
    %c0_i32_1 = arith.constant 0 : i32
    %c0_i32_2 = arith.constant 0 : i32
    %c0_i32_3 = arith.constant 0 : i32
    return %c0_i32, %c0_i32_0, %c0_i32_1, %c0_i32_2 : i32, i32, i32, i32
  }
  func.func @transform_8(%arg0: i32) -> (i32, i32, i32, i32) {
    %c0_i32 = arith.constant 0 : i32
    %c0_i32_0 = arith.constant 0 : i32
    %c0_i32_1 = arith.constant 0 : i32
    %c0_i32_2 = arith.constant 0 : i32
    %c0_i32_3 = arith.constant 0 : i32
    return %c0_i32, %c0_i32_0, %c0_i32_1, %c0_i32_2 : i32, i32, i32, i32
  }
  func.func @transform_9(%arg0: i32) -> (i32, i32, i32, i32) {
    %c0_i32 = arith.constant 0 : i32
    %c0_i32_0 = arith.constant 0 : i32
    %c0_i32_1 = arith.constant 0 : i32
    %c0_i32_2 = arith.constant 0 : i32
    %c0_i32_3 = arith.constant 0 : i32
    return %c0_i32, %c0_i32_0, %c0_i32_1, %c0_i32_2 : i32, i32, i32, i32
  }
  func.func @transform_10(%arg0: i32) -> (i32, i32, i32) {
    %c0_i32 = arith.constant 0 : i32
    %c0_i32_0 = arith.constant 0 : i32
    %c0_i32_1 = arith.constant 0 : i32
    %c0_i32_2 = arith.constant 0 : i32
    return %c0_i32, %c0_i32_0, %c0_i32_1 : i32, i32, i32
  }
  func.func @transform_11(%arg0: i32) -> (i32, i32, i32) {
    %c0_i32 = arith.constant 0 : i32
    %c0_i32_0 = arith.constant 0 : i32
    %c0_i32_1 = arith.constant 0 : i32
    %c0_i32_2 = arith.constant 0 : i32
    return %c0_i32, %c0_i32_0, %c0_i32_1 : i32, i32, i32
  }
  func.func @transform_12(%arg0: i32) -> (i32, i32, i32) {
    %c0_i32 = arith.constant 0 : i32
    %c0_i32_0 = arith.constant 0 : i32
    %c0_i32_1 = arith.constant 0 : i32
    %c0_i32_2 = arith.constant 0 : i32
    return %c0_i32, %c0_i32_0, %c0_i32_1 : i32, i32, i32
  }
  func.func @transform_13(%arg0: i32) -> (i32, i32, i32) {
    %c0_i32 = arith.constant 0 : i32
    %c0_i32_0 = arith.constant 0 : i32
    %c0_i32_1 = arith.constant 0 : i32
    %c0_i32_2 = arith.constant 0 : i32
    return %c0_i32, %c0_i32_0, %c0_i32_1 : i32, i32, i32
  }
  func.func @transform_14(%arg0: i32) -> (i32, i32, i32) {
    %c0_i32 = arith.constant 0 : i32
    %c0_i32_0 = arith.constant 0 : i32
    %c0_i32_1 = arith.constant 0 : i32
    %c0_i32_2 = arith.constant 0 : i32
    return %c0_i32, %c0_i32_0, %c0_i32_1 : i32, i32, i32
  }
  func.func @transform_15(%arg0: i32) -> (i32, i32, i32) {
    %c0_i32 = arith.constant 0 : i32
    %c0_i32_0 = arith.constant 0 : i32
    %c0_i32_1 = arith.constant 0 : i32
    %c0_i32_2 = arith.constant 0 : i32
    return %c0_i32, %c0_i32_0, %c0_i32_1 : i32, i32, i32
  }
  func.func @transform_16(%arg0: i32) -> (i32, i32, i32) {
    %c0_i32 = arith.constant 0 : i32
    %c0_i32_0 = arith.constant 0 : i32
    %c0_i32_1 = arith.constant 0 : i32
    %c0_i32_2 = arith.constant 0 : i32
    return %c0_i32, %c0_i32_0, %c0_i32_1 : i32, i32, i32
  }
  func.func @transform_17(%arg0: i32) -> (i32, i32, i32) {
    %c0_i32 = arith.constant 0 : i32
    %c0_i32_0 = arith.constant 0 : i32
    %c0_i32_1 = arith.constant 0 : i32
    %c0_i32_2 = arith.constant 0 : i32
    return %c0_i32, %c0_i32_0, %c0_i32_1 : i32, i32, i32
  }
  func.func @transform_18(%arg0: i32) -> (i32, i32, i32) {
    %c0_i32 = arith.constant 0 : i32
    %c0_i32_0 = arith.constant 0 : i32
    %c0_i32_1 = arith.constant 0 : i32
    %c0_i32_2 = arith.constant 0 : i32
    return %c0_i32, %c0_i32_0, %c0_i32_1 : i32, i32, i32
  }
  func.func @transform_19(%arg0: i32) -> (i32, i32) {
    %c0_i32 = arith.constant 0 : i32
    %c0_i32_0 = arith.constant 0 : i32
    %c0_i32_1 = arith.constant 0 : i32
    return %c0_i32, %c0_i32_0 : i32, i32
  }
  func.func @transform_20(%arg0: i32) -> (i32, i32) {
    %c0_i32 = arith.constant 0 : i32
    %c0_i32_0 = arith.constant 0 : i32
    %c0_i32_1 = arith.constant 0 : i32
    return %c0_i32, %c0_i32_0 : i32, i32
  }
  func.func @transform_21(%arg0: i32) -> (i32, i32) {
    %c0_i32 = arith.constant 0 : i32
    %c0_i32_0 = arith.constant 0 : i32
    %c0_i32_1 = arith.constant 0 : i32
    return %c0_i32, %c0_i32_0 : i32, i32
  }
  func.func @transform_22(%arg0: i32) -> (i32, i32) {
    %c0_i32 = arith.constant 0 : i32
    %c0_i32_0 = arith.constant 0 : i32
    %c0_i32_1 = arith.constant 0 : i32
    return %c0_i32, %c0_i32_0 : i32, i32
  }
  func.func @transform_23(%arg0: i32) -> (i32, i32) {
    %c0_i32 = arith.constant 0 : i32
    %c0_i32_0 = arith.constant 0 : i32
    %c0_i32_1 = arith.constant 0 : i32
    return %c0_i32, %c0_i32_0 : i32, i32
  }
  func.func @transform_24(%arg0: i32) -> (i32, i32) {
    %c0_i32 = arith.constant 0 : i32
    %c0_i32_0 = arith.constant 0 : i32
    %c0_i32_1 = arith.constant 0 : i32
    return %c0_i32, %c0_i32_0 : i32, i32
  }
  func.func @transform_25(%arg0: i32) -> (i32, i32) {
    %c0_i32 = arith.constant 0 : i32
    %c0_i32_0 = arith.constant 0 : i32
    return %arg0, %c0_i32 : i32, i32
  }
  func.func @transform_26(%arg0: i32) -> (i32, i32) {
    %c0_i32 = arith.constant 0 : i32
    %c0_i32_0 = arith.constant 0 : i32
    return %arg0, %c0_i32 : i32, i32
  }
}

</mosaic_0001>

<llo_original>
// kernel: model_forward.1
$region0: #{model_forward.1}
  #allocation0 [shape = 'u32[]', space=smem, size = 0x4, offset = 0x4, fixed_abs, tag = 'smem constant byte address 0x4 - core index']
  #allocation1 [shape = 'u32[72,128]{1,0:T(1,128)}', space=vmem, size = 0x9000, scoped, tag = 'internal scratch']
  %s0 = inlined_call_operand.vmem [shape: f32[16,64], index: 0, kind: input, shape index: {}]
  %s1 = inlined_call_operand.vmem [shape: f32[1,64], index: 1, kind: input, shape index: {}]
  %s2 = inlined_call_operand.vmem [shape: f32[1,64], index: 2, kind: input, shape index: {}]
  %s3 = inlined_call_operand.vmem [shape: bf16[2,4,64,16], index: 3, kind: input, shape index: {}]
  %s4 = inlined_call_operand.vmem [shape: bf16[2,4,64,16], index: 4, kind: input, shape index: {}]
  %s5 = inlined_call_operand.vmem [shape: bf16[2,4,64,16], index: 5, kind: input, shape index: {}]
  %s6 = inlined_call_operand.vmem [shape: f32[2,4,1,16], index: 6, kind: input, shape index: {}]
  %s7 = inlined_call_operand.vmem [shape: f32[2,4,1,16], index: 7, kind: input, shape index: {}]
  %s8 = inlined_call_operand.vmem [shape: f32[2,4,1,16], index: 8, kind: input, shape index: {}]
  %s9 = inlined_call_operand.vmem [shape: bf16[2,4,16,64], index: 9, kind: input, shape index: {}]
  %s10 = inlined_call_operand.vmem [shape: f32[2,1,64], index: 10, kind: input, shape index: {}]
  %s11 = inlined_call_operand.vmem [shape: f32[2,1,64], index: 11, kind: input, shape index: {}]
  %s12 = inlined_call_operand.vmem [shape: f32[2,1,64], index: 12, kind: input, shape index: {}]
  %s13 = inlined_call_operand.vmem [shape: bf16[2,64,256], index: 13, kind: input, shape index: {}]
  %s14 = inlined_call_operand.vmem [shape: f32[2,1,256], index: 14, kind: input, shape index: {}]
  %s15 = inlined_call_operand.vmem [shape: bf16[2,256,64], index: 15, kind: input, shape index: {}]
  %s16 = inlined_call_operand.vmem [shape: f32[2,1,64], index: 16, kind: input, shape index: {}]
  %s17 = inlined_call_operand.vmem [shape: f32[2,1,64], index: 17, kind: input, shape index: {}]
  %s18 = inlined_call_operand.vmem [shape: f32[2,1,64], index: 18, kind: input, shape index: {}]
  %s19 = inlined_call_operand.vmem [shape: bf16[64,64], index: 19, kind: input, shape index: {}]
  %s20 = inlined_call_operand.vmem [shape: f32[1,64], index: 20, kind: input, shape index: {}]
  %s21 = inlined_call_operand.vmem [shape: f32[1,64], index: 21, kind: input, shape index: {}]
  %s22 = inlined_call_operand.vmem [shape: f32[1,64], index: 22, kind: input, shape index: {}]
  %s23 = inlined_call_operand.vmem [shape: bf16[64,128], index: 23, kind: input, shape index: {}]
  %s24 = inlined_call_operand.vmem [shape: f32[1,128], index: 24, kind: input, shape index: {}]
  %s25 = inlined_call_operand.hbm [shape: f32[16,128], index: 25, kind: output, shape index: {0}]
  %s26 = inlined_call_operand.vmem [shape: f32[16,64], index: 26, kind: output, shape index: {1}]
  %27 = xla_tuple %s25, %s26
  %s28 = sld [smem:[#allocation0]]
  $region141: #{model_forward.1} parent=0
    _
  %s30 = ssub.s32 1, %s28
  %s31 = scalar_select 0, %s30, %s28
  $region1: #{model_forward.1} parent=0
    #allocation2 [shape = 'u8[8192]{0}', space=vmem, size = 0x2000, scoped, tag = 'output window, operand 0']
    #allocation3 [shape = 's32[2]{0}', space=sflag, size = 0x8, scoped, tag = 'scoped memory for model_forward.1']
    %32 = vsyncpa [#allocation3], 0
    %s33 = scalar_lea.sflag [#allocation3], 1
    %34 = vsyncpa %s33, 0
    loop: start=0, step=1, limit=4
    $region2: #{model_forward.1} parent=1 // loop_pre_header
      _
    $region3: #{model_forward.1} parent=1 // loop_header
      %s36 = sphi 0, %s40
      %p37 = scmp.ge.s32.totalorder %s36, 4
      %s46 = sphi 0, %s48
      %s49 = sphi 0, %s46
      %s50 = sphi 0, %s49
      %s66 = sphi 0, %s50
      %s70 = sphi 0, %s70
      %s72 = sphi 0, %s70
      %s73 = sphi 0, %s72
      %s87 = sphi 0, %s73
      %s91 = sphi 0, %s91
      %s93 = sphi 0, %s91
      %s94 = sphi 0, %s93
      %s108 = sphi 0, %s94
      %s112 = sphi 0, %s112
      %s114 = sphi 0, %s112
      %s115 = sphi 0, %s114
      %s129 = sphi 0, %s115
      %s133 = sphi 0, %s133
      %s135 = sphi 0, %s133
      %s136 = sphi 0, %s135
      %s150 = sphi 0, %s136
      %s154 = sphi 0, %s154
      %s156 = sphi 0, %s154
      %s157 = sphi 0, %s156
      %s171 = sphi 0, %s157
      %s175 = sphi 0, %s175
      %s177 = sphi 0, %s175
      %s178 = sphi 0, %s177
      %s192 = sphi 0, %s178
      %s196 = sphi 0, %s196
      %s198 = sphi 0, %s196
      %s199 = sphi 0, %s198
      %s213 = sphi 0, %s199
      %s217 = sphi 0, %s217
      %s219 = sphi 0, %s217
      %s220 = sphi 0, %s219
      %s234 = sphi 0, %s220
      %s238 = sphi 0, %s238
      %s240 = sphi 0, %s238
      %s241 = sphi 0, %s240
      %s255 = sphi 0, %s241
      %s259 = sphi 0, %s259
      %s261 = sphi 0, %s259
      %s262 = sphi 0, %s261
      %s276 = sphi 0, %s262
      %s280 = sphi 0, %s280
      %s282 = sphi 0, %s280
      %s283 = sphi 0, %s282
      %s297 = sphi 0, %s283
      %s301 = sphi 0, %s301
      %s303 = sphi 0, %s301
      %s304 = sphi 0, %s303
      %s318 = sphi 0, %s304
      %s322 = sphi 0, %s322
      %s324 = sphi 0, %s322
      %s325 = sphi 0, %s324
      %s339 = sphi 0, %s325
      %s343 = sphi 0, %s343
      %s345 = sphi 0, %s343
      %s346 = sphi 0, %s345
      %s360 = sphi 0, %s346
      %s364 = sphi 0, %s364
      %s366 = sphi 0, %s364
      %s367 = sphi 0, %s366
      %s381 = sphi 0, %s367
      %s385 = sphi 0, %s385
      %s387 = sphi 0, %s385
      %s388 = sphi 0, %s387
      %s402 = sphi 0, %s388
      %s406 = sphi 0, %s406
      %s408 = sphi 0, %s406
      %s409 = sphi 0, %s408
      %s423 = sphi 0, %s409
      %s427 = sphi 0, %s427
      %s429 = sphi 0, %s427
      %s430 = sphi 0, %s429
      %s444 = sphi 0, %s430
      %s448 = sphi 0, %s448
      %s450 = sphi 0, %s448
      %s451 = sphi 0, %s450
      %s465 = sphi 0, %s451
      %s469 = sphi 0, %s469
      %s471 = sphi 0, %s469
      %s472 = sphi 0, %s471
      %s486 = sphi 0, %s472
      %s490 = sphi 0, %s490
      %s492 = sphi 0, %s490
      %s493 = sphi 0, %s492
      %s507 = sphi 0, %s493
      %s511 = sphi 0, %s511
      %s513 = sphi 0, %s511
      %s514 = sphi 0, %s513
      %s528 = sphi 0, %s514
      %s532 = sphi 0, %s532
      %s534 = sphi 0, %s532
      %s535 = sphi 0, %s534
      %s549 = sphi 0, %s535
      %s553 = sphi 0, %s553
      %s555 = sphi 0, %s553
      %s556 = sphi 0, %s555
      %s570 = sphi 0, %s556
      %s576 = sphi 0, %s578
      %s579 = sphi 0, %s576
      %s580 = sphi 0, %s579
      %s596 = sphi 0, %s580
      %s602 = sphi 0, %s604
      %s605 = sphi 0, %s602
      %s606 = sphi 0, %s605
      %s622 = sphi 0, %s606
    $region4: #{model_forward.1} parent=1 // loop_header_branch
      %39 = sbr.rel (%p37) target = $region8
    $region5: #{model_forward.1} parent=1 // loop_body
      %s41 = ssub.s32 %s36, 1
      %s42 = ssub.s32 %s36, 2
      %s43 = sadd.s32 %s36, 1
      %s44 = ssub.s32 %s36, %s43
      %p45 = scmp.eq.s32.totalorder %s44, 0
      %s47 = sadd.s32 %s46, 1
      %s48 = scalar_select %p45, %s46, %s47
      %p51 = pneg %p45
      %p52 = scmp.eq.s32.totalorder %s36, 1
      %p53 = por %p51, %p52
      %p54 = scmp.ne.s32.totalorder %s46, %s49
      %p55 = scmp.eq.s32.totalorder %s36, 0
      %p56 = por %p54, %p55
      %p57 = scmp.ne.s32.totalorder %s46, %s49
      %p58 = scmp.eq.s32.totalorder %s41, 1
      %p59 = por %p57, %p58
      %p60 = scmp.ne.s32.totalorder %s49, %s50
      %p61 = scmp.eq.s32.totalorder %s41, 0
      %p62 = por %p60, %p61
      %p63 = scmp.ne.s32.totalorder %s49, %s50
      %p64 = scmp.eq.s32.totalorder %s42, 1
      %p65 = por %p63, %p64
      %p67 = scmp.ne.s32.totalorder %s50, %s66
      %p68 = scmp.eq.s32.totalorder %s42, 0
      %p69 = por %p67, %p68
      %s71 = sadd.s32 %s70, 1
      %p74 = scmp.eq.s32.totalorder %s36, 1
      %p75 = scmp.ne.s32.totalorder %s70, %s72
      %p76 = scmp.eq.s32.totalorder %s36, 0
      %p77 = por %p75, %p76
      %p78 = scmp.ne.s32.totalorder %s70, %s72
      %p79 = scmp.eq.s32.totalorder %s41, 1
      %p80 = por %p78, %p79
      %p81 = scmp.ne.s32.totalorder %s72, %s73
      %p82 = scmp.eq.s32.totalorder %s41, 0
      %p83 = por %p81, %p82
      %p84 = scmp.ne.s32.totalorder %s72, %s73
      %p85 = scmp.eq.s32.totalorder %s42, 1
      %p86 = por %p84, %p85
      %p88 = scmp.ne.s32.totalorder %s73, %s87
      %p89 = scmp.eq.s32.totalorder %s42, 0
      %p90 = por %p88, %p89
      %s92 = sadd.s32 %s91, 1
      %p95 = scmp.eq.s32.totalorder %s36, 1
      %p96 = scmp.ne.s32.totalorder %s91, %s93
      %p97 = scmp.eq.s32.totalorder %s36, 0
      %p98 = por %p96, %p97
      %p99 = scmp.ne.s32.totalorder %s91, %s93
      %p100 = scmp.eq.s32.totalorder %s41, 1
      %p101 = por %p99, %p100
      %p102 = scmp.ne.s32.totalorder %s93, %s94
      %p103 = scmp.eq.s32.totalorder %s41, 0
      %p104 = por %p102, %p103
      %p105 = scmp.ne.s32.totalorder %s93, %s94
      %p106 = scmp.eq.s32.totalorder %s42, 1
      %p107 = por %p105, %p106
      %p109 = scmp.ne.s32.totalorder %s94, %s108
      %p110 = scmp.eq.s32.totalorder %s42, 0
      %p111 = por %p109, %p110
      %s113 = sadd.s32 %s112, 1
      %p116 = scmp.eq.s32.totalorder %s36, 1
      %p117 = scmp.ne.s32.totalorder %s112, %s114
      %p118 = scmp.eq.s32.totalorder %s36, 0
      %p119 = por %p117, %p118
      %p120 = scmp.ne.s32.totalorder %s112, %s114
      %p121 = scmp.eq.s32.totalorder %s41, 1
      %p122 = por %p120, %p121
      %p123 = scmp.ne.s32.totalorder %s114, %s115
      %p124 = scmp.eq.s32.totalorder %s41, 0
      %p125 = por %p123, %p124
      %p126 = scmp.ne.s32.totalorder %s114, %s115
      %p127 = scmp.eq.s32.totalorder %s42, 1
      %p128 = por %p126, %p127
      %p130 = scmp.ne.s32.totalorder %s115, %s129
      %p131 = scmp.eq.s32.totalorder %s42, 0
      %p132 = por %p130, %p131
      %s134 = sadd.s32 %s133, 1
      %p137 = scmp.eq.s32.totalorder %s36, 1
      %p138 = scmp.ne.s32.totalorder %s133, %s135
      %p139 = scmp.eq.s32.totalorder %s36, 0
      %p140 = por %p138, %p139
      %p141 = scmp.ne.s32.totalorder %s133, %s135
      %p142 = scmp.eq.s32.totalorder %s41, 1
      %p143 = por %p141, %p142
      %p144 = scmp.ne.s32.totalorder %s135, %s136
      %p145 = scmp.eq.s32.totalorder %s41, 0
      %p146 = por %p144, %p145
      %p147 = scmp.ne.s32.totalorder %s135, %s136
      %p148 = scmp.eq.s32.totalorder %s42, 1
      %p149 = por %p147, %p148
      %p151 = scmp.ne.s32.totalorder %s136, %s150
      %p152 = scmp.eq.s32.totalorder %s42, 0
      %p153 = por %p151, %p152
      %s155 = sadd.s32 %s154, 1
      %p158 = scmp.eq.s32.totalorder %s36, 1
      %p159 = scmp.ne.s32.totalorder %s154, %s156
      %p160 = scmp.eq.s32.totalorder %s36, 0
      %p161 = por %p159, %p160
      %p162 = scmp.ne.s32.totalorder %s154, %s156
      %p163 = scmp.eq.s32.totalorder %s41, 1
      %p164 = por %p162, %p163
      %p165 = scmp.ne.s32.totalorder %s156, %s157
      %p166 = scmp.eq.s32.totalorder %s41, 0
      %p167 = por %p165, %p166
      %p168 = scmp.ne.s32.totalorder %s156, %s157
      %p169 = scmp.eq.s32.totalorder %s42, 1
      %p170 = por %p168, %p169
      %p172 = scmp.ne.s32.totalorder %s157, %s171
      %p173 = scmp.eq.s32.totalorder %s42, 0
      %p174 = por %p172, %p173
      %s176 = sadd.s32 %s175, 1
      %p179 = scmp.eq.s32.totalorder %s36, 1
      %p180 = scmp.ne.s32.totalorder %s175, %s177
      %p181 = scmp.eq.s32.totalorder %s36, 0
      %p182 = por %p180, %p181
      %p183 = scmp.ne.s32.totalorder %s175, %s177
      %p184 = scmp.eq.s32.totalorder %s41, 1
      %p185 = por %p183, %p184
      %p186 = scmp.ne.s32.totalorder %s177, %s178
      %p187 = scmp.eq.s32.totalorder %s41, 0
      %p188 = por %p186, %p187
      %p189 = scmp.ne.s32.totalorder %s177, %s178
      %p190 = scmp.eq.s32.totalorder %s42, 1
      %p191 = por %p189, %p190
      %p193 = scmp.ne.s32.totalorder %s178, %s192
      %p194 = scmp.eq.s32.totalorder %s42, 0
      %p195 = por %p193, %p194
      %s197 = sadd.s32 %s196, 1
      %p200 = scmp.eq.s32.totalorder %s36, 1
      %p201 = scmp.ne.s32.totalorder %s196, %s198
      %p202 = scmp.eq.s32.totalorder %s36, 0
      %p203 = por %p201, %p202
      %p204 = scmp.ne.s32.totalorder %s196, %s198
      %p205 = scmp.eq.s32.totalorder %s41, 1
      %p206 = por %p204, %p205
      %p207 = scmp.ne.s32.totalorder %s198, %s199
      %p208 = scmp.eq.s32.totalorder %s41, 0
      %p209 = por %p207, %p208
      %p210 = scmp.ne.s32.totalorder %s198, %s199
      %p211 = scmp.eq.s32.totalorder %s42, 1
      %p212 = por %p210, %p211
      %p214 = scmp.ne.s32.totalorder %s199, %s213
      %p215 = scmp.eq.s32.totalorder %s42, 0
      %p216 = por %p214, %p215
      %s218 = sadd.s32 %s217, 1
      %p221 = scmp.eq.s32.totalorder %s36, 1
      %p222 = scmp.ne.s32.totalorder %s217, %s219
      %p223 = scmp.eq.s32.totalorder %s36, 0
      %p224 = por %p222, %p223
      %p225 = scmp.ne.s32.totalorder %s217, %s219
      %p226 = scmp.eq.s32.totalorder %s41, 1
      %p227 = por %p225, %p226
      %p228 = scmp.ne.s32.totalorder %s219, %s220
      %p229 = scmp.eq.s32.totalorder %s41, 0
      %p230 = por %p228, %p229
      %p231 = scmp.ne.s32.totalorder %s219, %s220
      %p232 = scmp.eq.s32.totalorder %s42, 1
      %p233 = por %p231, %p232
      %p235 = scmp.ne.s32.totalorder %s220, %s234
      %p236 = scmp.eq.s32.totalorder %s42, 0
      %p237 = por %p235, %p236
      %s239 = sadd.s32 %s238, 1
      %p242 = scmp.eq.s32.totalorder %s36, 1
      %p243 = scmp.ne.s32.totalorder %s238, %s240
      %p244 = scmp.eq.s32.totalorder %s36, 0
      %p245 = por %p243, %p244
      %p246 = scmp.ne.s32.totalorder %s238, %s240
      %p247 = scmp.eq.s32.totalorder %s41, 1
      %p248 = por %p246, %p247
      %p249 = scmp.ne.s32.totalorder %s240, %s241
      %p250 = scmp.eq.s32.totalorder %s41, 0
      %p251 = por %p249, %p250
      %p252 = scmp.ne.s32.totalorder %s240, %s241
      %p253 = scmp.eq.s32.totalorder %s42, 1
      %p254 = por %p252, %p253
      %p256 = scmp.ne.s32.totalorder %s241, %s255
      %p257 = scmp.eq.s32.totalorder %s42, 0
      %p258 = por %p256, %p257
      %s260 = sadd.s32 %s259, 1
      %p263 = scmp.eq.s32.totalorder %s36, 1
      %p264 = scmp.ne.s32.totalorder %s259, %s261
      %p265 = scmp.eq.s32.totalorder %s36, 0
      %p266 = por %p264, %p265
      %p267 = scmp.ne.s32.totalorder %s259, %s261
      %p268 = scmp.eq.s32.totalorder %s41, 1
      %p269 = por %p267, %p268
      %p270 = scmp.ne.s32.totalorder %s261, %s262
      %p271 = scmp.eq.s32.totalorder %s41, 0
      %p272 = por %p270, %p271
      %p273 = scmp.ne.s32.totalorder %s261, %s262
      %p274 = scmp.eq.s32.totalorder %s42, 1
      %p275 = por %p273, %p274
      %p277 = scmp.ne.s32.totalorder %s262, %s276
      %p278 = scmp.eq.s32.totalorder %s42, 0
      %p279 = por %p277, %p278
      %s281 = sadd.s32 %s280, 1
      %p284 = scmp.eq.s32.totalorder %s36, 1
      %p285 = scmp.ne.s32.totalorder %s280, %s282
      %p286 = scmp.eq.s32.totalorder %s36, 0
      %p287 = por %p285, %p286
      %p288 = scmp.ne.s32.totalorder %s280, %s282
      %p289 = scmp.eq.s32.totalorder %s41, 1
      %p290 = por %p288, %p289
      %p291 = scmp.ne.s32.totalorder %s282, %s283
      %p292 = scmp.eq.s32.totalorder %s41, 0
      %p293 = por %p291, %p292
      %p294 = scmp.ne.s32.totalorder %s282, %s283
      %p295 = scmp.eq.s32.totalorder %s42, 1
      %p296 = por %p294, %p295
      %p298 = scmp.ne.s32.totalorder %s283, %s297
      %p299 = scmp.eq.s32.totalorder %s42, 0
      %p300 = por %p298, %p299
      %s302 = sadd.s32 %s301, 1
      %p305 = scmp.eq.s32.totalorder %s36, 1
      %p306 = scmp.ne.s32.totalorder %s301, %s303
      %p307 = scmp.eq.s32.totalorder %s36, 0
      %p308 = por %p306, %p307
      %p309 = scmp.ne.s32.totalorder %s301, %s303
      %p310 = scmp.eq.s32.totalorder %s41, 1
      %p311 = por %p309, %p310
      %p312 = scmp.ne.s32.totalorder %s303, %s304
      %p313 = scmp.eq.s32.totalorder %s41, 0
      %p314 = por %p312, %p313
      %p315 = scmp.ne.s32.totalorder %s303, %s304
      %p316 = scmp.eq.s32.totalorder %s42, 1
      %p317 = por %p315, %p316
      %p319 = scmp.ne.s32.totalorder %s304, %s318
      %p320 = scmp.eq.s32.totalorder %s42, 0
      %p321 = por %p319, %p320
      %s323 = sadd.s32 %s322, 1
      %p326 = scmp.eq.s32.totalorder %s36, 1
      %p327 = scmp.ne.s32.totalorder %s322, %s324
      %p328 = scmp.eq.s32.totalorder %s36, 0
      %p329 = por %p327, %p328
      %p330 = scmp.ne.s32.totalorder %s322, %s324
      %p331 = scmp.eq.s32.totalorder %s41, 1
      %p332 = por %p330, %p331
      %p333 = scmp.ne.s32.totalorder %s324, %s325
      %p334 = scmp.eq.s32.totalorder %s41, 0
      %p335 = por %p333, %p334
      %p336 = scmp.ne.s32.totalorder %s324, %s325
      %p337 = scmp.eq.s32.totalorder %s42, 1
      %p338 = por %p336, %p337
      %p340 = scmp.ne.s32.totalorder %s325, %s339
      %p341 = scmp.eq.s32.totalorder %s42, 0
      %p342 = por %p340, %p341
      %s344 = sadd.s32 %s343, 1
      %p347 = scmp.eq.s32.totalorder %s36, 1
      %p348 = scmp.ne.s32.totalorder %s343, %s345
      %p349 = scmp.eq.s32.totalorder %s36, 0
      %p350 = por %p348, %p349
      %p351 = scmp.ne.s32.totalorder %s343, %s345
      %p352 = scmp.eq.s32.totalorder %s41, 1
      %p353 = por %p351, %p352
      %p354 = scmp.ne.s32.totalorder %s345, %s346
      %p355 = scmp.eq.s32.totalorder %s41, 0
      %p356 = por %p354, %p355
      %p357 = scmp.ne.s32.totalorder %s345, %s346
      %p358 = scmp.eq.s32.totalorder %s42, 1
      %p359 = por %p357, %p358
      %p361 = scmp.ne.s32.totalorder %s346, %s360
      %p362 = scmp.eq.s32.totalorder %s42, 0
      %p363 = por %p361, %p362
      %s365 = sadd.s32 %s364, 1
      %p368 = scmp.eq.s32.totalorder %s36, 1
      %p369 = scmp.ne.s32.totalorder %s364, %s366
      %p370 = scmp.eq.s32.totalorder %s36, 0
      %p371 = por %p369, %p370
      %p372 = scmp.ne.s32.totalorder %s364, %s366
      %p373 = scmp.eq.s32.totalorder %s41, 1
      %p374 = por %p372, %p373
      %p375 = scmp.ne.s32.totalorder %s366, %s367
      %p376 = scmp.eq.s32.totalorder %s41, 0
      %p377 = por %p375, %p376
      %p378 = scmp.ne.s32.totalorder %s366, %s367
      %p379 = scmp.eq.s32.totalorder %s42, 1
      %p380 = por %p378, %p379
      %p382 = scmp.ne.s32.totalorder %s367, %s381
      %p383 = scmp.eq.s32.totalorder %s42, 0
      %p384 = por %p382, %p383
      %s386 = sadd.s32 %s385, 1
      %p389 = scmp.eq.s32.totalorder %s36, 1
      %p390 = scmp.ne.s32.totalorder %s385, %s387
      %p391 = scmp.eq.s32.totalorder %s36, 0
      %p392 = por %p390, %p391
      %p393 = scmp.ne.s32.totalorder %s385, %s387
      %p394 = scmp.eq.s32.totalorder %s41, 1
      %p395 = por %p393, %p394
      %p396 = scmp.ne.s32.totalorder %s387, %s388
      %p397 = scmp.eq.s32.totalorder %s41, 0
      %p398 = por %p396, %p397
      %p399 = scmp.ne.s32.totalorder %s387, %s388
      %p400 = scmp.eq.s32.totalorder %s42, 1
      %p401 = por %p399, %p400
      %p403 = scmp.ne.s32.totalorder %s388, %s402
      %p404 = scmp.eq.s32.totalorder %s42, 0
      %p405 = por %p403, %p404
      %s407 = sadd.s32 %s406, 1
      %p410 = scmp.eq.s32.totalorder %s36, 1
      %p411 = scmp.ne.s32.totalorder %s406, %s408
      %p412 = scmp.eq.s32.totalorder %s36, 0
      %p413 = por %p411, %p412
      %p414 = scmp.ne.s32.totalorder %s406, %s408
      %p415 = scmp.eq.s32.totalorder %s41, 1
      %p416 = por %p414, %p415
      %p417 = scmp.ne.s32.totalorder %s408, %s409
      %p418 = scmp.eq.s32.totalorder %s41, 0
      %p419 = por %p417, %p418
      %p420 = scmp.ne.s32.totalorder %s408, %s409
      %p421 = scmp.eq.s32.totalorder %s42, 1
      %p422 = por %p420, %p421
      %p424 = scmp.ne.s32.totalorder %s409, %s423
      %p425 = scmp.eq.s32.totalorder %s42, 0
      %p426 = por %p424, %p425
      %s428 = sadd.s32 %s427, 1
      %p431 = scmp.eq.s32.totalorder %s36, 1
      %p432 = scmp.ne.s32.totalorder %s427, %s429
      %p433 = scmp.eq.s32.totalorder %s36, 0
      %p434 = por %p432, %p433
      %p435 = scmp.ne.s32.totalorder %s427, %s429
      %p436 = scmp.eq.s32.totalorder %s41, 1
      %p437 = por %p435, %p436
      %p438 = scmp.ne.s32.totalorder %s429, %s430
      %p439 = scmp.eq.s32.totalorder %s41, 0
      %p440 = por %p438, %p439
      %p441 = scmp.ne.s32.totalorder %s429, %s430
      %p442 = scmp.eq.s32.totalorder %s42, 1
      %p443 = por %p441, %p442
      %p445 = scmp.ne.s32.totalorder %s430, %s444
      %p446 = scmp.eq.s32.totalorder %s42, 0
      %p447 = por %p445, %p446
      %s449 = sadd.s32 %s448, 1
      %p452 = scmp.eq.s32.totalorder %s36, 1
      %p453 = scmp.ne.s32.totalorder %s448, %s450
      %p454 = scmp.eq.s32.totalorder %s36, 0
      %p455 = por %p453, %p454
      %p456 = scmp.ne.s32.totalorder %s448, %s450
      %p457 = scmp.eq.s32.totalorder %s41, 1
      %p458 = por %p456, %p457
      %p459 = scmp.ne.s32.totalorder %s450, %s451
      %p460 = scmp.eq.s32.totalorder %s41, 0
      %p461 = por %p459, %p460
      %p462 = scmp.ne.s32.totalorder %s450, %s451
      %p463 = scmp.eq.s32.totalorder %s42, 1
      %p464 = por %p462, %p463
      %p466 = scmp.ne.s32.totalorder %s451, %s465
      %p467 = scmp.eq.s32.totalorder %s42, 0
      %p468 = por %p466, %p467
      %s470 = sadd.s32 %s469, 1
      %p473 = scmp.eq.s32.totalorder %s36, 1
      %p474 = scmp.ne.s32.totalorder %s469, %s471
      %p475 = scmp.eq.s32.totalorder %s36, 0
      %p476 = por %p474, %p475
      %p477 = scmp.ne.s32.totalorder %s469, %s471
      %p478 = scmp.eq.s32.totalorder %s41, 1
      %p479 = por %p477, %p478
      %p480 = scmp.ne.s32.totalorder %s471, %s472
      %p481 = scmp.eq.s32.totalorder %s41, 0
      %p482 = por %p480, %p481
      %p483 = scmp.ne.s32.totalorder %s471, %s472
      %p484 = scmp.eq.s32.totalorder %s42, 1
      %p485 = por %p483, %p484
      %p487 = scmp.ne.s32.totalorder %s472, %s486
      %p488 = scmp.eq.s32.totalorder %s42, 0
      %p489 = por %p487, %p488
      %s491 = sadd.s32 %s490, 1
      %p494 = scmp.eq.s32.totalorder %s36, 1
      %p495 = scmp.ne.s32.totalorder %s490, %s492
      %p496 = scmp.eq.s32.totalorder %s36, 0
      %p497 = por %p495, %p496
      %p498 = scmp.ne.s32.totalorder %s490, %s492
      %p499 = scmp.eq.s32.totalorder %s41, 1
      %p500 = por %p498, %p499
      %p501 = scmp.ne.s32.totalorder %s492, %s493
      %p502 = scmp.eq.s32.totalorder %s41, 0
      %p503 = por %p501, %p502
      %p504 = scmp.ne.s32.totalorder %s492, %s493
      %p505 = scmp.eq.s32.totalorder %s42, 1
      %p506 = por %p504, %p505
      %p508 = scmp.ne.s32.totalorder %s493, %s507
      %p509 = scmp.eq.s32.totalorder %s42, 0
      %p510 = por %p508, %p509
      %s512 = sadd.s32 %s511, 1
      %p515 = scmp.eq.s32.totalorder %s36, 1
      %p516 = scmp.ne.s32.totalorder %s511, %s513
      %p517 = scmp.eq.s32.totalorder %s36, 0
      %p518 = por %p516, %p517
      %p519 = scmp.ne.s32.totalorder %s511, %s513
      %p520 = scmp.eq.s32.totalorder %s41, 1
      %p521 = por %p519, %p520
      %p522 = scmp.ne.s32.totalorder %s513, %s514
      %p523 = scmp.eq.s32.totalorder %s41, 0
      %p524 = por %p522, %p523
      %p525 = scmp.ne.s32.totalorder %s513, %s514
      %p526 = scmp.eq.s32.totalorder %s42, 1
      %p527 = por %p525, %p526
      %p529 = scmp.ne.s32.totalorder %s514, %s528
      %p530 = scmp.eq.s32.totalorder %s42, 0
      %p531 = por %p529, %p530
      %s533 = sadd.s32 %s532, 1
      %p536 = scmp.eq.s32.totalorder %s36, 1
      %p537 = scmp.ne.s32.totalorder %s532, %s534
      %p538 = scmp.eq.s32.totalorder %s36, 0
      %p539 = por %p537, %p538
      %p540 = scmp.ne.s32.totalorder %s532, %s534
      %p541 = scmp.eq.s32.totalorder %s41, 1
      %p542 = por %p540, %p541
      %p543 = scmp.ne.s32.totalorder %s534, %s535
      %p544 = scmp.eq.s32.totalorder %s41, 0
      %p545 = por %p543, %p544
      %p546 = scmp.ne.s32.totalorder %s534, %s535
      %p547 = scmp.eq.s32.totalorder %s42, 1
      %p548 = por %p546, %p547
      %p550 = scmp.ne.s32.totalorder %s535, %s549
      %p551 = scmp.eq.s32.totalorder %s42, 0
      %p552 = por %p550, %p551
      %s554 = sadd.s32 %s553, 1
      %p557 = scmp.eq.s32.totalorder %s36, 1
      %p558 = scmp.ne.s32.totalorder %s553, %s555
      %p559 = scmp.eq.s32.totalorder %s36, 0
      %p560 = por %p558, %p559
      %p561 = scmp.ne.s32.totalorder %s553, %s555
      %p562 = scmp.eq.s32.totalorder %s41, 1
      %p563 = por %p561, %p562
      %p564 = scmp.ne.s32.totalorder %s555, %s556
      %p565 = scmp.eq.s32.totalorder %s41, 0
      %p566 = por %p564, %p565
      %p567 = scmp.ne.s32.totalorder %s555, %s556
      %p568 = scmp.eq.s32.totalorder %s42, 1
      %p569 = por %p567, %p568
      %p571 = scmp.ne.s32.totalorder %s556, %s570
      %p572 = scmp.eq.s32.totalorder %s42, 0
      %p573 = por %p571, %p572
      %s574 = ssub.s32 %s36, %s43
      %p575 = scmp.eq.s32.totalorder %s574, 0
      %s577 = sadd.s32 %s576, 1
      %s578 = scalar_select %p575, %s576, %s577
      %p581 = pneg %p575
      %p582 = scmp.eq.s32.totalorder %s36, 1
      %p583 = por %p581, %p582
      %p584 = scmp.ne.s32.totalorder %s576, %s579
      %p585 = scmp.eq.s32.totalorder %s36, 0
      %p586 = por %p584, %p585
      %p587 = scmp.ne.s32.totalorder %s576, %s579
      %p588 = scmp.eq.s32.totalorder %s41, 1
      %p589 = por %p587, %p588
      %p590 = scmp.ne.s32.totalorder %s579, %s580
      %p591 = scmp.eq.s32.totalorder %s41, 0
      %p592 = por %p590, %p591
      %p593 = scmp.ne.s32.totalorder %s579, %s580
      %p594 = scmp.eq.s32.totalorder %s42, 1
      %p595 = por %p593, %p594
      %p597 = scmp.ne.s32.totalorder %s580, %s596
      %p598 = scmp.eq.s32.totalorder %s42, 0
      %p599 = por %p597, %p598
      %s600 = ssub.s32 %s36, %s43
      %p601 = scmp.eq.s32.totalorder %s600, 0
      %s603 = sadd.s32 %s602, 1
      %s604 = scalar_select %p601, %s602, %s603
      %p607 = pneg %p601
      %p608 = scmp.eq.s32.totalorder %s36, 1
      %p609 = por %p607, %p608
      %p610 = scmp.ne.s32.totalorder %s602, %s605
      %p611 = scmp.eq.s32.totalorder %s36, 0
      %p612 = por %p610, %p611
      %p613 = scmp.ne.s32.totalorder %s602, %s605
      %p614 = scmp.eq.s32.totalorder %s41, 1
      %p615 = por %p613, %p614
      %p616 = scmp.ne.s32.totalorder %s605, %s606
      %p617 = scmp.eq.s32.totalorder %s41, 0
      %p618 = por %p616, %p617
      %p619 = scmp.ne.s32.totalorder %s605, %s606
      %p620 = scmp.eq.s32.totalorder %s42, 1
      %p621 = por %p619, %p620
      %p623 = scmp.ne.s32.totalorder %s606, %s622
      %p624 = scmp.eq.s32.totalorder %s42, 0
      %p625 = por %p623, %p624
      %p626 = scmp.le.s32.totalorder 1, %s36
      %p627 = scmp.lt.s32.totalorder %s36, 3
      %p628 = pnand %p626, %p627
      %p629 = pneg %p628
      // Predicated region
      $region9: #{model_forward.1} parent=5 // pred_check
        _
      $region10: #{model_forward.1} parent=5 // pred_check_branch
        %631 = sbr.rel (%p628) target = $region12
      $region11: #{model_forward.1} parent=5 // pred_region
        %s632 = ssub.s32 %s36, 1
        // Predicated region
        $region13: #{model_forward.1} parent=11 // pred_check
          %p633 = pneg %p83
        $region14: #{model_forward.1} parent=11 // pred_check_branch
          %635 = sbr.rel (%p633) target = $region16
        $region15: #{model_forward.1} parent=11 // pred_region
          _
        $region16: #{model_forward.1} parent=11 // pred_fallthru
          _
        // Predicated region
        $region17: #{model_forward.1} parent=11 // pred_check
          %p636 = pneg %p104
        $region18: #{model_forward.1} parent=11 // pred_check_branch
          %638 = sbr.rel (%p636) target = $region20
        $region19: #{model_forward.1} parent=11 // pred_region
          _
        $region20: #{model_forward.1} parent=11 // pred_fallthru
          _
        // Predicated region
        $region21: #{model_forward.1} parent=11 // pred_check
          %p639 = pneg %p125
        $region22: #{model_forward.1} parent=11 // pred_check_branch
          %641 = sbr.rel (%p639) target = $region24
        $region23: #{model_forward.1} parent=11 // pred_region
          _
        $region24: #{model_forward.1} parent=11 // pred_fallthru
          _
        // Predicated region
        $region25: #{model_forward.1} parent=11 // pred_check
          %p642 = pneg %p146
        $region26: #{model_forward.1} parent=11 // pred_check_branch
          %644 = sbr.rel (%p642) target = $region28
        $region27: #{model_forward.1} parent=11 // pred_region
          _
        $region28: #{model_forward.1} parent=11 // pred_fallthru
          _
        // Predicated region
        $region29: #{model_forward.1} parent=11 // pred_check
          %p645 = pneg %p167
        $region30: #{model_forward.1} parent=11 // pred_check_branch
          %647 = sbr.rel (%p645) target = $region32
        $region31: #{model_forward.1} parent=11 // pred_region
          _
        $region32: #{model_forward.1} parent=11 // pred_fallthru
          _
        // Predicated region
        $region33: #{model_forward.1} parent=11 // pred_check
          %p648 = pneg %p188
        $region34: #{model_forward.1} parent=11 // pred_check_branch
          %650 = sbr.rel (%p648) target = $region36
        $region35: #{model_forward.1} parent=11 // pred_region
          _
        $region36: #{model_forward.1} parent=11 // pred_fallthru
          _
        // Predicated region
        $region37: #{model_forward.1} parent=11 // pred_check
          %p651 = pneg %p209
        $region38: #{model_forward.1} parent=11 // pred_check_branch
          %653 = sbr.rel (%p651) target = $region40
        $region39: #{model_forward.1} parent=11 // pred_region
          _
        $region40: #{model_forward.1} parent=11 // pred_fallthru
          _
        // Predicated region
        $region41: #{model_forward.1} parent=11 // pred_check
          %p654 = pneg %p230
        $region42: #{model_forward.1} parent=11 // pred_check_branch
          %656 = sbr.rel (%p654) target = $region44
        $region43: #{model_forward.1} parent=11 // pred_region
          _
        $region44: #{model_forward.1} parent=11 // pred_fallthru
          _
        // Predicated region
        $region45: #{model_forward.1} parent=11 // pred_check
          %p657 = pneg %p251
        $region46: #{model_forward.1} parent=11 // pred_check_branch
          %659 = sbr.rel (%p657) target = $region48
        $region47: #{model_forward.1} parent=11 // pred_region
          _
        $region48: #{model_forward.1} parent=11 // pred_fallthru
          _
        // Predicated region
        $region49: #{model_forward.1} parent=11 // pred_check
          %p660 = pneg %p272
        $region50: #{model_forward.1} parent=11 // pred_check_branch
          %662 = sbr.rel (%p660) target = $region52
        $region51: #{model_forward.1} parent=11 // pred_region
          _
        $region52: #{model_forward.1} parent=11 // pred_fallthru
          _
        // Predicated region
        $region53: #{model_forward.1} parent=11 // pred_check
          %p663 = pneg %p293
        $region54: #{model_forward.1} parent=11 // pred_check_branch
          %665 = sbr.rel (%p663) target = $region56
        $region55: #{model_forward.1} parent=11 // pred_region
          _
        $region56: #{model_forward.1} parent=11 // pred_fallthru
          _
        // Predicated region
        $region57: #{model_forward.1} parent=11 // pred_check
          %p666 = pneg %p314
        $region58: #{model_forward.1} parent=11 // pred_check_branch
          %668 = sbr.rel (%p666) target = $region60
        $region59: #{model_forward.1} parent=11 // pred_region
          _
        $region60: #{model_forward.1} parent=11 // pred_fallthru
          _
        // Predicated region
        $region61: #{model_forward.1} parent=11 // pred_check
          %p669 = pneg %p335
        $region62: #{model_forward.1} parent=11 // pred_check_branch
          %671 = sbr.rel (%p669) target = $region64
        $region63: #{model_forward.1} parent=11 // pred_region
          _
        $region64: #{model_forward.1} parent=11 // pred_fallthru
          _
        // Predicated region
        $region65: #{model_forward.1} parent=11 // pred_check
          %p672 = pneg %p356
        $region66: #{model_forward.1} parent=11 // pred_check_branch
          %674 = sbr.rel (%p672) target = $region68
        $region67: #{model_forward.1} parent=11 // pred_region
          _
        $region68: #{model_forward.1} parent=11 // pred_fallthru
          _
        // Predicated region
        $region69: #{model_forward.1} parent=11 // pred_check
          %p675 = pneg %p377
        $region70: #{model_forward.1} parent=11 // pred_check_branch
          %677 = sbr.rel (%p675) target = $region72
        $region71: #{model_forward.1} parent=11 // pred_region
          _
        $region72: #{model_forward.1} parent=11 // pred_fallthru
          _
        // Predicated region
        $region73: #{model_forward.1} parent=11 // pred_check
          %p678 = pneg %p398
        $region74: #{model_forward.1} parent=11 // pred_check_branch
          %680 = sbr.rel (%p678) target = $region76
        $region75: #{model_forward.1} parent=11 // pred_region
          _
        $region76: #{model_forward.1} parent=11 // pred_fallthru
          _
        // Predicated region
        $region77: #{model_forward.1} parent=11 // pred_check
          %p681 = pneg %p419
        $region78: #{model_forward.1} parent=11 // pred_check_branch
          %683 = sbr.rel (%p681) target = $region80
        $region79: #{model_forward.1} parent=11 // pred_region
          _
        $region80: #{model_forward.1} parent=11 // pred_fallthru
          _
        // Predicated region
        $region81: #{model_forward.1} parent=11 // pred_check
          %p684 = pneg %p440
        $region82: #{model_forward.1} parent=11 // pred_check_branch
          %686 = sbr.rel (%p684) target = $region84
        $region83: #{model_forward.1} parent=11 // pred_region
          _
        $region84: #{model_forward.1} parent=11 // pred_fallthru
          _
        // Predicated region
        $region85: #{model_forward.1} parent=11 // pred_check
          %p687 = pneg %p461
        $region86: #{model_forward.1} parent=11 // pred_check_branch
          %689 = sbr.rel (%p687) target = $region88
        $region87: #{model_forward.1} parent=11 // pred_region
          _
        $region88: #{model_forward.1} parent=11 // pred_fallthru
          _
        // Predicated region
        $region89: #{model_forward.1} parent=11 // pred_check
          %p690 = pneg %p482
        $region90: #{model_forward.1} parent=11 // pred_check_branch
          %692 = sbr.rel (%p690) target = $region92
        $region91: #{model_forward.1} parent=11 // pred_region
          _
        $region92: #{model_forward.1} parent=11 // pred_fallthru
          _
        // Predicated region
        $region93: #{model_forward.1} parent=11 // pred_check
          %p693 = pneg %p503
        $region94: #{model_forward.1} parent=11 // pred_check_branch
          %695 = sbr.rel (%p693) target = $region96
        $region95: #{model_forward.1} parent=11 // pred_region
          _
        $region96: #{model_forward.1} parent=11 // pred_fallthru
          _
        // Predicated region
        $region97: #{model_forward.1} parent=11 // pred_check
          %p696 = pneg %p524
        $region98: #{model_forward.1} parent=11 // pred_check_branch
          %698 = sbr.rel (%p696) target = $region100
        $region99: #{model_forward.1} parent=11 // pred_region
          _
        $region100: #{model_forward.1} parent=11 // pred_fallthru
          _
        // Predicated region
        $region101: #{model_forward.1} parent=11 // pred_check
          %p699 = pneg %p545
        $region102: #{model_forward.1} parent=11 // pred_check_branch
          %701 = sbr.rel (%p699) target = $region104
        $region103: #{model_forward.1} parent=11 // pred_region
          _
        $region104: #{model_forward.1} parent=11 // pred_fallthru
          _
        // Predicated region
        $region105: #{model_forward.1} parent=11 // pred_check
          %p702 = pneg %p566
        $region106: #{model_forward.1} parent=11 // pred_check_branch
          %704 = sbr.rel (%p702) target = $region108
        $region107: #{model_forward.1} parent=11 // pred_region
          _
        $region108: #{model_forward.1} parent=11 // pred_fallthru
          _
      $region12: #{model_forward.1} parent=5 // pred_fallthru
        _
      %p705 = scmp.lt.s32.totalorder %s36, 2
      // Predicated region
      $region109: #{model_forward.1} parent=5 // pred_check
        %p706 = pneg %p705
      $region110: #{model_forward.1} parent=5 // pred_check_branch
        %708 = sbr.rel (%p706) target = $region112
      $region111: #{model_forward.1} parent=5 // pred_region
        // Predicated region
        $region113: #{model_forward.1} parent=111 // pred_check
          %p709 = pneg %p56
        $region114: #{model_forward.1} parent=111 // pred_check_branch
          %711 = sbr.rel (%p709) target = $region116
        $region115: #{model_forward.1} parent=111 // pred_region
          %p712 = scmp.lt.s32.totalorder %s36, 1
          %s713 = scalar_select %p712, %s36, 1
          %s714 = smul.addr %s713, 8
          %s715 = scalar_lea.vmem %s0, %s714
        $region116: #{model_forward.1} parent=111 // pred_fallthru
          _
      $region112: #{model_forward.1} parent=5 // pred_fallthru
        _
      %p716 = scmp.le.s32.totalorder 1, %s36
      %p717 = scmp.lt.s32.totalorder %s36, 3
      %p718 = pnand %p716, %p717
      %p719 = pneg %p718
      // Predicated region
      $region117: #{model_forward.1} parent=5 // pred_check
        _
      $region118: #{model_forward.1} parent=5 // pred_check_branch
        %721 = sbr.rel (%p718) target = $region120
      $region119: #{model_forward.1} parent=5 // pred_region
        %s722 = ssub.s32 %s36, 1
        %p723 = scmp.lt.s32.totalorder %s41, 1
        %s724 = scalar_select %p723, %s41, 1
        %s725 = smul.addr %s724, 8
        %s726 = scalar_lea.vmem %s0, %s725
        %p727 = pneg %p62
        %p728 = pneg %p59
        %p729 = pneg %p83
        %p730 = pneg %p80
        %p731 = pneg %p104
        %p732 = pneg %p101
        %p733 = pneg %p125
        %p734 = pneg %p122
        %p735 = pneg %p146
        %p736 = pneg %p143
        %p737 = pneg %p167
        %p738 = pneg %p164
        %p739 = pneg %p188
        %p740 = pneg %p185
        %p741 = pneg %p209
        %p742 = pneg %p206
        %p743 = pneg %p230
        %p744 = pneg %p227
        %p745 = pneg %p251
        %p746 = pneg %p248
        %p747 = pneg %p272
        %p748 = pneg %p269
        %p749 = pneg %p293
        %p750 = pneg %p290
        %p751 = pneg %p314
        %p752 = pneg %p311
        %p753 = pneg %p335
        %p754 = pneg %p332
        %p755 = pneg %p356
        %p756 = pneg %p353
        %p757 = pneg %p377
        %p758 = pneg %p374
        %p759 = pneg %p398
        %p760 = pneg %p395
        %p761 = pneg %p419
        %p762 = pneg %p416
        %p763 = pneg %p440
        %p764 = pneg %p437
        %p765 = pneg %p461
        %p766 = pneg %p458
        %p767 = pneg %p482
        %p768 = pneg %p479
        %p769 = pneg %p503
        %p770 = pneg %p500
        %p771 = pneg %p524
        %p772 = pneg %p521
        %p773 = pneg %p545
        %p774 = pneg %p542
        %p775 = pneg %p566
        %p776 = pneg %p563
        %p777 = pneg %p592
        %p778 = pneg %p589
        %s779 = sand.u32 %s579, 1
        %s780 = scalar_lea.sflag [#allocation3], %s779
        %s781 = sand.u32 %s579, 1
        %s782 = smul.addr %s781, 8
        %s783 = scalar_lea.vmem [#allocation2], %s782
        %p784 = pneg %p618
        %p785 = pneg %p615
        %p786 = scmp.lt.s32.totalorder %s41, 1
        %s787 = scalar_select %p786, %s41, 1
        %s788 = smul.addr %s787, 8
        %s789 = scalar_lea.vmem %s26, %s788
        %p790 = scmp.lt.s32.totalorder %s41, 1
        %s791 = scalar_select %p790, %s41, 1
        %s792 = smul.addr %s791, 8
        %s793 = scalar_lea.vmem %s0, %s792
        %p794 = scmp.lt.s32.totalorder %s41, 1
        %s795 = scalar_select %p794, %s41, 1
        %s796 = smul.addr %s795, 8
        %s797 = scalar_lea.vmem %s26, %s796
        %v799 = vld [vmem:[%s793] sm:$0xff]
        %v800 = vld [vmem:[%s1] sm:$0x1]
        %v801 = vld [vmem:[%s2] sm:$0x1]
        %vm802 = vcmask 523264
        %v803 = vsel %vm802, %v799, 0.0
        %804 = vadd.xlane.f32.xlu0 %v803
        %v805 = vpop.xlane.xlu0 %804
        %v806 = vrcp.pop 64.0
        %v807 = vmul.f32 64.0, %v806
        %v808 = vsub.f32 1.0, %v807
        %v809 = vmul.f32 %v806, %v808
        %v810 = vadd.f32 %v806, %v809
        %vm811 = vweird.f32 %v806
        %v812 = vsel %vm811, %v806, %v810
        %v813 = vmul.f32 %v805, %v812
        %v814 = vsub.f32 %v799, %v813
        %v815 = vmul.f32 %v814, %v814
        %v816 = vsel %vm802, %v815, 0.0
        %817 = vadd.xlane.f32.xlu0 %v816
        %v818 = vpop.xlane.xlu0 %817
        %v819 = vmul.f32 %v818, %v812
        %v820 = vadd.f32 %v819, 1e-05
        %v821 = vrsqrt.pop %v820
        %v822 = vmul.f32 %v821, %v820
        %v823 = vmul.f32 %v822, %v821
        %v824 = vmul.f32 0.5, %v823
        %v825 = vsub.f32 1.5, %v824
        %v826 = vmul.f32 %v821, %v825
        %vm827 = vweird.f32 %v820
        %vm828 = vweird.f32 %v821
        %vm829 = vmor %vm827, %vm828
        %v830 = vsel %vm829, %v821, %v826
        %v831 = vmul.f32 %v814, %v830
        %v833 = vperm.slane %v800, 0
        %v835 = vmul.f32 %v831, %v833
        %v837 = vperm.slane %v801, 0
        %v839 = vadd.f32 %v835, %v837
        %v840 = vpack.c.bf16 %v839, %v839
        %v841 = vld [vmem:[%s3] sm:$0xf]
        %v842 = vld [vmem:[%s3 + $0x4] sm:$0xf]
        %v843 = vld [vmem:[%s3 + $0x8] sm:$0xf]
        %v844 = vld [vmem:[%s3 + $0xc] sm:$0xf]
        %v845 = vld [vmem:[%s3 + $0x10] sm:$0xf]
        %v846 = vld [vmem:[%s3 + $0x14] sm:$0xf]
        %v847 = vld [vmem:[%s3 + $0x18] sm:$0xf]
        %v848 = vld [vmem:[%s3 + $0x1c] sm:$0xf]
        %v849 = vld [vmem:[%s3 + $0x20] sm:$0xf]
        %v850 = vld [vmem:[%s3 + $0x24] sm:$0xf]
        %v851 = vld [vmem:[%s3 + $0x28] sm:$0xf]
        %v852 = vld [vmem:[%s3 + $0x2c] sm:$0xf]
        %v853 = vld [vmem:[%s3 + $0x30] sm:$0xf]
        %v854 = vld [vmem:[%s3 + $0x34] sm:$0xf]
        %v855 = vld [vmem:[%s3 + $0x38] sm:$0xf]
        %v856 = vld [vmem:[%s3 + $0x3c] sm:$0xf]
        %v857 = vld [vmem:[%s3 + $0x40] sm:$0xf]
        %v858 = vld [vmem:[%s3 + $0x44] sm:$0xf]
        %v859 = vld [vmem:[%s3 + $0x48] sm:$0xf]
        %v860 = vld [vmem:[%s3 + $0x4c] sm:$0xf]
        %v861 = vld [vmem:[%s3 + $0x50] sm:$0xf]
        %v862 = vld [vmem:[%s3 + $0x54] sm:$0xf]
        %v863 = vld [vmem:[%s3 + $0x58] sm:$0xf]
        %v864 = vld [vmem:[%s3 + $0x5c] sm:$0xf]
        %v865 = vld [vmem:[%s3 + $0x60] sm:$0xf]
        %v866 = vld [vmem:[%s3 + $0x64] sm:$0xf]
        %v867 = vld [vmem:[%s3 + $0x68] sm:$0xf]
        %v868 = vld [vmem:[%s3 + $0x6c] sm:$0xf]
        %v869 = vld [vmem:[%s3 + $0x70] sm:$0xf]
        %v870 = vld [vmem:[%s3 + $0x74] sm:$0xf]
        %v871 = vld [vmem:[%s3 + $0x78] sm:$0xf]
        %v872 = vld [vmem:[%s3 + $0x7c] sm:$0xf]
        %v873 = vld [vmem:[%s6] sm:$0x1]
        %v874 = vld [vmem:[%s6 + $0x1] sm:$0x1]
        %v875 = vld [vmem:[%s6 + $0x2] sm:$0x1]
        %v876 = vld [vmem:[%s6 + $0x3] sm:$0x1]
        %v881 = vperm.slane %v873, 0
        %v882 = vperm.slane %v874, 0
        %v883 = vperm.slane %v875, 0
        %v884 = vperm.slane %v876, 0
        %v897 = vunpack.c.l.b16 %v841
        %v898 = vunpack.c.l.b16 %v842
        %v899 = vunpack.c.l.b16 %v843
        %v900 = vunpack.c.l.b16 %v844
        %v901 = vunpack.c.l.b16 %v845
        %v902 = vunpack.c.l.b16 %v846
        %v903 = vunpack.c.l.b16 %v847
        %v904 = vunpack.c.l.b16 %v848
        %v905 = vpack.c.b16 %v898, %v897
        %v906 = vpack.c.b16 %v900, %v899
        %v907 = vpack.c.b16 %v902, %v901
        %v908 = vpack.c.b16 %v904, %v903
        %v914 = vsel %vm802, %v840, 0
        %916 = vmatpush.bf16.msra.mxu0 0
        %917 = vmatpush.bf16.msra.mxu0 0
        %918 = vmatpush.bf16.msra.mxu0 0
        %919 = vmatpush.bf16.msra.mxu0 0
        %920 = vmatpush.bf16.msra.mxu0 %v908
        %921 = vmatpush.bf16.msra.mxu0 %v907
        %922 = vmatpush.bf16.msra.mxu0 %v906
        %923 = vmatpush.bf16.msra.mxu0 %v905
        %924 = vmatmul.bf16.gmra.mxu0 %v914
        %v925 = vpop.f32.mrf.mxu0
        %v926 = vadd.f32 %v881, %v925
        %v927 = vpop.f32.mrf.mxu0
        %928 = vdwg.mxu0
        %v937 = vunpack.c.l.b16 %v849
        %v938 = vunpack.c.l.b16 %v850
        %v939 = vunpack.c.l.b16 %v851
        %v940 = vunpack.c.l.b16 %v852
        %v941 = vunpack.c.l.b16 %v853
        %v942 = vunpack.c.l.b16 %v854
        %v943 = vunpack.c.l.b16 %v855
        %v944 = vunpack.c.l.b16 %v856
        %v945 = vpack.c.b16 %v938, %v937
        %v946 = vpack.c.b16 %v940, %v939
        %v947 = vpack.c.b16 %v942, %v941
        %v948 = vpack.c.b16 %v944, %v943
        %953 = vmatpush.bf16.msra.mxu0 0
        %954 = vmatpush.bf16.msra.mxu0 0
        %955 = vmatpush.bf16.msra.mxu0 0
        %956 = vmatpush.bf16.msra.mxu0 0
        %957 = vmatpush.bf16.msra.mxu0 %v948
        %958 = vmatpush.bf16.msra.mxu0 %v947
        %959 = vmatpush.bf16.msra.mxu0 %v946
        %960 = vmatpush.bf16.msra.mxu0 %v945
        %961 = vmatmul.bf16.gmra.mxu0 %v914
        %v962 = vpop.f32.mrf.mxu0
        %v963 = vadd.f32 %v882, %v962
        %v964 = vpop.f32.mrf.mxu0
        %965 = vdwg.mxu0
        %v974 = vunpack.c.l.b16 %v857
        %v975 = vunpack.c.l.b16 %v858
        %v976 = vunpack.c.l.b16 %v859
        %v977 = vunpack.c.l.b16 %v860
        %v978 = vunpack.c.l.b16 %v861
        %v979 = vunpack.c.l.b16 %v862
        %v980 = vunpack.c.l.b16 %v863
        %v981 = vunpack.c.l.b16 %v864
        %v982 = vpack.c.b16 %v975, %v974
        %v983 = vpack.c.b16 %v977, %v976
        %v984 = vpack.c.b16 %v979, %v978
        %v985 = vpack.c.b16 %v981, %v980
        %990 = vmatpush.bf16.msra.mxu0 0
        %991 = vmatpush.bf16.msra.mxu0 0
        %992 = vmatpush.bf16.msra.mxu0 0
        %993 = vmatpush.bf16.msra.mxu0 0
        %994 = vmatpush.bf16.msra.mxu0 %v985
        %995 = vmatpush.bf16.msra.mxu0 %v984
        %996 = vmatpush.bf16.msra.mxu0 %v983
        %997 = vmatpush.bf16.msra.mxu0 %v982
        %998 = vmatmul.bf16.gmra.mxu0 %v914
        %v999 = vpop.f32.mrf.mxu0
        %v1000 = vadd.f32 %v883, %v999
        %v1001 = vpop.f32.mrf.mxu0
        %1002 = vdwg.mxu0
        %v1011 = vunpack.c.l.b16 %v865
        %v1012 = vunpack.c.l.b16 %v866
        %v1013 = vunpack.c.l.b16 %v867
        %v1014 = vunpack.c.l.b16 %v868
        %v1015 = vunpack.c.l.b16 %v869
        %v1016 = vunpack.c.l.b16 %v870
        %v1017 = vunpack.c.l.b16 %v871
        %v1018 = vunpack.c.l.b16 %v872
        %v1019 = vpack.c.b16 %v1012, %v1011
        %v1020 = vpack.c.b16 %v1014, %v1013
        %v1021 = vpack.c.b16 %v1016, %v1015
        %v1022 = vpack.c.b16 %v1018, %v1017
        %1027 = vmatpush.bf16.msra.mxu0 0
        %1028 = vmatpush.bf16.msra.mxu0 0
        %1029 = vmatpush.bf16.msra.mxu0 0
        %1030 = vmatpush.bf16.msra.mxu0 0
        %1031 = vmatpush.bf16.msra.mxu0 %v1022
        %1032 = vmatpush.bf16.msra.mxu0 %v1021
        %1033 = vmatpush.bf16.msra.mxu0 %v1020
        %1034 = vmatpush.bf16.msra.mxu0 %v1019
        %1035 = vmatmul.bf16.gmra.mxu0 %v914
        %v1036 = vpop.f32.mrf.mxu0
        %v1037 = vadd.f32 %v884, %v1036
        %v1038 = vpop.f32.mrf.mxu0
        %1039 = vdwg.mxu0
        %v1040 = vld [vmem:[%s4] sm:$0xf]
        %v1041 = vld [vmem:[%s4 + $0x4] sm:$0xf]
        %v1042 = vld [vmem:[%s4 + $0x8] sm:$0xf]
        %v1043 = vld [vmem:[%s4 + $0xc] sm:$0xf]
        %v1044 = vld [vmem:[%s4 + $0x10] sm:$0xf]
        %v1045 = vld [vmem:[%s4 + $0x14] sm:$0xf]
        %v1046 = vld [vmem:[%s4 + $0x18] sm:$0xf]
        %v1047 = vld [vmem:[%s4 + $0x1c] sm:$0xf]
        %v1048 = vld [vmem:[%s4 + $0x20] sm:$0xf]
        %v1049 = vld [vmem:[%s4 + $0x24] sm:$0xf]
        %v1050 = vld [vmem:[%s4 + $0x28] sm:$0xf]
        %v1051 = vld [vmem:[%s4 + $0x2c] sm:$0xf]
        %v1052 = vld [vmem:[%s4 + $0x30] sm:$0xf]
        %v1053 = vld [vmem:[%s4 + $0x34] sm:$0xf]
        %v1054 = vld [vmem:[%s4 + $0x38] sm:$0xf]
        %v1055 = vld [vmem:[%s4 + $0x3c] sm:$0xf]
        %v1056 = vld [vmem:[%s4 + $0x40] sm:$0xf]
        %v1057 = vld [vmem:[%s4 + $0x44] sm:$0xf]
        %v1058 = vld [vmem:[%s4 + $0x48] sm:$0xf]
        %v1059 = vld [vmem:[%s4 + $0x4c] sm:$0xf]
        %v1060 = vld [vmem:[%s4 + $0x50] sm:$0xf]
        %v1061 = vld [vmem:[%s4 + $0x54] sm:$0xf]
        %v1062 = vld [vmem:[%s4 + $0x58] sm:$0xf]
        %v1063 = vld [vmem:[%s4 + $0x5c] sm:$0xf]
        %v1064 = vld [vmem:[%s4 + $0x60] sm:$0xf]
        %v1065 = vld [vmem:[%s4 + $0x64] sm:$0xf]
        %v1066 = vld [vmem:[%s4 + $0x68] sm:$0xf]
        %v1067 = vld [vmem:[%s4 + $0x6c] sm:$0xf]
        %v1068 = vld [vmem:[%s4 + $0x70] sm:$0xf]
        %v1069 = vld [vmem:[%s4 + $0x74] sm:$0xf]
        %v1070 = vld [vmem:[%s4 + $0x78] sm:$0xf]
        %v1071 = vld [vmem:[%s4 + $0x7c] sm:$0xf]
        %v1072 = vld [vmem:[%s7] sm:$0x1]
        %v1073 = vld [vmem:[%s7 + $0x1] sm:$0x1]
        %v1074 = vld [vmem:[%s7 + $0x2] sm:$0x1]
        %v1075 = vld [vmem:[%s7 + $0x3] sm:$0x1]
        %v1080 = vperm.slane %v1072, 0
        %v1081 = vperm.slane %v1073, 0
        %v1082 = vperm.slane %v1074, 0
        %v1083 = vperm.slane %v1075, 0
        %v1096 = vunpack.c.l.b16 %v1040
        %v1097 = vunpack.c.l.b16 %v1041
        %v1098 = vunpack.c.l.b16 %v1042
        %v1099 = vunpack.c.l.b16 %v1043
        %v1100 = vunpack.c.l.b16 %v1044
        %v1101 = vunpack.c.l.b16 %v1045
        %v1102 = vunpack.c.l.b16 %v1046
        %v1103 = vunpack.c.l.b16 %v1047
        %v1104 = vpack.c.b16 %v1097, %v1096
        %v1105 = vpack.c.b16 %v1099, %v1098
        %v1106 = vpack.c.b16 %v1101, %v1100
        %v1107 = vpack.c.b16 %v1103, %v1102
        %1112 = vmatpush.bf16.msra.mxu0 0
        %1113 = vmatpush.bf16.msra.mxu0 0
        %1114 = vmatpush.bf16.msra.mxu0 0
        %1115 = vmatpush.bf16.msra.mxu0 0
        %1116 = vmatpush.bf16.msra.mxu0 %v1107
        %1117 = vmatpush.bf16.msra.mxu0 %v1106
        %1118 = vmatpush.bf16.msra.mxu0 %v1105
        %1119 = vmatpush.bf16.msra.mxu0 %v1104
        %1120 = vmatmul.bf16.gmra.mxu0 %v914
        %v1121 = vpop.f32.mrf.mxu0
        %v1122 = vadd.f32 %v1080, %v1121
        %v1123 = vpop.f32.mrf.mxu0
        %1124 = vdwg.mxu0
        %v1133 = vunpack.c.l.b16 %v1048
        %v1134 = vunpack.c.l.b16 %v1049
        %v1135 = vunpack.c.l.b16 %v1050
        %v1136 = vunpack.c.l.b16 %v1051
        %v1137 = vunpack.c.l.b16 %v1052
        %v1138 = vunpack.c.l.b16 %v1053
        %v1139 = vunpack.c.l.b16 %v1054
        %v1140 = vunpack.c.l.b16 %v1055
        %v1141 = vpack.c.b16 %v1134, %v1133
        %v1142 = vpack.c.b16 %v1136, %v1135
        %v1143 = vpack.c.b16 %v1138, %v1137
        %v1144 = vpack.c.b16 %v1140, %v1139
        %1149 = vmatpush.bf16.msra.mxu0 0
        %1150 = vmatpush.bf16.msra.mxu0 0
        %1151 = vmatpush.bf16.msra.mxu0 0
        %1152 = vmatpush.bf16.msra.mxu0 0
        %1153 = vmatpush.bf16.msra.mxu0 %v1144
        %1154 = vmatpush.bf16.msra.mxu0 %v1143
        %1155 = vmatpush.bf16.msra.mxu0 %v1142
        %1156 = vmatpush.bf16.msra.mxu0 %v1141
        %1157 = vmatmul.bf16.gmra.mxu0 %v914
        %v1158 = vpop.f32.mrf.mxu0
        %v1159 = vadd.f32 %v1081, %v1158
        %v1160 = vpop.f32.mrf.mxu0
        %1161 = vdwg.mxu0
        %v1170 = vunpack.c.l.b16 %v1056
        %v1171 = vunpack.c.l.b16 %v1057
        %v1172 = vunpack.c.l.b16 %v1058
        %v1173 = vunpack.c.l.b16 %v1059
        %v1174 = vunpack.c.l.b16 %v1060
        %v1175 = vunpack.c.l.b16 %v1061
        %v1176 = vunpack.c.l.b16 %v1062
        %v1177 = vunpack.c.l.b16 %v1063
        %v1178 = vpack.c.b16 %v1171, %v1170
        %v1179 = vpack.c.b16 %v1173, %v1172
        %v1180 = vpack.c.b16 %v1175, %v1174
        %v1181 = vpack.c.b16 %v1177, %v1176
        %1186 = vmatpush.bf16.msra.mxu0 0
        %1187 = vmatpush.bf16.msra.mxu0 0
        %1188 = vmatpush.bf16.msra.mxu0 0
        %1189 = vmatpush.bf16.msra.mxu0 0
        %1190 = vmatpush.bf16.msra.mxu0 %v1181
        %1191 = vmatpush.bf16.msra.mxu0 %v1180
        %1192 = vmatpush.bf16.msra.mxu0 %v1179
        %1193 = vmatpush.bf16.msra.mxu0 %v1178
        %1194 = vmatmul.bf16.gmra.mxu0 %v914
        %v1195 = vpop.f32.mrf.mxu0
        %v1196 = vadd.f32 %v1082, %v1195
        %v1197 = vpop.f32.mrf.mxu0
        %1198 = vdwg.mxu0
        %v1207 = vunpack.c.l.b16 %v1064
        %v1208 = vunpack.c.l.b16 %v1065
        %v1209 = vunpack.c.l.b16 %v1066
        %v1210 = vunpack.c.l.b16 %v1067
        %v1211 = vunpack.c.l.b16 %v1068
        %v1212 = vunpack.c.l.b16 %v1069
        %v1213 = vunpack.c.l.b16 %v1070
        %v1214 = vunpack.c.l.b16 %v1071
        %v1215 = vpack.c.b16 %v1208, %v1207
        %v1216 = vpack.c.b16 %v1210, %v1209
        %v1217 = vpack.c.b16 %v1212, %v1211
        %v1218 = vpack.c.b16 %v1214, %v1213
        %1223 = vmatpush.bf16.msra.mxu0 0
        %1224 = vmatpush.bf16.msra.mxu0 0
        %1225 = vmatpush.bf16.msra.mxu0 0
        %1226 = vmatpush.bf16.msra.mxu0 0
        %1227 = vmatpush.bf16.msra.mxu0 %v1218
        %1228 = vmatpush.bf16.msra.mxu0 %v1217
        %1229 = vmatpush.bf16.msra.mxu0 %v1216
        %1230 = vmatpush.bf16.msra.mxu0 %v1215
        %1231 = vmatmul.bf16.gmra.mxu0 %v914
        %v1232 = vpop.f32.mrf.mxu0
        %v1233 = vadd.f32 %v1083, %v1232
        %v1234 = vpop.f32.mrf.mxu0
        %1235 = vdwg.mxu0
        %v1236 = vld [vmem:[%s5] sm:$0xf]
        %v1237 = vld [vmem:[%s5 + $0x4] sm:$0xf]
        %v1238 = vld [vmem:[%s5 + $0x8] sm:$0xf]
        %v1239 = vld [vmem:[%s5 + $0xc] sm:$0xf]
        %v1240 = vld [vmem:[%s5 + $0x10] sm:$0xf]
        %v1241 = vld [vmem:[%s5 + $0x14] sm:$0xf]
        %v1242 = vld [vmem:[%s5 + $0x18] sm:$0xf]
        %v1243 = vld [vmem:[%s5 + $0x1c] sm:$0xf]
        %v1244 = vld [vmem:[%s5 + $0x20] sm:$0xf]
        %v1245 = vld [vmem:[%s5 + $0x24] sm:$0xf]
        %v1246 = vld [vmem:[%s5 + $0x28] sm:$0xf]
        %v1247 = vld [vmem:[%s5 + $0x2c] sm:$0xf]
        %v1248 = vld [vmem:[%s5 + $0x30] sm:$0xf]
        %v1249 = vld [vmem:[%s5 + $0x34] sm:$0xf]
        %v1250 = vld [vmem:[%s5 + $0x38] sm:$0xf]
        %v1251 = vld [vmem:[%s5 + $0x3c] sm:$0xf]
        %v1252 = vld [vmem:[%s5 + $0x40] sm:$0xf]
        %v1253 = vld [vmem:[%s5 + $0x44] sm:$0xf]
        %v1254 = vld [vmem:[%s5 + $0x48] sm:$0xf]
        %v1255 = vld [vmem:[%s5 + $0x4c] sm:$0xf]
        %v1256 = vld [vmem:[%s5 + $0x50] sm:$0xf]
        %v1257 = vld [vmem:[%s5 + $0x54] sm:$0xf]
        %v1258 = vld [vmem:[%s5 + $0x58] sm:$0xf]
        %v1259 = vld [vmem:[%s5 + $0x5c] sm:$0xf]
        %v1260 = vld [vmem:[%s5 + $0x60] sm:$0xf]
        %v1261 = vld [vmem:[%s5 + $0x64] sm:$0xf]
        %v1262 = vld [vmem:[%s5 + $0x68] sm:$0xf]
        %v1263 = vld [vmem:[%s5 + $0x6c] sm:$0xf]
        %v1264 = vld [vmem:[%s5 + $0x70] sm:$0xf]
        %v1265 = vld [vmem:[%s5 + $0x74] sm:$0xf]
        %v1266 = vld [vmem:[%s5 + $0x78] sm:$0xf]
        %v1267 = vld [vmem:[%s5 + $0x7c] sm:$0xf]
        %v1268 = vld [vmem:[%s8] sm:$0x1]
        %v1269 = vld [vmem:[%s8 + $0x1] sm:$0x1]
        %v1270 = vld [vmem:[%s8 + $0x2] sm:$0x1]
        %v1271 = vld [vmem:[%s8 + $0x3] sm:$0x1]
        %v1276 = vperm.slane %v1268, 0
        %v1277 = vperm.slane %v1269, 0
        %v1278 = vperm.slane %v1270, 0
        %v1279 = vperm.slane %v1271, 0
        %v1292 = vunpack.c.l.b16 %v1236
        %v1293 = vunpack.c.l.b16 %v1237
        %v1294 = vunpack.c.l.b16 %v1238
        %v1295 = vunpack.c.l.b16 %v1239
        %v1296 = vunpack.c.l.b16 %v1240
        %v1297 = vunpack.c.l.b16 %v1241
        %v1298 = vunpack.c.l.b16 %v1242
        %v1299 = vunpack.c.l.b16 %v1243
        %v1300 = vpack.c.b16 %v1293, %v1292
        %v1301 = vpack.c.b16 %v1295, %v1294
        %v1302 = vpack.c.b16 %v1297, %v1296
        %v1303 = vpack.c.b16 %v1299, %v1298
        %1308 = vmatpush.bf16.msra.mxu0 0
        %1309 = vmatpush.bf16.msra.mxu0 0
        %1310 = vmatpush.bf16.msra.mxu0 0
        %1311 = vmatpush.bf16.msra.mxu0 0
        %1312 = vmatpush.bf16.msra.mxu0 %v1303
        %1313 = vmatpush.bf16.msra.mxu0 %v1302
        %1314 = vmatpush.bf16.msra.mxu0 %v1301
        %1315 = vmatpush.bf16.msra.mxu0 %v1300
        %1316 = vmatmul.bf16.gmra.mxu0 %v914
        %v1317 = vpop.f32.mrf.mxu0
        %v1318 = vadd.f32 %v1276, %v1317
        %v1319 = vpop.f32.mrf.mxu0
        %1320 = vdwg.mxu0
        %v1329 = vunpack.c.l.b16 %v1244
        %v1330 = vunpack.c.l.b16 %v1245
        %v1331 = vunpack.c.l.b16 %v1246
        %v1332 = vunpack.c.l.b16 %v1247
        %v1333 = vunpack.c.l.b16 %v1248
        %v1334 = vunpack.c.l.b16 %v1249
        %v1335 = vunpack.c.l.b16 %v1250
        %v1336 = vunpack.c.l.b16 %v1251
        %v1337 = vpack.c.b16 %v1330, %v1329
        %v1338 = vpack.c.b16 %v1332, %v1331
        %v1339 = vpack.c.b16 %v1334, %v1333
        %v1340 = vpack.c.b16 %v1336, %v1335
        %1345 = vmatpush.bf16.msra.mxu0 0
        %1346 = vmatpush.bf16.msra.mxu0 0
        %1347 = vmatpush.bf16.msra.mxu0 0
        %1348 = vmatpush.bf16.msra.mxu0 0
        %1349 = vmatpush.bf16.msra.mxu0 %v1340
        %1350 = vmatpush.bf16.msra.mxu0 %v1339
        %1351 = vmatpush.bf16.msra.mxu0 %v1338
        %1352 = vmatpush.bf16.msra.mxu0 %v1337
        %1353 = vmatmul.bf16.gmra.mxu0 %v914
        %v1354 = vpop.f32.mrf.mxu0
        %v1355 = vadd.f32 %v1277, %v1354
        %v1356 = vpop.f32.mrf.mxu0
        %1357 = vdwg.mxu0
        %v1366 = vunpack.c.l.b16 %v1252
        %v1367 = vunpack.c.l.b16 %v1253
        %v1368 = vunpack.c.l.b16 %v1254
        %v1369 = vunpack.c.l.b16 %v1255
        %v1370 = vunpack.c.l.b16 %v1256
        %v1371 = vunpack.c.l.b16 %v1257
        %v1372 = vunpack.c.l.b16 %v1258
        %v1373 = vunpack.c.l.b16 %v1259
        %v1374 = vpack.c.b16 %v1367, %v1366
        %v1375 = vpack.c.b16 %v1369, %v1368
        %v1376 = vpack.c.b16 %v1371, %v1370
        %v1377 = vpack.c.b16 %v1373, %v1372
        %1382 = vmatpush.bf16.msra.mxu0 0
        %1383 = vmatpush.bf16.msra.mxu0 0
        %1384 = vmatpush.bf16.msra.mxu0 0
        %1385 = vmatpush.bf16.msra.mxu0 0
        %1386 = vmatpush.bf16.msra.mxu0 %v1377
        %1387 = vmatpush.bf16.msra.mxu0 %v1376
        %1388 = vmatpush.bf16.msra.mxu0 %v1375
        %1389 = vmatpush.bf16.msra.mxu0 %v1374
        %1390 = vmatmul.bf16.gmra.mxu0 %v914
        %v1391 = vpop.f32.mrf.mxu0
        %v1392 = vadd.f32 %v1278, %v1391
        %v1393 = vpop.f32.mrf.mxu0
        %1394 = vdwg.mxu0
        %v1403 = vunpack.c.l.b16 %v1260
        %v1404 = vunpack.c.l.b16 %v1261
        %v1405 = vunpack.c.l.b16 %v1262
        %v1406 = vunpack.c.l.b16 %v1263
        %v1407 = vunpack.c.l.b16 %v1264
        %v1408 = vunpack.c.l.b16 %v1265
        %v1409 = vunpack.c.l.b16 %v1266
        %v1410 = vunpack.c.l.b16 %v1267
        %v1411 = vpack.c.b16 %v1404, %v1403
        %v1412 = vpack.c.b16 %v1406, %v1405
        %v1413 = vpack.c.b16 %v1408, %v1407
        %v1414 = vpack.c.b16 %v1410, %v1409
        %1419 = vmatpush.bf16.msra.mxu0 0
        %1420 = vmatpush.bf16.msra.mxu0 0
        %1421 = vmatpush.bf16.msra.mxu0 0
        %1422 = vmatpush.bf16.msra.mxu0 0
        %1423 = vmatpush.bf16.msra.mxu0 %v1414
        %1424 = vmatpush.bf16.msra.mxu0 %v1413
        %1425 = vmatpush.bf16.msra.mxu0 %v1412
        %1426 = vmatpush.bf16.msra.mxu0 %v1411
        %1427 = vmatmul.bf16.gmra.mxu0 %v914
        %v1428 = vpop.f32.mrf.mxu0
        %v1429 = vadd.f32 %v1279, %v1428
        %v1430 = vpop.f32.mrf.mxu0
        %1431 = vdwg.mxu0
        %v1432 = vpack.c.bf16 %v926, %v926
        %v1433 = vpack.c.bf16 %v963, %v963
        %v1434 = vpack.c.bf16 %v1000, %v1000
        %v1435 = vpack.c.bf16 %v1037, %v1037
        %v1436 = vpack.c.bf16 %v1122, %v1122
        %v1437 = vpack.c.bf16 %v1159, %v1159
        %v1438 = vpack.c.bf16 %v1196, %v1196
        %v1439 = vpack.c.bf16 %v1233, %v1233
        %vm1440 = vcmask 130048
        %v1442 = vsel %vm1440, %v1432, 0
        %v1445 = vsel %vm1440, %v1436, 0
        %1447 = vmatpush.bf16.xpose.msra.mxu0 0
        %1448 = vmatpush.bf16.xpose.msra.mxu0 0
        %1449 = vmatpush.bf16.xpose.msra.mxu0 0
        %1450 = vmatpush.bf16.xpose.msra.mxu0 0
        %1451 = vmatpush.bf16.xpose.msra.mxu0 0
        %1452 = vmatpush.bf16.xpose.msra.mxu0 0
        %1453 = vmatpush.bf16.xpose.msra.mxu0 0
        %1454 = vmatpush.bf16.xpose.msra.mxu0 %v1445
        %1455 = vmatmul.bf16.gmra.mxu0 %v1442
        %v1456 = vpop.f32.mrf.mxu0
        %v1457 = vadd.f32 0.0, %v1456
        %v1458 = vpop.f32.mrf.mxu0
        %1459 = vdwg.mxu0
        %v1461 = vsel %vm1440, %v1433, 0
        %v1464 = vsel %vm1440, %v1437, 0
        %1466 = vmatpush.bf16.xpose.msra.mxu0 0
        %1467 = vmatpush.bf16.xpose.msra.mxu0 0
        %1468 = vmatpush.bf16.xpose.msra.mxu0 0
        %1469 = vmatpush.bf16.xpose.msra.mxu0 0
        %1470 = vmatpush.bf16.xpose.msra.mxu0 0
        %1471 = vmatpush.bf16.xpose.msra.mxu0 0
        %1472 = vmatpush.bf16.xpose.msra.mxu0 0
        %1473 = vmatpush.bf16.xpose.msra.mxu0 %v1464
        %1474 = vmatmul.bf16.gmra.mxu0 %v1461
        %v1475 = vpop.f32.mrf.mxu0
        %v1476 = vadd.f32 0.0, %v1475
        %v1477 = vpop.f32.mrf.mxu0
        %1478 = vdwg.mxu0
        %v1480 = vsel %vm1440, %v1434, 0
        %v1483 = vsel %vm1440, %v1438, 0
        %1485 = vmatpush.bf16.xpose.msra.mxu0 0
        %1486 = vmatpush.bf16.xpose.msra.mxu0 0
        %1487 = vmatpush.bf16.xpose.msra.mxu0 0
        %1488 = vmatpush.bf16.xpose.msra.mxu0 0
        %1489 = vmatpush.bf16.xpose.msra.mxu0 0
        %1490 = vmatpush.bf16.xpose.msra.mxu0 0
        %1491 = vmatpush.bf16.xpose.msra.mxu0 0
        %1492 = vmatpush.bf16.xpose.msra.mxu0 %v1483
        %1493 = vmatmul.bf16.gmra.mxu0 %v1480
        %v1494 = vpop.f32.mrf.mxu0
        %v1495 = vadd.f32 0.0, %v1494
        %v1496 = vpop.f32.mrf.mxu0
        %1497 = vdwg.mxu0
        %v1499 = vsel %vm1440, %v1435, 0
        %v1502 = vsel %vm1440, %v1439, 0
        %1504 = vmatpush.bf16.xpose.msra.mxu0 0
        %1505 = vmatpush.bf16.xpose.msra.mxu0 0
        %1506 = vmatpush.bf16.xpose.msra.mxu0 0
        %1507 = vmatpush.bf16.xpose.msra.mxu0 0
        %1508 = vmatpush.bf16.xpose.msra.mxu0 0
        %1509 = vmatpush.bf16.xpose.msra.mxu0 0
        %1510 = vmatpush.bf16.xpose.msra.mxu0 0
        %1511 = vmatpush.bf16.xpose.msra.mxu0 %v1502
        %1512 = vmatmul.bf16.gmra.mxu0 %v1499
        %v1513 = vpop.f32.mrf.mxu0
        %v1514 = vadd.f32 0.0, %v1513
        %v1515 = vpop.f32.mrf.mxu0
        %1516 = vdwg.mxu0
        %vm1517 = vcmask 64512
        %v1518 = vsel %vm1517, %v1457, -inf
        %1519 = vmax.xlane.f32.xlu0 %v1518
        %v1520 = vpop.xlane.xlu0 %1519
        %v1521 = vsel %vm1517, %v1476, -inf
        %1522 = vmax.xlane.f32.xlu0 %v1521
        %v1523 = vpop.xlane.xlu0 %1522
        %v1524 = vsel %vm1517, %v1495, -inf
        %1525 = vmax.xlane.f32.xlu0 %v1524
        %v1526 = vpop.xlane.xlu0 %1525
        %v1527 = vsel %vm1517, %v1514, -inf
        %1528 = vmax.xlane.f32.xlu0 %v1527
        %v1529 = vpop.xlane.xlu0 %1528
        %v1530 = vsub.f32 %v1457, %v1520
        %v1531 = vsub.f32 %v1476, %v1523
        %v1532 = vsub.f32 %v1495, %v1526
        %v1533 = vsub.f32 %v1514, %v1529
        %v1534 = vmul.f32 %v1530, 1.442695
        %v1535 = vpow.pop %v1534
        %v1536 = vmul.f32 %v1531, 1.442695
        %v1537 = vpow.pop %v1536
        %v1538 = vmul.f32 %v1532, 1.442695
        %v1539 = vpow.pop %v1538
        %v1540 = vmul.f32 %v1533, 1.442695
        %v1541 = vpow.pop %v1540
        %v1542 = vsel %vm1517, %v1535, 0.0
        %1543 = vadd.xlane.f32.xlu0 %v1542
        %v1544 = vpop.xlane.xlu0 %1543
        %v1545 = vsel %vm1517, %v1537, 0.0
        %1546 = vadd.xlane.f32.xlu0 %v1545
        %v1547 = vpop.xlane.xlu0 %1546
        %v1548 = vsel %vm1517, %v1539, 0.0
        %1549 = vadd.xlane.f32.xlu0 %v1548
        %v1550 = vpop.xlane.xlu0 %1549
        %v1551 = vsel %vm1517, %v1541, 0.0
        %1552 = vadd.xlane.f32.xlu0 %v1551
        %v1553 = vpop.xlane.xlu0 %1552
        %v1554 = vrcp.pop %v1544
        %v1555 = vmul.f32 %v1544, %v1554
        %v1556 = vsub.f32 1.0, %v1555
        %v1557 = vmul.f32 %v1554, %v1556
        %v1558 = vadd.f32 %v1554, %v1557
        %vm1559 = vweird.f32 %v1544
        %vm1560 = vweird.f32 %v1554
        %vm1561 = vmor %vm1559, %vm1560
        %v1562 = vsel %vm1561, %v1554, %v1558
        %v1563 = vand.u32 2147483647, %v1544
        %vm1564 = vcmp.eq.f32.partialorder %v1563, 8.507059e+37
        %v1565 = vand.u32 %v1544, 2147483648
        %v1566 = vor.u32 1.1754944e-38, %v1565
        %v1567 = vsel %vm1564, %v1566, %v1562
        %v1568 = vmul.f32 %v1535, %v1567
        %v1569 = vrcp.pop %v1547
        %v1570 = vmul.f32 %v1547, %v1569
        %v1571 = vsub.f32 1.0, %v1570
        %v1572 = vmul.f32 %v1569, %v1571
        %v1573 = vadd.f32 %v1569, %v1572
        %vm1574 = vweird.f32 %v1547
        %vm1575 = vweird.f32 %v1569
        %vm1576 = vmor %vm1574, %vm1575
        %v1577 = vsel %vm1576, %v1569, %v1573
        %v1578 = vand.u32 2147483647, %v1547
        %vm1579 = vcmp.eq.f32.partialorder %v1578, 8.507059e+37
        %v1580 = vand.u32 %v1547, 2147483648
        %v1581 = vor.u32 1.1754944e-38, %v1580
        %v1582 = vsel %vm1579, %v1581, %v1577
        %v1583 = vmul.f32 %v1537, %v1582
        %v1584 = vrcp.pop %v1550
        %v1585 = vmul.f32 %v1550, %v1584
        %v1586 = vsub.f32 1.0, %v1585
        %v1587 = vmul.f32 %v1584, %v1586
        %v1588 = vadd.f32 %v1584, %v1587
        %vm1589 = vweird.f32 %v1550
        %vm1590 = vweird.f32 %v1584
        %vm1591 = vmor %vm1589, %vm1590
        %v1592 = vsel %vm1591, %v1584, %v1588
        %v1593 = vand.u32 2147483647, %v1550
        %vm1594 = vcmp.eq.f32.partialorder %v1593, 8.507059e+37
        %v1595 = vand.u32 %v1550, 2147483648
        %v1596 = vor.u32 1.1754944e-38, %v1595
        %v1597 = vsel %vm1594, %v1596, %v1592
        %v1598 = vmul.f32 %v1539, %v1597
        %v1599 = vrcp.pop %v1553
        %v1600 = vmul.f32 %v1553, %v1599
        %v1601 = vsub.f32 1.0, %v1600
        %v1602 = vmul.f32 %v1599, %v1601
        %v1603 = vadd.f32 %v1599, %v1602
        %vm1604 = vweird.f32 %v1553
        %vm1605 = vweird.f32 %v1599
        %vm1606 = vmor %vm1604, %vm1605
        %v1607 = vsel %vm1606, %v1599, %v1603
        %v1608 = vand.u32 2147483647, %v1553
        %vm1609 = vcmp.eq.f32.partialorder %v1608, 8.507059e+37
        %v1610 = vand.u32 %v1553, 2147483648
        %v1611 = vor.u32 1.1754944e-38, %v1610
        %v1612 = vsel %vm1609, %v1611, %v1607
        %v1613 = vmul.f32 %v1541, %v1612
        %v1614 = vpack.c.bf16 %v1568, %v1568
        %v1615 = vpack.c.bf16 %v1583, %v1583
        %v1616 = vpack.c.bf16 %v1598, %v1598
        %v1617 = vpack.c.bf16 %v1613, %v1613
        %v1618 = vpack.c.bf16 %v1318, %v1318
        %v1619 = vpack.c.bf16 %v1355, %v1355
        %v1620 = vpack.c.bf16 %v1392, %v1392
        %v1621 = vpack.c.bf16 %v1429, %v1429
        %v1623 = vsel %vm1517, %v1614, 0
        %vm1625 = vcmask 1043456
        %v1627 = vsel %vm1625, %v1618, 0
        %1629 = vmatpush.bf16.msra.mxu0 0
        %1630 = vmatpush.bf16.msra.mxu0 0
        %1631 = vmatpush.bf16.msra.mxu0 0
        %1632 = vmatpush.bf16.msra.mxu0 0
        %1633 = vmatpush.bf16.msra.mxu0 0
        %1634 = vmatpush.bf16.msra.mxu0 0
        %1635 = vmatpush.bf16.msra.mxu0 0
        %1636 = vmatpush.bf16.msra.mxu0 %v1627
        %1637 = vmatmul.bf16.gmra.mxu0 %v1623
        %v1638 = vpop.f32.mrf.mxu0
        %v1639 = vadd.f32 0.0, %v1638
        %v1640 = vpop.f32.mrf.mxu0
        %1641 = vdwg.mxu0
        %v1643 = vsel %vm1517, %v1615, 0
        %v1646 = vsel %vm1625, %v1619, 0
        %1648 = vmatpush.bf16.msra.mxu0 0
        %1649 = vmatpush.bf16.msra.mxu0 0
        %1650 = vmatpush.bf16.msra.mxu0 0
        %1651 = vmatpush.bf16.msra.mxu0 0
        %1652 = vmatpush.bf16.msra.mxu0 0
        %1653 = vmatpush.bf16.msra.mxu0 0
        %1654 = vmatpush.bf16.msra.mxu0 0
        %1655 = vmatpush.bf16.msra.mxu0 %v1646
        %1656 = vmatmul.bf16.gmra.mxu0 %v1643
        %v1657 = vpop.f32.mrf.mxu0
        %v1658 = vadd.f32 0.0, %v1657
        %v1659 = vpop.f32.mrf.mxu0
        %1660 = vdwg.mxu0
        %v1662 = vsel %vm1517, %v1616, 0
        %v1665 = vsel %vm1625, %v1620, 0
        %1667 = vmatpush.bf16.msra.mxu0 0
        %1668 = vmatpush.bf16.msra.mxu0 0
        %1669 = vmatpush.bf16.msra.mxu0 0
        %1670 = vmatpush.bf16.msra.mxu0 0
        %1671 = vmatpush.bf16.msra.mxu0 0
        %1672 = vmatpush.bf16.msra.mxu0 0
        %1673 = vmatpush.bf16.msra.mxu0 0
        %1674 = vmatpush.bf16.msra.mxu0 %v1665
        %1675 = vmatmul.bf16.gmra.mxu0 %v1662
        %v1676 = vpop.f32.mrf.mxu0
        %v1677 = vadd.f32 0.0, %v1676
        %v1678 = vpop.f32.mrf.mxu0
        %1679 = vdwg.mxu0
        %v1681 = vsel %vm1517, %v1617, 0
        %v1684 = vsel %vm1625, %v1621, 0
        %1686 = vmatpush.bf16.msra.mxu0 0
        %1687 = vmatpush.bf16.msra.mxu0 0
        %1688 = vmatpush.bf16.msra.mxu0 0
        %1689 = vmatpush.bf16.msra.mxu0 0
        %1690 = vmatpush.bf16.msra.mxu0 0
        %1691 = vmatpush.bf16.msra.mxu0 0
        %1692 = vmatpush.bf16.msra.mxu0 0
        %1693 = vmatpush.bf16.msra.mxu0 %v1684
        %1694 = vmatmul.bf16.gmra.mxu0 %v1681
        %v1695 = vpop.f32.mrf.mxu0
        %v1696 = vadd.f32 0.0, %v1695
        %v1697 = vpop.f32.mrf.mxu0
        %1698 = vdwg.mxu0
        %v1699 = vpack.c.bf16 %v1639, %v1639
        %v1700 = vpack.c.bf16 %v1658, %v1658
        %v1701 = vpack.c.bf16 %v1677, %v1677
        %v1702 = vpack.c.bf16 %v1696, %v1696
        %v1703 = vld [vmem:[%s9] sm:$0xf]
        %v1704 = vld [vmem:[%s9 + $0x4] sm:$0xf]
        %v1705 = vld [vmem:[%s9 + $0x8] sm:$0xf]
        %v1706 = vld [vmem:[%s9 + $0xc] sm:$0xf]
        %v1707 = vld [vmem:[%s9 + $0x10] sm:$0xf]
        %v1708 = vld [vmem:[%s9 + $0x14] sm:$0xf]
        %v1709 = vld [vmem:[%s9 + $0x18] sm:$0xf]
        %v1710 = vld [vmem:[%s9 + $0x1c] sm:$0xf]
        %v1713 = vunpack.c.l.b16 %v1703
        %v1714 = vunpack.c.l.b16 %v1704
        %v1715 = vpack.c.b16 %v1714, %v1713
        %v1718 = vsel %vm1440, %v1699, 0
        %1720 = vmatpush.bf16.msra.mxu0 0
        %1721 = vmatpush.bf16.msra.mxu0 0
        %1722 = vmatpush.bf16.msra.mxu0 0
        %1723 = vmatpush.bf16.msra.mxu0 0
        %1724 = vmatpush.bf16.msra.mxu0 0
        %1725 = vmatpush.bf16.msra.mxu0 0
        %1726 = vmatpush.bf16.msra.mxu0 0
        %1727 = vmatpush.bf16.msra.mxu0 %v1715
        %1728 = vmatmul.bf16.gmra.mxu0 %v1718
        %v1729 = vpop.f32.mrf.mxu0
        %v1730 = vadd.f32 0.0, %v1729
        %v1731 = vpop.f32.mrf.mxu0
        %1732 = vdwg.mxu0
        %v1735 = vunpack.c.l.b16 %v1705
        %v1736 = vunpack.c.l.b16 %v1706
        %v1737 = vpack.c.b16 %v1736, %v1735
        %v1740 = vsel %vm1440, %v1700, 0
        %1742 = vmatpush.bf16.msra.mxu0 0
        %1743 = vmatpush.bf16.msra.mxu0 0
        %1744 = vmatpush.bf16.msra.mxu0 0
        %1745 = vmatpush.bf16.msra.mxu0 0
        %1746 = vmatpush.bf16.msra.mxu0 0
        %1747 = vmatpush.bf16.msra.mxu0 0
        %1748 = vmatpush.bf16.msra.mxu0 0
        %1749 = vmatpush.bf16.msra.mxu0 %v1737
        %1750 = vmatmul.bf16.gmra.mxu0 %v1740
        %v1751 = vpop.f32.mrf.mxu0
        %v1752 = vadd.f32 0.0, %v1751
        %v1753 = vpop.f32.mrf.mxu0
        %1754 = vdwg.mxu0
        %v1757 = vunpack.c.l.b16 %v1707
        %v1758 = vunpack.c.l.b16 %v1708
        %v1759 = vpack.c.b16 %v1758, %v1757
        %v1762 = vsel %vm1440, %v1701, 0
        %1764 = vmatpush.bf16.msra.mxu0 0
        %1765 = vmatpush.bf16.msra.mxu0 0
        %1766 = vmatpush.bf16.msra.mxu0 0
        %1767 = vmatpush.bf16.msra.mxu0 0
        %1768 = vmatpush.bf16.msra.mxu0 0
        %1769 = vmatpush.bf16.msra.mxu0 0
        %1770 = vmatpush.bf16.msra.mxu0 0
        %1771 = vmatpush.bf16.msra.mxu0 %v1759
        %1772 = vmatmul.bf16.gmra.mxu0 %v1762
        %v1773 = vpop.f32.mrf.mxu0
        %v1774 = vadd.f32 0.0, %v1773
        %v1775 = vpop.f32.mrf.mxu0
        %1776 = vdwg.mxu0
        %v1779 = vunpack.c.l.b16 %v1709
        %v1780 = vunpack.c.l.b16 %v1710
        %v1781 = vpack.c.b16 %v1780, %v1779
        %v1784 = vsel %vm1440, %v1702, 0
        %1786 = vmatpush.bf16.msra.mxu0 0
        %1787 = vmatpush.bf16.msra.mxu0 0
        %1788 = vmatpush.bf16.msra.mxu0 0
        %1789 = vmatpush.bf16.msra.mxu0 0
        %1790 = vmatpush.bf16.msra.mxu0 0
        %1791 = vmatpush.bf16.msra.mxu0 0
        %1792 = vmatpush.bf16.msra.mxu0 0
        %1793 = vmatpush.bf16.msra.mxu0 %v1781
        %1794 = vmatmul.bf16.gmra.mxu0 %v1784
        %v1795 = vpop.f32.mrf.mxu0
        %v1796 = vadd.f32 0.0, %v1795
        %v1797 = vpop.f32.mrf.mxu0
        %1798 = vdwg.mxu0
        %v1799 = vsel %vm802, %v1730, 0.0
        %v1800 = vsel %vm802, %v1752, 0.0
        %v1801 = vadd.f32 %v1799, %v1800
        %v1802 = vsel %vm802, %v1774, 0.0
        %v1803 = vadd.f32 %v1801, %v1802
        %v1804 = vsel %vm802, %v1796, 0.0
        %v1805 = vadd.f32 %v1803, %v1804
        %v1806 = vld [vmem:[%s10] sm:$0x1]
        %v1808 = vperm.slane %v1806, 0
        %v1810 = vadd.f32 %v1805, %v1808
        %v1811 = vadd.f32 %v1810, %v839
        %v1812 = vld [vmem:[%s11] sm:$0x1]
        %v1813 = vld [vmem:[%s12] sm:$0x1]
        %v1814 = vsel %vm802, %v1811, 0.0
        %1815 = vadd.xlane.f32.xlu0 %v1814
        %v1816 = vpop.xlane.xlu0 %1815
        %v1817 = vmul.f32 %v1816, %v812
        %v1818 = vsub.f32 %v1811, %v1817
        %v1819 = vmul.f32 %v1818, %v1818
        %v1820 = vsel %vm802, %v1819, 0.0
        %1821 = vadd.xlane.f32.xlu0 %v1820
        %v1822 = vpop.xlane.xlu0 %1821
        %v1823 = vmul.f32 %v1822, %v812
        %v1824 = vadd.f32 %v1823, 1e-05
        %v1825 = vrsqrt.pop %v1824
        %v1826 = vmul.f32 %v1825, %v1824
        %v1827 = vmul.f32 %v1826, %v1825
        %v1828 = vmul.f32 0.5, %v1827
        %v1829 = vsub.f32 1.5, %v1828
        %v1830 = vmul.f32 %v1825, %v1829
        %vm1831 = vweird.f32 %v1824
        %vm1832 = vweird.f32 %v1825
        %vm1833 = vmor %vm1831, %vm1832
        %v1834 = vsel %vm1833, %v1825, %v1830
        %v1835 = vmul.f32 %v1818, %v1834
        %v1837 = vperm.slane %v1812, 0
        %v1839 = vmul.f32 %v1835, %v1837
        %v1841 = vperm.slane %v1813, 0
        %v1843 = vadd.f32 %v1839, %v1841
        %v1844 = vpack.c.bf16 %v1843, %v1843
        %v1845 = vld [vmem:[%s13] sm:$0xff]
        %v1846 = vld [vmem:[%s13 + $0x8] sm:$0xff]
        %v1847 = vld [vmem:[%s13 + $0x10] sm:$0xff]
        %v1848 = vld [vmem:[%s13 + $0x18] sm:$0xff]
        %v1849 = vld [vmem:[%s13 + $0x20] sm:$0xff]
        %v1850 = vld [vmem:[%s13 + $0x28] sm:$0xff]
        %v1851 = vld [vmem:[%s13 + $0x30] sm:$0xff]
        %v1852 = vld [vmem:[%s13 + $0x38] sm:$0xff]
        %v1853 = vld [vmem:[%s14] sm:$0x3]
        %v1855 = vperm.slane %v1853, 0
        %v1856 = vperm.slane %v1853, 1
        %v1867 = vunpack.c.l.b16 %v1845
        %v1868 = vunpack.c.h.b16 %v1845
        %v1869 = vunpack.c.l.b16 %v1846
        %v1870 = vunpack.c.h.b16 %v1846
        %v1871 = vunpack.c.l.b16 %v1847
        %v1872 = vunpack.c.h.b16 %v1847
        %v1873 = vunpack.c.l.b16 %v1848
        %v1874 = vunpack.c.h.b16 %v1848
        %v1875 = vunpack.c.l.b16 %v1849
        %v1876 = vunpack.c.h.b16 %v1849
        %v1877 = vunpack.c.l.b16 %v1850
        %v1878 = vunpack.c.h.b16 %v1850
        %v1879 = vunpack.c.l.b16 %v1851
        %v1880 = vunpack.c.h.b16 %v1851
        %v1881 = vunpack.c.l.b16 %v1852
        %v1882 = vunpack.c.h.b16 %v1852
        %v1883 = vpack.c.b16 %v1869, %v1867
        %v1884 = vpack.c.b16 %v1870, %v1868
        %v1885 = vpack.c.b16 %v1873, %v1871
        %v1886 = vpack.c.b16 %v1874, %v1872
        %v1887 = vpack.c.b16 %v1877, %v1875
        %v1888 = vpack.c.b16 %v1878, %v1876
        %v1889 = vpack.c.b16 %v1881, %v1879
        %v1890 = vpack.c.b16 %v1882, %v1880
        %v1900 = vsel %vm802, %v1844, 0
        %1902 = vmatpush.bf16.msra.mxu0 0
        %1903 = vmatpush.bf16.msra.mxu0 0
        %1904 = vmatpush.bf16.msra.mxu0 0
        %1905 = vmatpush.bf16.msra.mxu0 0
        %1906 = vmatpush.bf16.msra.mxu0 %v1889
        %1907 = vmatpush.bf16.msra.mxu0 %v1887
        %1908 = vmatpush.bf16.msra.mxu0 %v1885
        %1909 = vmatpush.bf16.msra.mxu0 %v1883
        %1910 = vmatmul.bf16.gmra.mxu0 %v1900
        %v1911 = vpop.f32.mrf.mxu0
        %v1912 = vadd.f32 %v1855, %v1911
        %v1913 = vpop.f32.mrf.mxu0
        %1914 = vdwg.mxu0
        %1915 = vmatpush.bf16.msra.mxu0 0
        %1916 = vmatpush.bf16.msra.mxu0 0
        %1917 = vmatpush.bf16.msra.mxu0 0
        %1918 = vmatpush.bf16.msra.mxu0 0
        %1919 = vmatpush.bf16.msra.mxu0 %v1890
        %1920 = vmatpush.bf16.msra.mxu0 %v1888
        %1921 = vmatpush.bf16.msra.mxu0 %v1886
        %1922 = vmatpush.bf16.msra.mxu0 %v1884
        %1923 = vmatmul.bf16.gmra.mxu0 %v1900
        %v1924 = vpop.f32.mrf.mxu0
        %v1925 = vadd.f32 %v1856, %v1924
        %v1926 = vpop.f32.mrf.mxu0
        %1927 = vdwg.mxu0
        %v1928 = vmul.f32 %v1912, 0.5
        %v1929 = vmul.f32 %v1925, 0.5
        %v1930 = vmul.f32 %v1912, 0.044715
        %v1931 = vmul.f32 %v1925, 0.044715
        %v1932 = vmul.f32 %v1930, %v1912
        %v1933 = vmul.f32 %v1931, %v1925
        %v1934 = vmul.f32 %v1932, %v1912
        %v1935 = vmul.f32 %v1933, %v1925
        %v1936 = vadd.f32 %v1912, %v1934
        %v1937 = vadd.f32 %v1925, %v1935
        %v1938 = vmul.f32 %v1936, 0.7978846
        %v1939 = vmul.f32 %v1937, 0.7978846
        %v1940 = vtanh.pop %v1938
        %v1941 = vtanh.pop %v1939
        %v1942 = vadd.f32 %v1940, 1.0
        %v1943 = vadd.f32 %v1941, 1.0
        %v1944 = vmul.f32 %v1928, %v1942
        %v1945 = vmul.f32 %v1929, %v1943
        %v1946 = vpack.c.bf16 %v1944, %v1944
        %v1947 = vpack.c.bf16 %v1945, %v1945
        %v1948 = vld [vmem:[%s15] sm:$0xf]
        %v1949 = vld [vmem:[%s15 + $0x4] sm:$0xf]
        %v1950 = vld [vmem:[%s15 + $0x8] sm:$0xf]
        %v1951 = vld [vmem:[%s15 + $0xc] sm:$0xf]
        %v1952 = vld [vmem:[%s15 + $0x10] sm:$0xf]
        %v1953 = vld [vmem:[%s15 + $0x14] sm:$0xf]
        %v1954 = vld [vmem:[%s15 + $0x18] sm:$0xf]
        %v1955 = vld [vmem:[%s15 + $0x1c] sm:$0xf]
        %v1956 = vld [vmem:[%s15 + $0x20] sm:$0xf]
        %v1957 = vld [vmem:[%s15 + $0x24] sm:$0xf]
        %v1958 = vld [vmem:[%s15 + $0x28] sm:$0xf]
        %v1959 = vld [vmem:[%s15 + $0x2c] sm:$0xf]
        %v1960 = vld [vmem:[%s15 + $0x30] sm:$0xf]
        %v1961 = vld [vmem:[%s15 + $0x34] sm:$0xf]
        %v1962 = vld [vmem:[%s15 + $0x38] sm:$0xf]
        %v1963 = vld [vmem:[%s15 + $0x3c] sm:$0xf]
        %v1964 = vld [vmem:[%s15 + $0x40] sm:$0xf]
        %v1965 = vld [vmem:[%s15 + $0x44] sm:$0xf]
        %v1966 = vld [vmem:[%s15 + $0x48] sm:$0xf]
        %v1967 = vld [vmem:[%s15 + $0x4c] sm:$0xf]
        %v1968 = vld [vmem:[%s15 + $0x50] sm:$0xf]
        %v1969 = vld [vmem:[%s15 + $0x54] sm:$0xf]
        %v1970 = vld [vmem:[%s15 + $0x58] sm:$0xf]
        %v1971 = vld [vmem:[%s15 + $0x5c] sm:$0xf]
        %v1972 = vld [vmem:[%s15 + $0x60] sm:$0xf]
        %v1973 = vld [vmem:[%s15 + $0x64] sm:$0xf]
        %v1974 = vld [vmem:[%s15 + $0x68] sm:$0xf]
        %v1975 = vld [vmem:[%s15 + $0x6c] sm:$0xf]
        %v1976 = vld [vmem:[%s15 + $0x70] sm:$0xf]
        %v1977 = vld [vmem:[%s15 + $0x74] sm:$0xf]
        %v1978 = vld [vmem:[%s15 + $0x78] sm:$0xf]
        %v1979 = vld [vmem:[%s15 + $0x7c] sm:$0xf]
        %v1980 = vld [vmem:[%s16] sm:$0x1]
        %v1982 = vperm.slane %v1980, 0
        %v2016 = vunpack.c.l.b16 %v1948
        %v2017 = vunpack.c.l.b16 %v1949
        %v2018 = vunpack.c.l.b16 %v1950
        %v2019 = vunpack.c.l.b16 %v1951
        %v2020 = vunpack.c.l.b16 %v1952
        %v2021 = vunpack.c.l.b16 %v1953
        %v2022 = vunpack.c.l.b16 %v1954
        %v2023 = vunpack.c.l.b16 %v1955
        %v2024 = vunpack.c.l.b16 %v1956
        %v2025 = vunpack.c.l.b16 %v1957
        %v2026 = vunpack.c.l.b16 %v1958
        %v2027 = vunpack.c.l.b16 %v1959
        %v2028 = vunpack.c.l.b16 %v1960
        %v2029 = vunpack.c.l.b16 %v1961
        %v2030 = vunpack.c.l.b16 %v1962
        %v2031 = vunpack.c.l.b16 %v1963
        %v2032 = vunpack.c.l.b16 %v1964
        %v2033 = vunpack.c.l.b16 %v1965
        %v2034 = vunpack.c.l.b16 %v1966
        %v2035 = vunpack.c.l.b16 %v1967
        %v2036 = vunpack.c.l.b16 %v1968
        %v2037 = vunpack.c.l.b16 %v1969
        %v2038 = vunpack.c.l.b16 %v1970
        %v2039 = vunpack.c.l.b16 %v1971
        %v2040 = vunpack.c.l.b16 %v1972
        %v2041 = vunpack.c.l.b16 %v1973
        %v2042 = vunpack.c.l.b16 %v1974
        %v2043 = vunpack.c.l.b16 %v1975
        %v2044 = vunpack.c.l.b16 %v1976
        %v2045 = vunpack.c.l.b16 %v1977
        %v2046 = vunpack.c.l.b16 %v1978
        %v2047 = vunpack.c.l.b16 %v1979
        %v2048 = vpack.c.b16 %v2017, %v2016
        %v2049 = vpack.c.b16 %v2019, %v2018
        %v2050 = vpack.c.b16 %v2021, %v2020
        %v2051 = vpack.c.b16 %v2023, %v2022
        %v2052 = vpack.c.b16 %v2025, %v2024
        %v2053 = vpack.c.b16 %v2027, %v2026
        %v2054 = vpack.c.b16 %v2029, %v2028
        %v2055 = vpack.c.b16 %v2031, %v2030
        %v2056 = vpack.c.b16 %v2033, %v2032
        %v2057 = vpack.c.b16 %v2035, %v2034
        %v2058 = vpack.c.b16 %v2037, %v2036
        %v2059 = vpack.c.b16 %v2039, %v2038
        %v2060 = vpack.c.b16 %v2041, %v2040
        %v2061 = vpack.c.b16 %v2043, %v2042
        %v2062 = vpack.c.b16 %v2045, %v2044
        %v2063 = vpack.c.b16 %v2047, %v2046
        %2080 = vmatpush.bf16.msra.mxu0 %v2055
        %2081 = vmatpush.bf16.msra.mxu0 %v2054
        %2082 = vmatpush.bf16.msra.mxu0 %v2053
        %2083 = vmatpush.bf16.msra.mxu0 %v2052
        %2084 = vmatpush.bf16.msra.mxu0 %v2051
        %2085 = vmatpush.bf16.msra.mxu0 %v2050
        %2086 = vmatpush.bf16.msra.mxu0 %v2049
        %2087 = vmatpush.bf16.msra.mxu0 %v2048
        %2088 = vmatmul.bf16.gmra.mxu0 %v1946
        %v2089 = vpop.f32.mrf.mxu0
        %v2090 = vadd.f32 %v1982, %v2089
        %v2091 = vpop.f32.mrf.mxu0
        %2092 = vdwg.mxu0
        %2093 = vmatpush.bf16.msra.mxu0 %v2063
        %2094 = vmatpush.bf16.msra.mxu0 %v2062
        %2095 = vmatpush.bf16.msra.mxu0 %v2061
        %2096 = vmatpush.bf16.msra.mxu0 %v2060
        %2097 = vmatpush.bf16.msra.mxu0 %v2059
        %2098 = vmatpush.bf16.msra.mxu0 %v2058
        %2099 = vmatpush.bf16.msra.mxu0 %v2057
        %2100 = vmatpush.bf16.msra.mxu0 %v2056
        %2101 = vmatmul.bf16.gmra.mxu0 %v1947
        %v2102 = vpop.f32.mrf.mxu0
        %v2103 = vadd.f32 %v2090, %v2102
        %v2104 = vpop.f32.mrf.mxu0
        %2105 = vdwg.mxu0
        %v2106 = vadd.f32 %v2103, %v1843
        %v2107 = vld [vmem:[%s17] sm:$0x1]
        %v2108 = vld [vmem:[%s18] sm:$0x1]
        %v2109 = vsel %vm802, %v2106, 0.0
        %2110 = vadd.xlane.f32.xlu0 %v2109
        %v2111 = vpop.xlane.xlu0 %2110
        %v2112 = vmul.f32 %v2111, %v812
        %v2113 = vsub.f32 %v2106, %v2112
        %v2114 = vmul.f32 %v2113, %v2113
        %v2115 = vsel %vm802, %v2114, 0.0
        %2116 = vadd.xlane.f32.xlu0 %v2115
        %v2117 = vpop.xlane.xlu0 %2116
        %v2118 = vmul.f32 %v2117, %v812
        %v2119 = vadd.f32 %v2118, 1e-05
        %v2120 = vrsqrt.pop %v2119
        %v2121 = vmul.f32 %v2120, %v2119
        %v2122 = vmul.f32 %v2121, %v2120
        %v2123 = vmul.f32 0.5, %v2122
        %v2124 = vsub.f32 1.5, %v2123
        %v2125 = vmul.f32 %v2120, %v2124
        %vm2126 = vweird.f32 %v2119
        %vm2127 = vweird.f32 %v2120
        %vm2128 = vmor %vm2126, %vm2127
        %v2129 = vsel %vm2128, %v2120, %v2125
        %v2130 = vmul.f32 %v2113, %v2129
        %v2132 = vperm.slane %v2107, 0
        %v2134 = vmul.f32 %v2130, %v2132
        %v2136 = vperm.slane %v2108, 0
        %v2138 = vadd.f32 %v2134, %v2136
        %v2139 = vpack.c.bf16 %v2138, %v2138
        %s2140 = scalar_lea.vmem %s3, 128
        %v2141 = vld [vmem:[%s2140] sm:$0xf]
        %v2142 = vld [vmem:[%s2140 + $0x4] sm:$0xf]
        %v2143 = vld [vmem:[%s2140 + $0x8] sm:$0xf]
        %v2144 = vld [vmem:[%s2140 + $0xc] sm:$0xf]
        %v2145 = vld [vmem:[%s2140 + $0x10] sm:$0xf]
        %v2146 = vld [vmem:[%s2140 + $0x14] sm:$0xf]
        %v2147 = vld [vmem:[%s2140 + $0x18] sm:$0xf]
        %v2148 = vld [vmem:[%s2140 + $0x1c] sm:$0xf]
        %v2149 = vld [vmem:[%s2140 + $0x20] sm:$0xf]
        %v2150 = vld [vmem:[%s2140 + $0x24] sm:$0xf]
        %v2151 = vld [vmem:[%s2140 + $0x28] sm:$0xf]
        %v2152 = vld [vmem:[%s2140 + $0x2c] sm:$0xf]
        %v2153 = vld [vmem:[%s2140 + $0x30] sm:$0xf]
        %v2154 = vld [vmem:[%s2140 + $0x34] sm:$0xf]
        %v2155 = vld [vmem:[%s2140 + $0x38] sm:$0xf]
        %v2156 = vld [vmem:[%s2140 + $0x3c] sm:$0xf]
        %v2157 = vld [vmem:[%s2140 + $0x40] sm:$0xf]
        %v2158 = vld [vmem:[%s2140 + $0x44] sm:$0xf]
        %v2159 = vld [vmem:[%s2140 + $0x48] sm:$0xf]
        %v2160 = vld [vmem:[%s2140 + $0x4c] sm:$0xf]
        %v2161 = vld [vmem:[%s2140 + $0x50] sm:$0xf]
        %v2162 = vld [vmem:[%s2140 + $0x54] sm:$0xf]
        %v2163 = vld [vmem:[%s2140 + $0x58] sm:$0xf]
        %v2164 = vld [vmem:[%s2140 + $0x5c] sm:$0xf]
        %v2165 = vld [vmem:[%s2140 + $0x60] sm:$0xf]
        %v2166 = vld [vmem:[%s2140 + $0x64] sm:$0xf]
        %v2167 = vld [vmem:[%s2140 + $0x68] sm:$0xf]
        %v2168 = vld [vmem:[%s2140 + $0x6c] sm:$0xf]
        %v2169 = vld [vmem:[%s2140 + $0x70] sm:$0xf]
        %v2170 = vld [vmem:[%s2140 + $0x74] sm:$0xf]
        %v2171 = vld [vmem:[%s2140 + $0x78] sm:$0xf]
        %v2172 = vld [vmem:[%s2140 + $0x7c] sm:$0xf]
        %s2173 = scalar_lea.vmem %s6, 4
        %v2174 = vld [vmem:[%s2173] sm:$0x1]
        %v2175 = vld [vmem:[%s2173 + $0x1] sm:$0x1]
        %v2176 = vld [vmem:[%s2173 + $0x2] sm:$0x1]
        %v2177 = vld [vmem:[%s2173 + $0x3] sm:$0x1]
        %v2182 = vperm.slane %v2174, 0
        %v2183 = vperm.slane %v2175, 0
        %v2184 = vperm.slane %v2176, 0
        %v2185 = vperm.slane %v2177, 0
        %v2198 = vunpack.c.l.b16 %v2141
        %v2199 = vunpack.c.l.b16 %v2142
        %v2200 = vunpack.c.l.b16 %v2143
        %v2201 = vunpack.c.l.b16 %v2144
        %v2202 = vunpack.c.l.b16 %v2145
        %v2203 = vunpack.c.l.b16 %v2146
        %v2204 = vunpack.c.l.b16 %v2147
        %v2205 = vunpack.c.l.b16 %v2148
        %v2206 = vpack.c.b16 %v2199, %v2198
        %v2207 = vpack.c.b16 %v2201, %v2200
        %v2208 = vpack.c.b16 %v2203, %v2202
        %v2209 = vpack.c.b16 %v2205, %v2204
        %v2215 = vsel %vm802, %v2139, 0
        %2217 = vmatpush.bf16.msra.mxu0 0
        %2218 = vmatpush.bf16.msra.mxu0 0
        %2219 = vmatpush.bf16.msra.mxu0 0
        %2220 = vmatpush.bf16.msra.mxu0 0
        %2221 = vmatpush.bf16.msra.mxu0 %v2209
        %2222 = vmatpush.bf16.msra.mxu0 %v2208
        %2223 = vmatpush.bf16.msra.mxu0 %v2207
        %2224 = vmatpush.bf16.msra.mxu0 %v2206
        %2225 = vmatmul.bf16.gmra.mxu0 %v2215
        %v2226 = vpop.f32.mrf.mxu0
        %v2227 = vadd.f32 %v2182, %v2226
        %v2228 = vpop.f32.mrf.mxu0
        %2229 = vdwg.mxu0
        %v2238 = vunpack.c.l.b16 %v2149
        %v2239 = vunpack.c.l.b16 %v2150
        %v2240 = vunpack.c.l.b16 %v2151
        %v2241 = vunpack.c.l.b16 %v2152
        %v2242 = vunpack.c.l.b16 %v2153
        %v2243 = vunpack.c.l.b16 %v2154
        %v2244 = vunpack.c.l.b16 %v2155
        %v2245 = vunpack.c.l.b16 %v2156
        %v2246 = vpack.c.b16 %v2239, %v2238
        %v2247 = vpack.c.b16 %v2241, %v2240
        %v2248 = vpack.c.b16 %v2243, %v2242
        %v2249 = vpack.c.b16 %v2245, %v2244
        %2254 = vmatpush.bf16.msra.mxu0 0
        %2255 = vmatpush.bf16.msra.mxu0 0
        %2256 = vmatpush.bf16.msra.mxu0 0
        %2257 = vmatpush.bf16.msra.mxu0 0
        %2258 = vmatpush.bf16.msra.mxu0 %v2249
        %2259 = vmatpush.bf16.msra.mxu0 %v2248
        %2260 = vmatpush.bf16.msra.mxu0 %v2247
        %2261 = vmatpush.bf16.msra.mxu0 %v2246
        %2262 = vmatmul.bf16.gmra.mxu0 %v2215
        %v2263 = vpop.f32.mrf.mxu0
        %v2264 = vadd.f32 %v2183, %v2263
        %v2265 = vpop.f32.mrf.mxu0
        %2266 = vdwg.mxu0
        %v2275 = vunpack.c.l.b16 %v2157
        %v2276 = vunpack.c.l.b16 %v2158
        %v2277 = vunpack.c.l.b16 %v2159
        %v2278 = vunpack.c.l.b16 %v2160
        %v2279 = vunpack.c.l.b16 %v2161
        %v2280 = vunpack.c.l.b16 %v2162
        %v2281 = vunpack.c.l.b16 %v2163
        %v2282 = vunpack.c.l.b16 %v2164
        %v2283 = vpack.c.b16 %v2276, %v2275
        %v2284 = vpack.c.b16 %v2278, %v2277
        %v2285 = vpack.c.b16 %v2280, %v2279
        %v2286 = vpack.c.b16 %v2282, %v2281
        %2291 = vmatpush.bf16.msra.mxu0 0
        %2292 = vmatpush.bf16.msra.mxu0 0
        %2293 = vmatpush.bf16.msra.mxu0 0
        %2294 = vmatpush.bf16.msra.mxu0 0
        %2295 = vmatpush.bf16.msra.mxu0 %v2286
        %2296 = vmatpush.bf16.msra.mxu0 %v2285
        %2297 = vmatpush.bf16.msra.mxu0 %v2284
        %2298 = vmatpush.bf16.msra.mxu0 %v2283
        %2299 = vmatmul.bf16.gmra.mxu0 %v2215
        %v2300 = vpop.f32.mrf.mxu0
        %v2301 = vadd.f32 %v2184, %v2300
        %v2302 = vpop.f32.mrf.mxu0
        %2303 = vdwg.mxu0
        %v2312 = vunpack.c.l.b16 %v2165
        %v2313 = vunpack.c.l.b16 %v2166
        %v2314 = vunpack.c.l.b16 %v2167
        %v2315 = vunpack.c.l.b16 %v2168
        %v2316 = vunpack.c.l.b16 %v2169
        %v2317 = vunpack.c.l.b16 %v2170
        %v2318 = vunpack.c.l.b16 %v2171
        %v2319 = vunpack.c.l.b16 %v2172
        %v2320 = vpack.c.b16 %v2313, %v2312
        %v2321 = vpack.c.b16 %v2315, %v2314
        %v2322 = vpack.c.b16 %v2317, %v2316
        %v2323 = vpack.c.b16 %v2319, %v2318
        %2328 = vmatpush.bf16.msra.mxu0 0
        %2329 = vmatpush.bf16.msra.mxu0 0
        %2330 = vmatpush.bf16.msra.mxu0 0
        %2331 = vmatpush.bf16.msra.mxu0 0
        %2332 = vmatpush.bf16.msra.mxu0 %v2323
        %2333 = vmatpush.bf16.msra.mxu0 %v2322
        %2334 = vmatpush.bf16.msra.mxu0 %v2321
        %2335 = vmatpush.bf16.msra.mxu0 %v2320
        %2336 = vmatmul.bf16.gmra.mxu0 %v2215
        %v2337 = vpop.f32.mrf.mxu0
        %v2338 = vadd.f32 %v2185, %v2337
        %v2339 = vpop.f32.mrf.mxu0
        %2340 = vdwg.mxu0
        %s2341 = scalar_lea.vmem %s4, 128
        %v2342 = vld [vmem:[%s2341] sm:$0xf]
        %v2343 = vld [vmem:[%s2341 + $0x4] sm:$0xf]
        %v2344 = vld [vmem:[%s2341 + $0x8] sm:$0xf]
        %v2345 = vld [vmem:[%s2341 + $0xc] sm:$0xf]
        %v2346 = vld [vmem:[%s2341 + $0x10] sm:$0xf]
        %v2347 = vld [vmem:[%s2341 + $0x14] sm:$0xf]
        %v2348 = vld [vmem:[%s2341 + $0x18] sm:$0xf]
        %v2349 = vld [vmem:[%s2341 + $0x1c] sm:$0xf]
        %v2350 = vld [vmem:[%s2341 + $0x20] sm:$0xf]
        %v2351 = vld [vmem:[%s2341 + $0x24] sm:$0xf]
        %v2352 = vld [vmem:[%s2341 + $0x28] sm:$0xf]
        %v2353 = vld [vmem:[%s2341 + $0x2c] sm:$0xf]
        %v2354 = vld [vmem:[%s2341 + $0x30] sm:$0xf]
        %v2355 = vld [vmem:[%s2341 + $0x34] sm:$0xf]
        %v2356 = vld [vmem:[%s2341 + $0x38] sm:$0xf]
        %v2357 = vld [vmem:[%s2341 + $0x3c] sm:$0xf]
        %v2358 = vld [vmem:[%s2341 + $0x40] sm:$0xf]
        %v2359 = vld [vmem:[%s2341 + $0x44] sm:$0xf]
        %v2360 = vld [vmem:[%s2341 + $0x48] sm:$0xf]
        %v2361 = vld [vmem:[%s2341 + $0x4c] sm:$0xf]
        %v2362 = vld [vmem:[%s2341 + $0x50] sm:$0xf]
        %v2363 = vld [vmem:[%s2341 + $0x54] sm:$0xf]
        %v2364 = vld [vmem:[%s2341 + $0x58] sm:$0xf]
        %v2365 = vld [vmem:[%s2341 + $0x5c] sm:$0xf]
        %v2366 = vld [vmem:[%s2341 + $0x60] sm:$0xf]
        %v2367 = vld [vmem:[%s2341 + $0x64] sm:$0xf]
        %v2368 = vld [vmem:[%s2341 + $0x68] sm:$0xf]
        %v2369 = vld [vmem:[%s2341 + $0x6c] sm:$0xf]
        %v2370 = vld [vmem:[%s2341 + $0x70] sm:$0xf]
        %v2371 = vld [vmem:[%s2341 + $0x74] sm:$0xf]
        %v2372 = vld [vmem:[%s2341 + $0x78] sm:$0xf]
        %v2373 = vld [vmem:[%s2341 + $0x7c] sm:$0xf]
        %s2374 = scalar_lea.vmem %s7, 4
        %v2375 = vld [vmem:[%s2374] sm:$0x1]
        %v2376 = vld [vmem:[%s2374 + $0x1] sm:$0x1]
        %v2377 = vld [vmem:[%s2374 + $0x2] sm:$0x1]
        %v2378 = vld [vmem:[%s2374 + $0x3] sm:$0x1]
        %v2383 = vperm.slane %v2375, 0
        %v2384 = vperm.slane %v2376, 0
        %v2385 = vperm.slane %v2377, 0
        %v2386 = vperm.slane %v2378, 0
        %v2399 = vunpack.c.l.b16 %v2342
        %v2400 = vunpack.c.l.b16 %v2343
        %v2401 = vunpack.c.l.b16 %v2344
        %v2402 = vunpack.c.l.b16 %v2345
        %v2403 = vunpack.c.l.b16 %v2346
        %v2404 = vunpack.c.l.b16 %v2347
        %v2405 = vunpack.c.l.b16 %v2348
        %v2406 = vunpack.c.l.b16 %v2349
        %v2407 = vpack.c.b16 %v2400, %v2399
        %v2408 = vpack.c.b16 %v2402, %v2401
        %v2409 = vpack.c.b16 %v2404, %v2403
        %v2410 = vpack.c.b16 %v2406, %v2405
        %2415 = vmatpush.bf16.msra.mxu0 0
        %2416 = vmatpush.bf16.msra.mxu0 0
        %2417 = vmatpush.bf16.msra.mxu0 0
        %2418 = vmatpush.bf16.msra.mxu0 0
        %2419 = vmatpush.bf16.msra.mxu0 %v2410
        %2420 = vmatpush.bf16.msra.mxu0 %v2409
        %2421 = vmatpush.bf16.msra.mxu0 %v2408
        %2422 = vmatpush.bf16.msra.mxu0 %v2407
        %2423 = vmatmul.bf16.gmra.mxu0 %v2215
        %v2424 = vpop.f32.mrf.mxu0
        %v2425 = vadd.f32 %v2383, %v2424
        %v2426 = vpop.f32.mrf.mxu0
        %2427 = vdwg.mxu0
        %v2436 = vunpack.c.l.b16 %v2350
        %v2437 = vunpack.c.l.b16 %v2351
        %v2438 = vunpack.c.l.b16 %v2352
        %v2439 = vunpack.c.l.b16 %v2353
        %v2440 = vunpack.c.l.b16 %v2354
        %v2441 = vunpack.c.l.b16 %v2355
        %v2442 = vunpack.c.l.b16 %v2356
        %v2443 = vunpack.c.l.b16 %v2357
        %v2444 = vpack.c.b16 %v2437, %v2436
        %v2445 = vpack.c.b16 %v2439, %v2438
        %v2446 = vpack.c.b16 %v2441, %v2440
        %v2447 = vpack.c.b16 %v2443, %v2442
        %2452 = vmatpush.bf16.msra.mxu0 0
        %2453 = vmatpush.bf16.msra.mxu0 0
        %2454 = vmatpush.bf16.msra.mxu0 0
        %2455 = vmatpush.bf16.msra.mxu0 0
        %2456 = vmatpush.bf16.msra.mxu0 %v2447
        %2457 = vmatpush.bf16.msra.mxu0 %v2446
        %2458 = vmatpush.bf16.msra.mxu0 %v2445
        %2459 = vmatpush.bf16.msra.mxu0 %v2444
        %2460 = vmatmul.bf16.gmra.mxu0 %v2215
        %v2461 = vpop.f32.mrf.mxu0
        %v2462 = vadd.f32 %v2384, %v2461
        %v2463 = vpop.f32.mrf.mxu0
        %2464 = vdwg.mxu0
        %v2473 = vunpack.c.l.b16 %v2358
        %v2474 = vunpack.c.l.b16 %v2359
        %v2475 = vunpack.c.l.b16 %v2360
        %v2476 = vunpack.c.l.b16 %v2361
        %v2477 = vunpack.c.l.b16 %v2362
        %v2478 = vunpack.c.l.b16 %v2363
        %v2479 = vunpack.c.l.b16 %v2364
        %v2480 = vunpack.c.l.b16 %v2365
        %v2481 = vpack.c.b16 %v2474, %v2473
        %v2482 = vpack.c.b16 %v2476, %v2475
        %v2483 = vpack.c.b16 %v2478, %v2477
        %v2484 = vpack.c.b16 %v2480, %v2479
        %2489 = vmatpush.bf16.msra.mxu0 0
        %2490 = vmatpush.bf16.msra.mxu0 0
        %2491 = vmatpush.bf16.msra.mxu0 0
        %2492 = vmatpush.bf16.msra.mxu0 0
        %2493 = vmatpush.bf16.msra.mxu0 %v2484
        %2494 = vmatpush.bf16.msra.mxu0 %v2483
        %2495 = vmatpush.bf16.msra.mxu0 %v2482
        %2496 = vmatpush.bf16.msra.mxu0 %v2481
        %2497 = vmatmul.bf16.gmra.mxu0 %v2215
        %v2498 = vpop.f32.mrf.mxu0
        %v2499 = vadd.f32 %v2385, %v2498
        %v2500 = vpop.f32.mrf.mxu0
        %2501 = vdwg.mxu0
        %v2510 = vunpack.c.l.b16 %v2366
        %v2511 = vunpack.c.l.b16 %v2367
        %v2512 = vunpack.c.l.b16 %v2368
        %v2513 = vunpack.c.l.b16 %v2369
        %v2514 = vunpack.c.l.b16 %v2370
        %v2515 = vunpack.c.l.b16 %v2371
        %v2516 = vunpack.c.l.b16 %v2372
        %v2517 = vunpack.c.l.b16 %v2373
        %v2518 = vpack.c.b16 %v2511, %v2510
        %v2519 = vpack.c.b16 %v2513, %v2512
        %v2520 = vpack.c.b16 %v2515, %v2514
        %v2521 = vpack.c.b16 %v2517, %v2516
        %2526 = vmatpush.bf16.msra.mxu0 0
        %2527 = vmatpush.bf16.msra.mxu0 0
        %2528 = vmatpush.bf16.msra.mxu0 0
        %2529 = vmatpush.bf16.msra.mxu0 0
        %2530 = vmatpush.bf16.msra.mxu0 %v2521
        %2531 = vmatpush.bf16.msra.mxu0 %v2520
        %2532 = vmatpush.bf16.msra.mxu0 %v2519
        %2533 = vmatpush.bf16.msra.mxu0 %v2518
        %2534 = vmatmul.bf16.gmra.mxu0 %v2215
        %v2535 = vpop.f32.mrf.mxu0
        %v2536 = vadd.f32 %v2386, %v2535
        %v2537 = vpop.f32.mrf.mxu0
        %2538 = vdwg.mxu0
        %s2539 = scalar_lea.vmem %s5, 128
        %v2540 = vld [vmem:[%s2539] sm:$0xf]
        %v2541 = vld [vmem:[%s2539 + $0x4] sm:$0xf]
        %v2542 = vld [vmem:[%s2539 + $0x8] sm:$0xf]
        %v2543 = vld [vmem:[%s2539 + $0xc] sm:$0xf]
        %v2544 = vld [vmem:[%s2539 + $0x10] sm:$0xf]
        %v2545 = vld [vmem:[%s2539 + $0x14] sm:$0xf]
        %v2546 = vld [vmem:[%s2539 + $0x18] sm:$0xf]
        %v2547 = vld [vmem:[%s2539 + $0x1c] sm:$0xf]
        %v2548 = vld [vmem:[%s2539 + $0x20] sm:$0xf]
        %v2549 = vld [vmem:[%s2539 + $0x24] sm:$0xf]
        %v2550 = vld [vmem:[%s2539 + $0x28] sm:$0xf]
        %v2551 = vld [vmem:[%s2539 + $0x2c] sm:$0xf]
        %v2552 = vld [vmem:[%s2539 + $0x30] sm:$0xf]
        %v2553 = vld [vmem:[%s2539 + $0x34] sm:$0xf]
        %v2554 = vld [vmem:[%s2539 + $0x38] sm:$0xf]
        %v2555 = vld [vmem:[%s2539 + $0x3c] sm:$0xf]
        %v2556 = vld [vmem:[%s2539 + $0x40] sm:$0xf]
        %v2557 = vld [vmem:[%s2539 + $0x44] sm:$0xf]
        %v2558 = vld [vmem:[%s2539 + $0x48] sm:$0xf]
        %v2559 = vld [vmem:[%s2539 + $0x4c] sm:$0xf]
        %v2560 = vld [vmem:[%s2539 + $0x50] sm:$0xf]
        %v2561 = vld [vmem:[%s2539 + $0x54] sm:$0xf]
        %v2562 = vld [vmem:[%s2539 + $0x58] sm:$0xf]
        %v2563 = vld [vmem:[%s2539 + $0x5c] sm:$0xf]
        %v2564 = vld [vmem:[%s2539 + $0x60] sm:$0xf]
        %v2565 = vld [vmem:[%s2539 + $0x64] sm:$0xf]
        %v2566 = vld [vmem:[%s2539 + $0x68] sm:$0xf]
        %v2567 = vld [vmem:[%s2539 + $0x6c] sm:$0xf]
        %v2568 = vld [vmem:[%s2539 + $0x70] sm:$0xf]
        %v2569 = vld [vmem:[%s2539 + $0x74] sm:$0xf]
        %v2570 = vld [vmem:[%s2539 + $0x78] sm:$0xf]
        %v2571 = vld [vmem:[%s2539 + $0x7c] sm:$0xf]
        %s2572 = scalar_lea.vmem %s8, 4
        %v2573 = vld [vmem:[%s2572] sm:$0x1]
        %v2574 = vld [vmem:[%s2572 + $0x1] sm:$0x1]
        %v2575 = vld [vmem:[%s2572 + $0x2] sm:$0x1]
        %v2576 = vld [vmem:[%s2572 + $0x3] sm:$0x1]
        %v2581 = vperm.slane %v2573, 0
        %v2582 = vperm.slane %v2574, 0
        %v2583 = vperm.slane %v2575, 0
        %v2584 = vperm.slane %v2576, 0
        %v2597 = vunpack.c.l.b16 %v2540
        %v2598 = vunpack.c.l.b16 %v2541
        %v2599 = vunpack.c.l.b16 %v2542
        %v2600 = vunpack.c.l.b16 %v2543
        %v2601 = vunpack.c.l.b16 %v2544
        %v2602 = vunpack.c.l.b16 %v2545
        %v2603 = vunpack.c.l.b16 %v2546
        %v2604 = vunpack.c.l.b16 %v2547
        %v2605 = vpack.c.b16 %v2598, %v2597
        %v2606 = vpack.c.b16 %v2600, %v2599
        %v2607 = vpack.c.b16 %v2602, %v2601
        %v2608 = vpack.c.b16 %v2604, %v2603
        %2613 = vmatpush.bf16.msra.mxu0 0
        %2614 = vmatpush.bf16.msra.mxu0 0
        %2615 = vmatpush.bf16.msra.mxu0 0
        %2616 = vmatpush.bf16.msra.mxu0 0
        %2617 = vmatpush.bf16.msra.mxu0 %v2608
        %2618 = vmatpush.bf16.msra.mxu0 %v2607
        %2619 = vmatpush.bf16.msra.mxu0 %v2606
        %2620 = vmatpush.bf16.msra.mxu0 %v2605
        %2621 = vmatmul.bf16.gmra.mxu0 %v2215
        %v2622 = vpop.f32.mrf.mxu0
        %v2623 = vadd.f32 %v2581, %v2622
        %v2624 = vpop.f32.mrf.mxu0
        %2625 = vdwg.mxu0
        %v2634 = vunpack.c.l.b16 %v2548
        %v2635 = vunpack.c.l.b16 %v2549
        %v2636 = vunpack.c.l.b16 %v2550
        %v2637 = vunpack.c.l.b16 %v2551
        %v2638 = vunpack.c.l.b16 %v2552
        %v2639 = vunpack.c.l.b16 %v2553
        %v2640 = vunpack.c.l.b16 %v2554
        %v2641 = vunpack.c.l.b16 %v2555
        %v2642 = vpack.c.b16 %v2635, %v2634
        %v2643 = vpack.c.b16 %v2637, %v2636
        %v2644 = vpack.c.b16 %v2639, %v2638
        %v2645 = vpack.c.b16 %v2641, %v2640
        %2650 = vmatpush.bf16.msra.mxu0 0
        %2651 = vmatpush.bf16.msra.mxu0 0
        %2652 = vmatpush.bf16.msra.mxu0 0
        %2653 = vmatpush.bf16.msra.mxu0 0
        %2654 = vmatpush.bf16.msra.mxu0 %v2645
        %2655 = vmatpush.bf16.msra.mxu0 %v2644
        %2656 = vmatpush.bf16.msra.mxu0 %v2643
        %2657 = vmatpush.bf16.msra.mxu0 %v2642
        %2658 = vmatmul.bf16.gmra.mxu0 %v2215
        %v2659 = vpop.f32.mrf.mxu0
        %v2660 = vadd.f32 %v2582, %v2659
        %v2661 = vpop.f32.mrf.mxu0
        %2662 = vdwg.mxu0
        %v2671 = vunpack.c.l.b16 %v2556
        %v2672 = vunpack.c.l.b16 %v2557
        %v2673 = vunpack.c.l.b16 %v2558
        %v2674 = vunpack.c.l.b16 %v2559
        %v2675 = vunpack.c.l.b16 %v2560
        %v2676 = vunpack.c.l.b16 %v2561
        %v2677 = vunpack.c.l.b16 %v2562
        %v2678 = vunpack.c.l.b16 %v2563
        %v2679 = vpack.c.b16 %v2672, %v2671
        %v2680 = vpack.c.b16 %v2674, %v2673
        %v2681 = vpack.c.b16 %v2676, %v2675
        %v2682 = vpack.c.b16 %v2678, %v2677
        %2687 = vmatpush.bf16.msra.mxu0 0
        %2688 = vmatpush.bf16.msra.mxu0 0
        %2689 = vmatpush.bf16.msra.mxu0 0
        %2690 = vmatpush.bf16.msra.mxu0 0
        %2691 = vmatpush.bf16.msra.mxu0 %v2682
        %2692 = vmatpush.bf16.msra.mxu0 %v2681
        %2693 = vmatpush.bf16.msra.mxu0 %v2680
        %2694 = vmatpush.bf16.msra.mxu0 %v2679
        %2695 = vmatmul.bf16.gmra.mxu0 %v2215
        %v2696 = vpop.f32.mrf.mxu0
        %v2697 = vadd.f32 %v2583, %v2696
        %v2698 = vpop.f32.mrf.mxu0
        %2699 = vdwg.mxu0
        %v2708 = vunpack.c.l.b16 %v2564
        %v2709 = vunpack.c.l.b16 %v2565
        %v2710 = vunpack.c.l.b16 %v2566
        %v2711 = vunpack.c.l.b16 %v2567
        %v2712 = vunpack.c.l.b16 %v2568
        %v2713 = vunpack.c.l.b16 %v2569
        %v2714 = vunpack.c.l.b16 %v2570
        %v2715 = vunpack.c.l.b16 %v2571
        %v2716 = vpack.c.b16 %v2709, %v2708
        %v2717 = vpack.c.b16 %v2711, %v2710
        %v2718 = vpack.c.b16 %v2713, %v2712
        %v2719 = vpack.c.b16 %v2715, %v2714
        %2724 = vmatpush.bf16.msra.mxu0 0
        %2725 = vmatpush.bf16.msra.mxu0 0
        %2726 = vmatpush.bf16.msra.mxu0 0
        %2727 = vmatpush.bf16.msra.mxu0 0
        %2728 = vmatpush.bf16.msra.mxu0 %v2719
        %2729 = vmatpush.bf16.msra.mxu0 %v2718
        %2730 = vmatpush.bf16.msra.mxu0 %v2717
        %2731 = vmatpush.bf16.msra.mxu0 %v2716
        %2732 = vmatmul.bf16.gmra.mxu0 %v2215
        %v2733 = vpop.f32.mrf.mxu0
        %v2734 = vadd.f32 %v2584, %v2733
        %v2735 = vpop.f32.mrf.mxu0
        %2736 = vdwg.mxu0
        %v2737 = vpack.c.bf16 %v2227, %v2227
        %v2738 = vpack.c.bf16 %v2264, %v2264
        %v2739 = vpack.c.bf16 %v2301, %v2301
        %v2740 = vpack.c.bf16 %v2338, %v2338
        %v2741 = vpack.c.bf16 %v2425, %v2425
        %v2742 = vpack.c.bf16 %v2462, %v2462
        %v2743 = vpack.c.bf16 %v2499, %v2499
        %v2744 = vpack.c.bf16 %v2536, %v2536
        %v2746 = vsel %vm1440, %v2737, 0
        %v2749 = vsel %vm1440, %v2741, 0
        %2751 = vmatpush.bf16.xpose.msra.mxu0 0
        %2752 = vmatpush.bf16.xpose.msra.mxu0 0
        %2753 = vmatpush.bf16.xpose.msra.mxu0 0
        %2754 = vmatpush.bf16.xpose.msra.mxu0 0
        %2755 = vmatpush.bf16.xpose.msra.mxu0 0
        %2756 = vmatpush.bf16.xpose.msra.mxu0 0
        %2757 = vmatpush.bf16.xpose.msra.mxu0 0
        %2758 = vmatpush.bf16.xpose.msra.mxu0 %v2749
        %2759 = vmatmul.bf16.gmra.mxu0 %v2746
        %v2760 = vpop.f32.mrf.mxu0
        %v2761 = vadd.f32 0.0, %v2760
        %v2762 = vpop.f32.mrf.mxu0
        %2763 = vdwg.mxu0
        %v2765 = vsel %vm1440, %v2738, 0
        %v2768 = vsel %vm1440, %v2742, 0
        %2770 = vmatpush.bf16.xpose.msra.mxu0 0
        %2771 = vmatpush.bf16.xpose.msra.mxu0 0
        %2772 = vmatpush.bf16.xpose.msra.mxu0 0
        %2773 = vmatpush.bf16.xpose.msra.mxu0 0
        %2774 = vmatpush.bf16.xpose.msra.mxu0 0
        %2775 = vmatpush.bf16.xpose.msra.mxu0 0
        %2776 = vmatpush.bf16.xpose.msra.mxu0 0
        %2777 = vmatpush.bf16.xpose.msra.mxu0 %v2768
        %2778 = vmatmul.bf16.gmra.mxu0 %v2765
        %v2779 = vpop.f32.mrf.mxu0
        %v2780 = vadd.f32 0.0, %v2779
        %v2781 = vpop.f32.mrf.mxu0
        %2782 = vdwg.mxu0
        %v2784 = vsel %vm1440, %v2739, 0
        %v2787 = vsel %vm1440, %v2743, 0
        %2789 = vmatpush.bf16.xpose.msra.mxu0 0
        %2790 = vmatpush.bf16.xpose.msra.mxu0 0
        %2791 = vmatpush.bf16.xpose.msra.mxu0 0
        %2792 = vmatpush.bf16.xpose.msra.mxu0 0
        %2793 = vmatpush.bf16.xpose.msra.mxu0 0
        %2794 = vmatpush.bf16.xpose.msra.mxu0 0
        %2795 = vmatpush.bf16.xpose.msra.mxu0 0
        %2796 = vmatpush.bf16.xpose.msra.mxu0 %v2787
        %2797 = vmatmul.bf16.gmra.mxu0 %v2784
        %v2798 = vpop.f32.mrf.mxu0
        %v2799 = vadd.f32 0.0, %v2798
        %v2800 = vpop.f32.mrf.mxu0
        %2801 = vdwg.mxu0
        %v2803 = vsel %vm1440, %v2740, 0
        %v2806 = vsel %vm1440, %v2744, 0
        %2808 = vmatpush.bf16.xpose.msra.mxu0 0
        %2809 = vmatpush.bf16.xpose.msra.mxu0 0
        %2810 = vmatpush.bf16.xpose.msra.mxu0 0
        %2811 = vmatpush.bf16.xpose.msra.mxu0 0
        %2812 = vmatpush.bf16.xpose.msra.mxu0 0
        %2813 = vmatpush.bf16.xpose.msra.mxu0 0
        %2814 = vmatpush.bf16.xpose.msra.mxu0 0
        %2815 = vmatpush.bf16.xpose.msra.mxu0 %v2806
        %2816 = vmatmul.bf16.gmra.mxu0 %v2803
        %v2817 = vpop.f32.mrf.mxu0
        %v2818 = vadd.f32 0.0, %v2817
        %v2819 = vpop.f32.mrf.mxu0
        %2820 = vdwg.mxu0
        %v2821 = vsel %vm1517, %v2761, -inf
        %2822 = vmax.xlane.f32.xlu0 %v2821
        %v2823 = vpop.xlane.xlu0 %2822
        %v2824 = vsel %vm1517, %v2780, -inf
        %2825 = vmax.xlane.f32.xlu0 %v2824
        %v2826 = vpop.xlane.xlu0 %2825
        %v2827 = vsel %vm1517, %v2799, -inf
        %2828 = vmax.xlane.f32.xlu0 %v2827
        %v2829 = vpop.xlane.xlu0 %2828
        %v2830 = vsel %vm1517, %v2818, -inf
        %2831 = vmax.xlane.f32.xlu0 %v2830
        %v2832 = vpop.xlane.xlu0 %2831
        %v2833 = vsub.f32 %v2761, %v2823
        %v2834 = vsub.f32 %v2780, %v2826
        %v2835 = vsub.f32 %v2799, %v2829
        %v2836 = vsub.f32 %v2818, %v2832
        %v2837 = vmul.f32 %v2833, 1.442695
        %v2838 = vpow.pop %v2837
        %v2839 = vmul.f32 %v2834, 1.442695
        %v2840 = vpow.pop %v2839
        %v2841 = vmul.f32 %v2835, 1.442695
        %v2842 = vpow.pop %v2841
        %v2843 = vmul.f32 %v2836, 1.442695
        %v2844 = vpow.pop %v2843
        %v2845 = vsel %vm1517, %v2838, 0.0
        %2846 = vadd.xlane.f32.xlu0 %v2845
        %v2847 = vpop.xlane.xlu0 %2846
        %v2848 = vsel %vm1517, %v2840, 0.0
        %2849 = vadd.xlane.f32.xlu0 %v2848
        %v2850 = vpop.xlane.xlu0 %2849
        %v2851 = vsel %vm1517, %v2842, 0.0
        %2852 = vadd.xlane.f32.xlu0 %v2851
        %v2853 = vpop.xlane.xlu0 %2852
        %v2854 = vsel %vm1517, %v2844, 0.0
        %2855 = vadd.xlane.f32.xlu0 %v2854
        %v2856 = vpop.xlane.xlu0 %2855
        %v2857 = vrcp.pop %v2847
        %v2858 = vmul.f32 %v2847, %v2857
        %v2859 = vsub.f32 1.0, %v2858
        %v2860 = vmul.f32 %v2857, %v2859
        %v2861 = vadd.f32 %v2857, %v2860
        %vm2862 = vweird.f32 %v2847
        %vm2863 = vweird.f32 %v2857
        %vm2864 = vmor %vm2862, %vm2863
        %v2865 = vsel %vm2864, %v2857, %v2861
        %v2866 = vand.u32 2147483647, %v2847
        %vm2867 = vcmp.eq.f32.partialorder %v2866, 8.507059e+37
        %v2868 = vand.u32 %v2847, 2147483648
        %v2869 = vor.u32 1.1754944e-38, %v2868
        %v2870 = vsel %vm2867, %v2869, %v2865
        %v2871 = vmul.f32 %v2838, %v2870
        %v2872 = vrcp.pop %v2850
        %v2873 = vmul.f32 %v2850, %v2872
        %v2874 = vsub.f32 1.0, %v2873
        %v2875 = vmul.f32 %v2872, %v2874
        %v2876 = vadd.f32 %v2872, %v2875
        %vm2877 = vweird.f32 %v2850
        %vm2878 = vweird.f32 %v2872
        %vm2879 = vmor %vm2877, %vm2878
        %v2880 = vsel %vm2879, %v2872, %v2876
        %v2881 = vand.u32 2147483647, %v2850
        %vm2882 = vcmp.eq.f32.partialorder %v2881, 8.507059e+37
        %v2883 = vand.u32 %v2850, 2147483648
        %v2884 = vor.u32 1.1754944e-38, %v2883
        %v2885 = vsel %vm2882, %v2884, %v2880
        %v2886 = vmul.f32 %v2840, %v2885
        %v2887 = vrcp.pop %v2853
        %v2888 = vmul.f32 %v2853, %v2887
        %v2889 = vsub.f32 1.0, %v2888
        %v2890 = vmul.f32 %v2887, %v2889
        %v2891 = vadd.f32 %v2887, %v2890
        %vm2892 = vweird.f32 %v2853
        %vm2893 = vweird.f32 %v2887
        %vm2894 = vmor %vm2892, %vm2893
        %v2895 = vsel %vm2894, %v2887, %v2891
        %v2896 = vand.u32 2147483647, %v2853
        %vm2897 = vcmp.eq.f32.partialorder %v2896, 8.507059e+37
        %v2898 = vand.u32 %v2853, 2147483648
        %v2899 = vor.u32 1.1754944e-38, %v2898
        %v2900 = vsel %vm2897, %v2899, %v2895
        %v2901 = vmul.f32 %v2842, %v2900
        %v2902 = vrcp.pop %v2856
        %v2903 = vmul.f32 %v2856, %v2902
        %v2904 = vsub.f32 1.0, %v2903
        %v2905 = vmul.f32 %v2902, %v2904
        %v2906 = vadd.f32 %v2902, %v2905
        %vm2907 = vweird.f32 %v2856
        %vm2908 = vweird.f32 %v2902
        %vm2909 = vmor %vm2907, %vm2908
        %v2910 = vsel %vm2909, %v2902, %v2906
        %v2911 = vand.u32 2147483647, %v2856
        %vm2912 = vcmp.eq.f32.partialorder %v2911, 8.507059e+37
        %v2913 = vand.u32 %v2856, 2147483648
        %v2914 = vor.u32 1.1754944e-38, %v2913
        %v2915 = vsel %vm2912, %v2914, %v2910
        %v2916 = vmul.f32 %v2844, %v2915
        %v2917 = vpack.c.bf16 %v2871, %v2871
        %v2918 = vpack.c.bf16 %v2886, %v2886
        %v2919 = vpack.c.bf16 %v2901, %v2901
        %v2920 = vpack.c.bf16 %v2916, %v2916
        %v2921 = vpack.c.bf16 %v2623, %v2623
        %v2922 = vpack.c.bf16 %v2660, %v2660
        %v2923 = vpack.c.bf16 %v2697, %v2697
        %v2924 = vpack.c.bf16 %v2734, %v2734
        %v2926 = vsel %vm1517, %v2917, 0
        %v2929 = vsel %vm1625, %v2921, 0
        %2931 = vmatpush.bf16.msra.mxu0 0
        %2932 = vmatpush.bf16.msra.mxu0 0
        %2933 = vmatpush.bf16.msra.mxu0 0
        %2934 = vmatpush.bf16.msra.mxu0 0
        %2935 = vmatpush.bf16.msra.mxu0 0
        %2936 = vmatpush.bf16.msra.mxu0 0
        %2937 = vmatpush.bf16.msra.mxu0 0
        %2938 = vmatpush.bf16.msra.mxu0 %v2929
        %2939 = vmatmul.bf16.gmra.mxu0 %v2926
        %v2940 = vpop.f32.mrf.mxu0
        %v2941 = vadd.f32 0.0, %v2940
        %v2942 = vpop.f32.mrf.mxu0
        %2943 = vdwg.mxu0
        %v2945 = vsel %vm1517, %v2918, 0
        %v2948 = vsel %vm1625, %v2922, 0
        %2950 = vmatpush.bf16.msra.mxu0 0
        %2951 = vmatpush.bf16.msra.mxu0 0
        %2952 = vmatpush.bf16.msra.mxu0 0
        %2953 = vmatpush.bf16.msra.mxu0 0
        %2954 = vmatpush.bf16.msra.mxu0 0
        %2955 = vmatpush.bf16.msra.mxu0 0
        %2956 = vmatpush.bf16.msra.mxu0 0
        %2957 = vmatpush.bf16.msra.mxu0 %v2948
        %2958 = vmatmul.bf16.gmra.mxu0 %v2945
        %v2959 = vpop.f32.mrf.mxu0
        %v2960 = vadd.f32 0.0, %v2959
        %v2961 = vpop.f32.mrf.mxu0
        %2962 = vdwg.mxu0
        %v2964 = vsel %vm1517, %v2919, 0
        %v2967 = vsel %vm1625, %v2923, 0
        %2969 = vmatpush.bf16.msra.mxu0 0
        %2970 = vmatpush.bf16.msra.mxu0 0
        %2971 = vmatpush.bf16.msra.mxu0 0
        %2972 = vmatpush.bf16.msra.mxu0 0
        %2973 = vmatpush.bf16.msra.mxu0 0
        %2974 = vmatpush.bf16.msra.mxu0 0
        %2975 = vmatpush.bf16.msra.mxu0 0
        %2976 = vmatpush.bf16.msra.mxu0 %v2967
        %2977 = vmatmul.bf16.gmra.mxu0 %v2964
        %v2978 = vpop.f32.mrf.mxu0
        %v2979 = vadd.f32 0.0, %v2978
        %v2980 = vpop.f32.mrf.mxu0
        %2981 = vdwg.mxu0
        %v2983 = vsel %vm1517, %v2920, 0
        %v2986 = vsel %vm1625, %v2924, 0
        %2988 = vmatpush.bf16.msra.mxu0 0
        %2989 = vmatpush.bf16.msra.mxu0 0
        %2990 = vmatpush.bf16.msra.mxu0 0
        %2991 = vmatpush.bf16.msra.mxu0 0
        %2992 = vmatpush.bf16.msra.mxu0 0
        %2993 = vmatpush.bf16.msra.mxu0 0
        %2994 = vmatpush.bf16.msra.mxu0 0
        %2995 = vmatpush.bf16.msra.mxu0 %v2986
        %2996 = vmatmul.bf16.gmra.mxu0 %v2983
        %v2997 = vpop.f32.mrf.mxu0
        %v2998 = vadd.f32 0.0, %v2997
        %v2999 = vpop.f32.mrf.mxu0
        %3000 = vdwg.mxu0
        %v3001 = vpack.c.bf16 %v2941, %v2941
        %v3002 = vpack.c.bf16 %v2960, %v2960
        %v3003 = vpack.c.bf16 %v2979, %v2979
        %v3004 = vpack.c.bf16 %v2998, %v2998
        %s3005 = scalar_lea.vmem %s9, 32
        %v3006 = vld [vmem:[%s3005] sm:$0xf]
        %v3007 = vld [vmem:[%s3005 + $0x4] sm:$0xf]
        %v3008 = vld [vmem:[%s3005 + $0x8] sm:$0xf]
        %v3009 = vld [vmem:[%s3005 + $0xc] sm:$0xf]
        %v3010 = vld [vmem:[%s3005 + $0x10] sm:$0xf]
        %v3011 = vld [vmem:[%s3005 + $0x14] sm:$0xf]
        %v3012 = vld [vmem:[%s3005 + $0x18] sm:$0xf]
        %v3013 = vld [vmem:[%s3005 + $0x1c] sm:$0xf]
        %v3016 = vunpack.c.l.b16 %v3006
        %v3017 = vunpack.c.l.b16 %v3007
        %v3018 = vpack.c.b16 %v3017, %v3016
        %v3021 = vsel %vm1440, %v3001, 0
        %3023 = vmatpush.bf16.msra.mxu0 0
        %3024 = vmatpush.bf16.msra.mxu0 0
        %3025 = vmatpush.bf16.msra.mxu0 0
        %3026 = vmatpush.bf16.msra.mxu0 0
        %3027 = vmatpush.bf16.msra.mxu0 0
        %3028 = vmatpush.bf16.msra.mxu0 0
        %3029 = vmatpush.bf16.msra.mxu0 0
        %3030 = vmatpush.bf16.msra.mxu0 %v3018
        %3031 = vmatmul.bf16.gmra.mxu0 %v3021
        %v3032 = vpop.f32.mrf.mxu0
        %v3033 = vadd.f32 0.0, %v3032
        %v3034 = vpop.f32.mrf.mxu0
        %3035 = vdwg.mxu0
        %v3038 = vunpack.c.l.b16 %v3008
        %v3039 = vunpack.c.l.b16 %v3009
        %v3040 = vpack.c.b16 %v3039, %v3038
        %v3043 = vsel %vm1440, %v3002, 0
        %3045 = vmatpush.bf16.msra.mxu0 0
        %3046 = vmatpush.bf16.msra.mxu0 0
        %3047 = vmatpush.bf16.msra.mxu0 0
        %3048 = vmatpush.bf16.msra.mxu0 0
        %3049 = vmatpush.bf16.msra.mxu0 0
        %3050 = vmatpush.bf16.msra.mxu0 0
        %3051 = vmatpush.bf16.msra.mxu0 0
        %3052 = vmatpush.bf16.msra.mxu0 %v3040
        %3053 = vmatmul.bf16.gmra.mxu0 %v3043
        %v3054 = vpop.f32.mrf.mxu0
        %v3055 = vadd.f32 0.0, %v3054
        %v3056 = vpop.f32.mrf.mxu0
        %3057 = vdwg.mxu0
        %v3060 = vunpack.c.l.b16 %v3010
        %v3061 = vunpack.c.l.b16 %v3011
        %v3062 = vpack.c.b16 %v3061, %v3060
        %v3065 = vsel %vm1440, %v3003, 0
        %3067 = vmatpush.bf16.msra.mxu0 0
        %3068 = vmatpush.bf16.msra.mxu0 0
        %3069 = vmatpush.bf16.msra.mxu0 0
        %3070 = vmatpush.bf16.msra.mxu0 0
        %3071 = vmatpush.bf16.msra.mxu0 0
        %3072 = vmatpush.bf16.msra.mxu0 0
        %3073 = vmatpush.bf16.msra.mxu0 0
        %3074 = vmatpush.bf16.msra.mxu0 %v3062
        %3075 = vmatmul.bf16.gmra.mxu0 %v3065
        %v3076 = vpop.f32.mrf.mxu0
        %v3077 = vadd.f32 0.0, %v3076
        %v3078 = vpop.f32.mrf.mxu0
        %3079 = vdwg.mxu0
        %v3082 = vunpack.c.l.b16 %v3012
        %v3083 = vunpack.c.l.b16 %v3013
        %v3084 = vpack.c.b16 %v3083, %v3082
        %v3087 = vsel %vm1440, %v3004, 0
        %3089 = vmatpush.bf16.msra.mxu0 0
        %3090 = vmatpush.bf16.msra.mxu0 0
        %3091 = vmatpush.bf16.msra.mxu0 0
        %3092 = vmatpush.bf16.msra.mxu0 0
        %3093 = vmatpush.bf16.msra.mxu0 0
        %3094 = vmatpush.bf16.msra.mxu0 0
        %3095 = vmatpush.bf16.msra.mxu0 0
        %3096 = vmatpush.bf16.msra.mxu0 %v3084
        %3097 = vmatmul.bf16.gmra.mxu0 %v3087
        %v3098 = vpop.f32.mrf.mxu0
        %v3099 = vadd.f32 0.0, %v3098
        %v3100 = vpop.f32.mrf.mxu0
        %3101 = vdwg.mxu0
        %v3102 = vsel %vm802, %v3033, 0.0
        %v3103 = vsel %vm802, %v3055, 0.0
        %v3104 = vadd.f32 %v3102, %v3103
        %v3105 = vsel %vm802, %v3077, 0.0
        %v3106 = vadd.f32 %v3104, %v3105
        %v3107 = vsel %vm802, %v3099, 0.0
        %v3108 = vadd.f32 %v3106, %v3107
        %s3109 = scalar_lea.vmem %s10, 1
        %v3110 = vld [vmem:[%s3109] sm:$0x1]
        %v3112 = vperm.slane %v3110, 0
        %v3114 = vadd.f32 %v3108, %v3112
        %v3115 = vadd.f32 %v3114, %v2138
        %s3116 = scalar_lea.vmem %s11, 1
        %v3117 = vld [vmem:[%s3116] sm:$0x1]
        %s3118 = scalar_lea.vmem %s12, 1
        %v3119 = vld [vmem:[%s3118] sm:$0x1]
        %v3120 = vsel %vm802, %v3115, 0.0
        %3121 = vadd.xlane.f32.xlu0 %v3120
        %v3122 = vpop.xlane.xlu0 %3121
        %v3123 = vmul.f32 %v3122, %v812
        %v3124 = vsub.f32 %v3115, %v3123
        %v3125 = vmul.f32 %v3124, %v3124
        %v3126 = vsel %vm802, %v3125, 0.0
        %3127 = vadd.xlane.f32.xlu0 %v3126
        %v3128 = vpop.xlane.xlu0 %3127
        %v3129 = vmul.f32 %v3128, %v812
        %v3130 = vadd.f32 %v3129, 1e-05
        %v3131 = vrsqrt.pop %v3130
        %v3132 = vmul.f32 %v3131, %v3130
        %v3133 = vmul.f32 %v3132, %v3131
        %v3134 = vmul.f32 0.5, %v3133
        %v3135 = vsub.f32 1.5, %v3134
        %v3136 = vmul.f32 %v3131, %v3135
        %vm3137 = vweird.f32 %v3130
        %vm3138 = vweird.f32 %v3131
        %vm3139 = vmor %vm3137, %vm3138
        %v3140 = vsel %vm3139, %v3131, %v3136
        %v3141 = vmul.f32 %v3124, %v3140
        %v3143 = vperm.slane %v3117, 0
        %v3145 = vmul.f32 %v3141, %v3143
        %v3147 = vperm.slane %v3119, 0
        %v3149 = vadd.f32 %v3145, %v3147
        %v3150 = vpack.c.bf16 %v3149, %v3149
        %s3151 = scalar_lea.vmem %s13, 64
        %v3152 = vld [vmem:[%s3151] sm:$0xff]
        %v3153 = vld [vmem:[%s3151 + $0x8] sm:$0xff]
        %v3154 = vld [vmem:[%s3151 + $0x10] sm:$0xff]
        %v3155 = vld [vmem:[%s3151 + $0x18] sm:$0xff]
        %v3156 = vld [vmem:[%s3151 + $0x20] sm:$0xff]
        %v3157 = vld [vmem:[%s3151 + $0x28] sm:$0xff]
        %v3158 = vld [vmem:[%s3151 + $0x30] sm:$0xff]
        %v3159 = vld [vmem:[%s3151 + $0x38] sm:$0xff]
        %s3160 = scalar_lea.vmem %s14, 2
        %v3161 = vld [vmem:[%s3160] sm:$0x3]
        %v3163 = vperm.slane %v3161, 0
        %v3164 = vperm.slane %v3161, 1
        %v3175 = vunpack.c.l.b16 %v3152
        %v3176 = vunpack.c.h.b16 %v3152
        %v3177 = vunpack.c.l.b16 %v3153
        %v3178 = vunpack.c.h.b16 %v3153
        %v3179 = vunpack.c.l.b16 %v3154
        %v3180 = vunpack.c.h.b16 %v3154
        %v3181 = vunpack.c.l.b16 %v3155
        %v3182 = vunpack.c.h.b16 %v3155
        %v3183 = vunpack.c.l.b16 %v3156
        %v3184 = vunpack.c.h.b16 %v3156
        %v3185 = vunpack.c.l.b16 %v3157
        %v3186 = vunpack.c.h.b16 %v3157
        %v3187 = vunpack.c.l.b16 %v3158
        %v3188 = vunpack.c.h.b16 %v3158
        %v3189 = vunpack.c.l.b16 %v3159
        %v3190 = vunpack.c.h.b16 %v3159
        %v3191 = vpack.c.b16 %v3177, %v3175
        %v3192 = vpack.c.b16 %v3178, %v3176
        %v3193 = vpack.c.b16 %v3181, %v3179
        %v3194 = vpack.c.b16 %v3182, %v3180
        %v3195 = vpack.c.b16 %v3185, %v3183
        %v3196 = vpack.c.b16 %v3186, %v3184
        %v3197 = vpack.c.b16 %v3189, %v3187
        %v3198 = vpack.c.b16 %v3190, %v3188
        %v3208 = vsel %vm802, %v3150, 0
        %3210 = vmatpush.bf16.msra.mxu0 0
        %3211 = vmatpush.bf16.msra.mxu0 0
        %3212 = vmatpush.bf16.msra.mxu0 0
        %3213 = vmatpush.bf16.msra.mxu0 0
        %3214 = vmatpush.bf16.msra.mxu0 %v3197
        %3215 = vmatpush.bf16.msra.mxu0 %v3195
        %3216 = vmatpush.bf16.msra.mxu0 %v3193
        %3217 = vmatpush.bf16.msra.mxu0 %v3191
        %3218 = vmatmul.bf16.gmra.mxu0 %v3208
        %v3219 = vpop.f32.mrf.mxu0
        %v3220 = vadd.f32 %v3163, %v3219
        %v3221 = vpop.f32.mrf.mxu0
        %3222 = vdwg.mxu0
        %3223 = vmatpush.bf16.msra.mxu0 0
        %3224 = vmatpush.bf16.msra.mxu0 0
        %3225 = vmatpush.bf16.msra.mxu0 0
        %3226 = vmatpush.bf16.msra.mxu0 0
        %3227 = vmatpush.bf16.msra.mxu0 %v3198
        %3228 = vmatpush.bf16.msra.mxu0 %v3196
        %3229 = vmatpush.bf16.msra.mxu0 %v3194
        %3230 = vmatpush.bf16.msra.mxu0 %v3192
        %3231 = vmatmul.bf16.gmra.mxu0 %v3208
        %v3232 = vpop.f32.mrf.mxu0
        %v3233 = vadd.f32 %v3164, %v3232
        %v3234 = vpop.f32.mrf.mxu0
        %3235 = vdwg.mxu0
        %v3236 = vmul.f32 %v3220, 0.5
        %v3237 = vmul.f32 %v3233, 0.5
        %v3238 = vmul.f32 %v3220, 0.044715
        %v3239 = vmul.f32 %v3233, 0.044715
        %v3240 = vmul.f32 %v3238, %v3220
        %v3241 = vmul.f32 %v3239, %v3233
        %v3242 = vmul.f32 %v3240, %v3220
        %v3243 = vmul.f32 %v3241, %v3233
        %v3244 = vadd.f32 %v3220, %v3242
        %v3245 = vadd.f32 %v3233, %v3243
        %v3246 = vmul.f32 %v3244, 0.7978846
        %v3247 = vmul.f32 %v3245, 0.7978846
        %v3248 = vtanh.pop %v3246
        %v3249 = vtanh.pop %v3247
        %v3250 = vadd.f32 %v3248, 1.0
        %v3251 = vadd.f32 %v3249, 1.0
        %v3252 = vmul.f32 %v3236, %v3250
        %v3253 = vmul.f32 %v3237, %v3251
        %v3254 = vpack.c.bf16 %v3252, %v3252
        %v3255 = vpack.c.bf16 %v3253, %v3253
        %s3256 = scalar_lea.vmem %s15, 128
        %v3257 = vld [vmem:[%s3256] sm:$0xf]
        %v3258 = vld [vmem:[%s3256 + $0x4] sm:$0xf]
        %v3259 = vld [vmem:[%s3256 + $0x8] sm:$0xf]
        %v3260 = vld [vmem:[%s3256 + $0xc] sm:$0xf]
        %v3261 = vld [vmem:[%s3256 + $0x10] sm:$0xf]
        %v3262 = vld [vmem:[%s3256 + $0x14] sm:$0xf]
        %v3263 = vld [vmem:[%s3256 + $0x18] sm:$0xf]
        %v3264 = vld [vmem:[%s3256 + $0x1c] sm:$0xf]
        %v3265 = vld [vmem:[%s3256 + $0x20] sm:$0xf]
        %v3266 = vld [vmem:[%s3256 + $0x24] sm:$0xf]
        %v3267 = vld [vmem:[%s3256 + $0x28] sm:$0xf]
        %v3268 = vld [vmem:[%s3256 + $0x2c] sm:$0xf]
        %v3269 = vld [vmem:[%s3256 + $0x30] sm:$0xf]
        %v3270 = vld [vmem:[%s3256 + $0x34] sm:$0xf]
        %v3271 = vld [vmem:[%s3256 + $0x38] sm:$0xf]
        %v3272 = vld [vmem:[%s3256 + $0x3c] sm:$0xf]
        %v3273 = vld [vmem:[%s3256 + $0x40] sm:$0xf]
        %v3274 = vld [vmem:[%s3256 + $0x44] sm:$0xf]
        %v3275 = vld [vmem:[%s3256 + $0x48] sm:$0xf]
        %v3276 = vld [vmem:[%s3256 + $0x4c] sm:$0xf]
        %v3277 = vld [vmem:[%s3256 + $0x50] sm:$0xf]
        %v3278 = vld [vmem:[%s3256 + $0x54] sm:$0xf]
        %v3279 = vld [vmem:[%s3256 + $0x58] sm:$0xf]
        %v3280 = vld [vmem:[%s3256 + $0x5c] sm:$0xf]
        %v3281 = vld [vmem:[%s3256 + $0x60] sm:$0xf]
        %v3282 = vld [vmem:[%s3256 + $0x64] sm:$0xf]
        %v3283 = vld [vmem:[%s3256 + $0x68] sm:$0xf]
        %v3284 = vld [vmem:[%s3256 + $0x6c] sm:$0xf]
        %v3285 = vld [vmem:[%s3256 + $0x70] sm:$0xf]
        %v3286 = vld [vmem:[%s3256 + $0x74] sm:$0xf]
        %v3287 = vld [vmem:[%s3256 + $0x78] sm:$0xf]
        %v3288 = vld [vmem:[%s3256 + $0x7c] sm:$0xf]
        %s3289 = scalar_lea.vmem %s16, 1
        %v3290 = vld [vmem:[%s3289] sm:$0x1]
        %v3292 = vperm.slane %v3290, 0
        %v3326 = vunpack.c.l.b16 %v3257
        %v3327 = vunpack.c.l.b16 %v3258
        %v3328 = vunpack.c.l.b16 %v3259
        %v3329 = vunpack.c.l.b16 %v3260
        %v3330 = vunpack.c.l.b16 %v3261
        %v3331 = vunpack.c.l.b16 %v3262
        %v3332 = vunpack.c.l.b16 %v3263
        %v3333 = vunpack.c.l.b16 %v3264
        %v3334 = vunpack.c.l.b16 %v3265
        %v3335 = vunpack.c.l.b16 %v3266
        %v3336 = vunpack.c.l.b16 %v3267
        %v3337 = vunpack.c.l.b16 %v3268
        %v3338 = vunpack.c.l.b16 %v3269
        %v3339 = vunpack.c.l.b16 %v3270
        %v3340 = vunpack.c.l.b16 %v3271
        %v3341 = vunpack.c.l.b16 %v3272
        %v3342 = vunpack.c.l.b16 %v3273
        %v3343 = vunpack.c.l.b16 %v3274
        %v3344 = vunpack.c.l.b16 %v3275
        %v3345 = vunpack.c.l.b16 %v3276
        %v3346 = vunpack.c.l.b16 %v3277
        %v3347 = vunpack.c.l.b16 %v3278
        %v3348 = vunpack.c.l.b16 %v3279
        %v3349 = vunpack.c.l.b16 %v3280
        %v3350 = vunpack.c.l.b16 %v3281
        %v3351 = vunpack.c.l.b16 %v3282
        %v3352 = vunpack.c.l.b16 %v3283
        %v3353 = vunpack.c.l.b16 %v3284
        %v3354 = vunpack.c.l.b16 %v3285
        %v3355 = vunpack.c.l.b16 %v3286
        %v3356 = vunpack.c.l.b16 %v3287
        %v3357 = vunpack.c.l.b16 %v3288
        %v3358 = vpack.c.b16 %v3327, %v3326
        %v3359 = vpack.c.b16 %v3329, %v3328
        %v3360 = vpack.c.b16 %v3331, %v3330
        %v3361 = vpack.c.b16 %v3333, %v3332
        %v3362 = vpack.c.b16 %v3335, %v3334
        %v3363 = vpack.c.b16 %v3337, %v3336
        %v3364 = vpack.c.b16 %v3339, %v3338
        %v3365 = vpack.c.b16 %v3341, %v3340
        %v3366 = vpack.c.b16 %v3343, %v3342
        %v3367 = vpack.c.b16 %v3345, %v3344
        %v3368 = vpack.c.b16 %v3347, %v3346
        %v3369 = vpack.c.b16 %v3349, %v3348
        %v3370 = vpack.c.b16 %v3351, %v3350
        %v3371 = vpack.c.b16 %v3353, %v3352
        %v3372 = vpack.c.b16 %v3355, %v3354
        %v3373 = vpack.c.b16 %v3357, %v3356
        %3390 = vmatpush.bf16.msra.mxu0 %v3365
        %3391 = vmatpush.bf16.msra.mxu0 %v3364
        %3392 = vmatpush.bf16.msra.mxu0 %v3363
        %3393 = vmatpush.bf16.msra.mxu0 %v3362
        %3394 = vmatpush.bf16.msra.mxu0 %v3361
        %3395 = vmatpush.bf16.msra.mxu0 %v3360
        %3396 = vmatpush.bf16.msra.mxu0 %v3359
        %3397 = vmatpush.bf16.msra.mxu0 %v3358
        %3398 = vmatmul.bf16.gmra.mxu0 %v3254
        %v3399 = vpop.f32.mrf.mxu0
        %v3400 = vadd.f32 %v3292, %v3399
        %v3401 = vpop.f32.mrf.mxu0
        %3402 = vdwg.mxu0
        %3403 = vmatpush.bf16.msra.mxu0 %v3373
        %3404 = vmatpush.bf16.msra.mxu0 %v3372
        %3405 = vmatpush.bf16.msra.mxu0 %v3371
        %3406 = vmatpush.bf16.msra.mxu0 %v3370
        %3407 = vmatpush.bf16.msra.mxu0 %v3369
        %3408 = vmatpush.bf16.msra.mxu0 %v3368
        %3409 = vmatpush.bf16.msra.mxu0 %v3367
        %3410 = vmatpush.bf16.msra.mxu0 %v3366
        %3411 = vmatmul.bf16.gmra.mxu0 %v3255
        %v3412 = vpop.f32.mrf.mxu0
        %v3413 = vadd.f32 %v3400, %v3412
        %v3414 = vpop.f32.mrf.mxu0
        %3415 = vdwg.mxu0
        %v3416 = vadd.f32 %v3413, %v3149
        %s3417 = scalar_lea.vmem %s17, 1
        %v3418 = vld [vmem:[%s3417] sm:$0x1]
        %s3419 = scalar_lea.vmem %s18, 1
        %v3420 = vld [vmem:[%s3419] sm:$0x1]
        %v3421 = vsel %vm802, %v3416, 0.0
        %3422 = vadd.xlane.f32.xlu0 %v3421
        %v3423 = vpop.xlane.xlu0 %3422
        %v3424 = vmul.f32 %v3423, %v812
        %v3425 = vsub.f32 %v3416, %v3424
        %v3426 = vmul.f32 %v3425, %v3425
        %v3427 = vsel %vm802, %v3426, 0.0
        %3428 = vadd.xlane.f32.xlu0 %v3427
        %v3429 = vpop.xlane.xlu0 %3428
        %v3430 = vmul.f32 %v3429, %v812
        %v3431 = vadd.f32 %v3430, 1e-05
        %v3432 = vrsqrt.pop %v3431
        %v3433 = vmul.f32 %v3432, %v3431
        %v3434 = vmul.f32 %v3433, %v3432
        %v3435 = vmul.f32 0.5, %v3434
        %v3436 = vsub.f32 1.5, %v3435
        %v3437 = vmul.f32 %v3432, %v3436
        %vm3438 = vweird.f32 %v3431
        %vm3439 = vweird.f32 %v3432
        %vm3440 = vmor %vm3438, %vm3439
        %v3441 = vsel %vm3440, %v3432, %v3437
        %v3442 = vmul.f32 %v3425, %v3441
        %v3444 = vperm.slane %v3418, 0
        %v3446 = vmul.f32 %v3442, %v3444
        %v3448 = vperm.slane %v3420, 0
        %v3450 = vadd.f32 %v3446, %v3448
        %3451 = vst.msk [vmem:[%s797] sm:$0xff] %vm802, %v3450
        %v3452 = vpack.c.bf16 %v3450, %v3450
        %v3453 = vld [vmem:[%s19] sm:$0xf]
        %v3454 = vld [vmem:[%s19 + $0x4] sm:$0xf]
        %v3455 = vld [vmem:[%s19 + $0x8] sm:$0xf]
        %v3456 = vld [vmem:[%s19 + $0xc] sm:$0xf]
        %v3457 = vld [vmem:[%s19 + $0x10] sm:$0xf]
        %v3458 = vld [vmem:[%s19 + $0x14] sm:$0xf]
        %v3459 = vld [vmem:[%s19 + $0x18] sm:$0xf]
        %v3460 = vld [vmem:[%s19 + $0x1c] sm:$0xf]
        %v3461 = vld [vmem:[%s20] sm:$0x1]
        %v3463 = vperm.slane %v3461, 0
        %v3473 = vunpack.c.l.b16 %v3453
        %v3474 = vunpack.c.l.b16 %v3454
        %v3475 = vunpack.c.l.b16 %v3455
        %v3476 = vunpack.c.l.b16 %v3456
        %v3477 = vunpack.c.l.b16 %v3457
        %v3478 = vunpack.c.l.b16 %v3458
        %v3479 = vunpack.c.l.b16 %v3459
        %v3480 = vunpack.c.l.b16 %v3460
        %v3481 = vpack.c.b16 %v3474, %v3473
        %v3482 = vpack.c.b16 %v3476, %v3475
        %v3483 = vpack.c.b16 %v3478, %v3477
        %v3484 = vpack.c.b16 %v3480, %v3479
        %v3490 = vsel %vm802, %v3452, 0
        %3492 = vmatpush.bf16.msra.mxu0 0
        %3493 = vmatpush.bf16.msra.mxu0 0
        %3494 = vmatpush.bf16.msra.mxu0 0
        %3495 = vmatpush.bf16.msra.mxu0 0
        %3496 = vmatpush.bf16.msra.mxu0 %v3484
        %3497 = vmatpush.bf16.msra.mxu0 %v3483
        %3498 = vmatpush.bf16.msra.mxu0 %v3482
        %3499 = vmatpush.bf16.msra.mxu0 %v3481
        %3500 = vmatmul.bf16.gmra.mxu0 %v3490
        %v3501 = vpop.f32.mrf.mxu0
        %v3502 = vadd.f32 %v3463, %v3501
        %v3503 = vpop.f32.mrf.mxu0
        %3504 = vdwg.mxu0
        %v3505 = vmul.f32 %v3502, 0.5
        %v3506 = vmul.f32 %v3502, 0.044715
        %v3507 = vmul.f32 %v3506, %v3502
        %v3508 = vmul.f32 %v3507, %v3502
        %v3509 = vadd.f32 %v3502, %v3508
        %v3510 = vmul.f32 %v3509, 0.7978846
        %v3511 = vtanh.pop %v3510
        %v3512 = vadd.f32 %v3511, 1.0
        %v3513 = vmul.f32 %v3505, %v3512
        %v3514 = vld [vmem:[%s21] sm:$0x1]
        %v3515 = vld [vmem:[%s22] sm:$0x1]
        %v3516 = vsel %vm802, %v3513, 0.0
        %3517 = vadd.xlane.f32.xlu0 %v3516
        %v3518 = vpop.xlane.xlu0 %3517
        %v3519 = vmul.f32 %v3518, %v812
        %v3520 = vsub.f32 %v3513, %v3519
        %v3521 = vmul.f32 %v3520, %v3520
        %v3522 = vsel %vm802, %v3521, 0.0
        %3523 = vadd.xlane.f32.xlu0 %v3522
        %v3524 = vpop.xlane.xlu0 %3523
        %v3525 = vmul.f32 %v3524, %v812
        %v3526 = vadd.f32 %v3525, 1e-05
        %v3527 = vrsqrt.pop %v3526
        %v3528 = vmul.f32 %v3527, %v3526
        %v3529 = vmul.f32 %v3528, %v3527
        %v3530 = vmul.f32 0.5, %v3529
        %v3531 = vsub.f32 1.5, %v3530
        %v3532 = vmul.f32 %v3527, %v3531
        %vm3533 = vweird.f32 %v3526
        %vm3534 = vweird.f32 %v3527
        %vm3535 = vmor %vm3533, %vm3534
        %v3536 = vsel %vm3535, %v3527, %v3532
        %v3537 = vmul.f32 %v3520, %v3536
        %v3539 = vperm.slane %v3514, 0
        %v3541 = vmul.f32 %v3537, %v3539
        %v3543 = vperm.slane %v3515, 0
        %v3545 = vadd.f32 %v3541, %v3543
        %v3546 = vpack.c.bf16 %v3545, %v3545
        %v3547 = vld [vmem:[%s23] sm:$0xf]
        %v3548 = vld [vmem:[%s23 + $0x4] sm:$0xf]
        %v3549 = vld [vmem:[%s23 + $0x8] sm:$0xf]
        %v3550 = vld [vmem:[%s23 + $0xc] sm:$0xf]
        %v3551 = vld [vmem:[%s23 + $0x10] sm:$0xf]
        %v3552 = vld [vmem:[%s23 + $0x14] sm:$0xf]
        %v3553 = vld [vmem:[%s23 + $0x18] sm:$0xf]
        %v3554 = vld [vmem:[%s23 + $0x1c] sm:$0xf]
        %v3555 = vld [vmem:[%s24] sm:$0x1]
        %v3557 = vperm.slane %v3555, 0
        %v3567 = vunpack.c.l.b16 %v3547
        %v3568 = vunpack.c.l.b16 %v3548
        %v3569 = vunpack.c.l.b16 %v3549
        %v3570 = vunpack.c.l.b16 %v3550
        %v3571 = vunpack.c.l.b16 %v3551
        %v3572 = vunpack.c.l.b16 %v3552
        %v3573 = vunpack.c.l.b16 %v3553
        %v3574 = vunpack.c.l.b16 %v3554
        %v3575 = vpack.c.b16 %v3568, %v3567
        %v3576 = vpack.c.b16 %v3570, %v3569
        %v3577 = vpack.c.b16 %v3572, %v3571
        %v3578 = vpack.c.b16 %v3574, %v3573
        %v3584 = vsel %vm802, %v3546, 0
        %3586 = vmatpush.bf16.msra.mxu0 0
        %3587 = vmatpush.bf16.msra.mxu0 0
        %3588 = vmatpush.bf16.msra.mxu0 0
        %3589 = vmatpush.bf16.msra.mxu0 0
        %3590 = vmatpush.bf16.msra.mxu0 %v3578
        %3591 = vmatpush.bf16.msra.mxu0 %v3577
        %3592 = vmatpush.bf16.msra.mxu0 %v3576
        %3593 = vmatpush.bf16.msra.mxu0 %v3575
        %3594 = vmatmul.bf16.gmra.mxu0 %v3584
        %v3595 = vpop.f32.mrf.mxu0
        %v3596 = vadd.f32 %v3557, %v3595
        %v3597 = vpop.f32.mrf.mxu0
        %3598 = vdwg.mxu0
        %3599 = vst [vmem:[%s783] sm:$0xff] %v3596
        %s3600 = sand.u32 %s579, 1
        %s3601 = scalar_lea.sflag [#allocation3], %s3600
        %s3602 = sand.u32 %s579, 1
        %s3603 = smul.addr %s3602, 8
        %s3604 = scalar_lea.vmem [#allocation2], %s3603
        %p3605 = scmp.lt.s32.totalorder %s41, 1
        %s3606 = scalar_select %p3605, %s41, 1
        %s3607 = smul.addr %s3606, 8
        %s3608 = scalar_lea.vmem %s26, %s3607
        // Predicated region
        $region121: #{model_forward.1} parent=119 // pred_check
          %p3609 = pneg %p589
        $region122: #{model_forward.1} parent=119 // pred_check_branch
          %3611 = sbr.rel (%p3609) target = $region124
        $region123: #{model_forward.1} parent=119 // pred_region
          %3613 = vsyncadd %s3601, 0
          %s3614 = smul.addr %s41, 8
          %s3615 = scalar_lea.hbm %s25, %s3614
          %s3617 = sshll.u32 %s3604, 4
          %s3618 = int_to_ptr.vmem [resolvable:$true] %s3617
          %s3619 = sshll.u32 %s3615, 4
          %s3620 = int_to_ptr.hbm [resolvable:$true] %s3619
          %3622 = dma.vmem_to_hbm [thread:$0]  %s3618, 128, %s3620, %s3601
        $region124: #{model_forward.1} parent=119 // pred_fallthru
          _
        // Predicated region
        $region125: #{model_forward.1} parent=119 // pred_check
          %p3623 = pneg %p615
        $region126: #{model_forward.1} parent=119 // pred_check_branch
          %3625 = sbr.rel (%p3623) target = $region128
        $region127: #{model_forward.1} parent=119 // pred_region
          _
        $region128: #{model_forward.1} parent=119 // pred_fallthru
          _
      $region120: #{model_forward.1} parent=5 // pred_fallthru
        _
      %p3626 = scmp.le.s32.totalorder 2, %s36
      // Predicated region
      $region129: #{model_forward.1} parent=5 // pred_check
        %p3627 = pneg %p3626
      $region130: #{model_forward.1} parent=5 // pred_check_branch
        %3629 = sbr.rel (%p3627) target = $region132
      $region131: #{model_forward.1} parent=5 // pred_region
        %s3630 = ssub.s32 %s36, 2
        // Predicated region
        $region133: #{model_forward.1} parent=131 // pred_check
          %p3631 = pneg %p595
        $region134: #{model_forward.1} parent=131 // pred_check_branch
          %3633 = sbr.rel (%p3631) target = $region136
        $region135: #{model_forward.1} parent=131 // pred_region
          %s3634 = sand.u32 %s580, 1
          %s3635 = scalar_lea.sflag [#allocation3], %s3634
          %s3636 = sand.u32 %s580, 1
          %s3637 = smul.addr %s3636, 8
          %s3638 = scalar_lea.vmem [#allocation2], %s3637
          %3640 = dma.done %s3635, 128
        $region136: #{model_forward.1} parent=131 // pred_fallthru
          _
        // Predicated region
        $region137: #{model_forward.1} parent=131 // pred_check
          %p3641 = pneg %p621
        $region138: #{model_forward.1} parent=131 // pred_check_branch
          %3643 = sbr.rel (%p3641) target = $region140
        $region139: #{model_forward.1} parent=131 // pred_region
          %p3644 = scmp.lt.s32.totalorder %s42, 1
          %s3645 = scalar_select %p3644, %s42, 1
          %s3646 = smul.addr %s3645, 8
          %s3647 = scalar_lea.vmem %s26, %s3646
        $region140: #{model_forward.1} parent=131 // pred_fallthru
          _
      $region132: #{model_forward.1} parent=5 // pred_fallthru
        _
    $region6: #{model_forward.1} parent=1 // loop_footer
      %s40 = sadd.s32 1, %s36
    $region7: #{model_forward.1} parent=1 // loop_footer_branch
      %35 = sbr.rel target = $region3
    $region8: #{model_forward.1} parent=1 // loop_exit
      _
    %3648 = vsyncpa [#allocation3], 1
    %s3649 = scalar_lea.sflag [#allocation3], 1
    %3650 = vsyncpa %s3649, 1

</llo_original>
